<compile_context>
chip_gen: v5e
topology: v5e:2x2
jax: 0.10.0
libtpu: 0.0.40
codegen_flags: <defaults>
</compile_context>

<pallas_src>
import functools
import math

import numpy as np
import jax
import jax.numpy as jnp
from jax import lax
from jax.experimental import pallas as pl
from jax.experimental.pallas import tpu as pltpu

LANE = 128


def _atan(x):
    """Cephes single-precision arctan (branchless); matches torch.atan to ~1e-6."""
    sgn = jnp.where(x < 0.0, -1.0, 1.0)
    a = jnp.abs(x)
    t3 = 2.414213562373095   # tan(3*pi/8)
    t1 = 0.4142135623730951  # tan(pi/8)
    big = a > t3
    mid = jnp.logical_and(a > t1, jnp.logical_not(big))
    xr = jnp.where(big, -1.0 / jnp.maximum(a, 1e-30),
                   jnp.where(mid, (a - 1.0) / (a + 1.0), a))
    off = jnp.where(big, math.pi / 2.0, jnp.where(mid, math.pi / 4.0, 0.0))
    z = xr * xr
    poly = (((8.05374449538e-2 * z - 1.38776856032e-1) * z + 1.99777106478e-1) * z
            - 3.33329491539e-1) * z * xr + xr
    return sgn * (off + poly)


def bbox_loss_kernel(*refs, reg_max, use_dfl, chunk, num_chunks):
    eps = 1e-7
    if use_dfl:
        pd_ref, pb_ref, tb_ref, anc_ref, ciou_ref, dfl_ref = refs
    else:
        pb_ref, tb_ref, anc_ref, ciou_ref = refs
        pd_ref = dfl_ref = None
    R = reg_max + 1

    def process(off):
        sl = pl.ds(off, chunk)
        b1x1 = pb_ref[0, sl, :]
        b1y1 = pb_ref[1, sl, :]
        b1x2 = pb_ref[2, sl, :]
        b1y2 = pb_ref[3, sl, :]
        b2x1 = tb_ref[0, sl, :]
        b2y1 = tb_ref[1, sl, :]
        b2x2 = tb_ref[2, sl, :]
        b2y2 = tb_ref[3, sl, :]

        # ---- CIoU (bbox_iou, xywh=False, CIoU=True) ----
        w1 = b1x2 - b1x1
        h1 = b1y2 - b1y1 + eps
        w2 = b2x2 - b2x1
        h2 = b2y2 - b2y1 + eps
        inter = (jnp.maximum(jnp.minimum(b1x2, b2x2) - jnp.maximum(b1x1, b2x1), 0.0)
                 * jnp.maximum(jnp.minimum(b1y2, b2y2) - jnp.maximum(b1y1, b2y1), 0.0))
        union = w1 * h1 + w2 * h2 - inter + eps
        iou = inter * pl.reciprocal(union, approx=True)
        cw = jnp.maximum(b1x2, b2x2) - jnp.minimum(b1x1, b2x1)
        ch_ = jnp.maximum(b1y2, b2y2) - jnp.minimum(b1y1, b2y1)
        c2 = cw * cw + ch_ * ch_ + eps
        rho2 = ((b2x1 + b2x2 - b1x1 - b1x2) ** 2
                + (b2y1 + b2y2 - b1y1 - b1y2) ** 2) * 0.25
        # divides feeding atan moved onto the EUP (approx reciprocal)
        v = (4.0 / math.pi ** 2) * (_atan(w2 * pl.reciprocal(h2, approx=True))
                                    - _atan(w1 * pl.reciprocal(h1, approx=True))) ** 2
        alpha = v * pl.reciprocal(v - iou + (1.0 + eps), approx=True)
        ciou = iou - (rho2 * pl.reciprocal(c2, approx=True) + v * alpha)
        ciou_ref[sl, :] = ciou  # dense per-anchor CIoU map

        if use_dfl:
            ax = anc_ref[0, sl, :]
            ay = anc_ref[1, sl, :]
            tmax = reg_max - 0.01
            dfl_acc = jnp.zeros_like(ciou)
            for side in range(4):
                # bbox2dist target for this side (computed in-loop: fewer live vregs)
                if side == 0:
                    t = jnp.clip(ax - b2x1, 0.0, tmax)
                elif side == 1:
                    t = jnp.clip(ay - b2y1, 0.0, tmax)
                elif side == 2:
                    t = jnp.clip(b2x2 - ax, 0.0, tmax)
                else:
                    t = jnp.clip(b2y2 - ay, 0.0, tmax)
                # pass 1: running max over the R bins, one (chunk,128) plane at a time
                m = pd_ref[side, 0, sl, :].astype(jnp.float32)
                for r in range(1, R):
                    m = jnp.maximum(m, pd_ref[side, r, sl, :].astype(jnp.float32))
                # pass 2: sum(exp(l - m)) + hat-weight gather wl*l_tl + wr*l_{tl+1}
                #   hat(r, t) = relu(1 - |r - t|)
                s = jnp.zeros_like(m)
                g = jnp.zeros_like(m)
                for r in range(R):
                    l = pd_ref[side, r, sl, :].astype(jnp.float32)
                    s = s + jnp.exp(l - m)
                    w = jnp.maximum(1.0 - jnp.abs(t - float(r)), 0.0)
                    g = g + w * l
                # wl*(lse - l_tl) + wr*(lse - l_{tl+1}) == lse - g   (wl + wr == 1)
                dfl_acc = dfl_acc + (m + jnp.log(s) - g)
            dfl_ref[sl, :] = dfl_acc * 0.25  # mean over the 4 sides

    if num_chunks == 1:
        process(0)
    else:
        def body(c, carry):
            process(pl.multiple_of(c * chunk, chunk))
            return carry
        lax.fori_loop(0, num_chunks, body, 0)


def bbox_loss(pred_dist, pred_bboxes, anchor_points, target_bboxes,
              target_scores, target_scores_sum, fg_mask,
              *, reg_max, use_dfl=True, tile_rows=64, chunk_rows=16,
              pred_dist_dtype=jnp.bfloat16):
    """tile_rows * 128 anchors per grid step (tile_rows must be a multiple of 8)."""
    B, N, _ = pred_bboxes.shape
    R = reg_max + 1
    M = B * N

    # ---- tiling: anchor axis -> (rows, 128), rows padded to the DMA tile ----
    rows_raw = -(-M // LANE)
    if rows_raw <= tile_rows:
        tr = rows_raw                      # single step, full-dim sublane block
        rows = rows_raw
    else:
        assert tile_rows % 8 == 0
        tr = tile_rows
        rows = -(-rows_raw // tr) * tr
    M_pad = rows * LANE

    chunk = chunk_rows if (tr % chunk_rows == 0) else tr
    num_chunks = tr // chunk

    def to_lanes(x_fm, dtype=jnp.float32):
        # (..., M) -> (..., rows, 128), zero-padded; cast fused with the relayout.
        x_fm = x_fm.astype(dtype)
        if M_pad != M:
            cfg = [(0, 0)] * (x_fm.ndim - 1) + [(0, M_pad - M)]
            x_fm = jnp.pad(x_fm, cfg)
        return x_fm.reshape(x_fm.shape[:-1] + (rows, LANE))

    # Layout glue (anchor-last, batch flattened into anchors: m = b*N + n).
    # TODO(synk): have the detection head emit pred_dist already (4, R, anchor)-major
    # so this HBM round-trip transpose disappears entirely.
    pb_t = to_lanes(jnp.transpose(pred_bboxes, (2, 0, 1)).reshape(4, M))
    tb_t = to_lanes(jnp.transpose(target_bboxes, (2, 0, 1)).reshape(4, M))
    anc_t = to_lanes(jnp.broadcast_to(anchor_points.T[:, None, :], (2, B, N)).reshape(2, M))

    in_arrays = [pb_t, tb_t, anc_t]
    in_specs = [
        pl.BlockSpec((4, tr, LANE), lambda i: (0, i, 0)),
        pl.BlockSpec((4, tr, LANE), lambda i: (0, i, 0)),
        pl.BlockSpec((2, tr, LANE), lambda i: (0, i, 0)),
    ]
    if use_dfl:
        pd_t = to_lanes(jnp.transpose(pred_dist.reshape(B, N, 4, R), (2, 3, 0, 1))
                        .reshape(4, R, M), dtype=pred_dist_dtype)
        in_arrays = [pd_t] + in_arrays
        in_specs = [pl.BlockSpec((4, R, tr, LANE), lambda i: (0, 0, i, 0))] + in_specs
        out_shape = (jax.ShapeDtypeStruct((rows, LANE), jnp.float32),
                     jax.ShapeDtypeStruct((rows, LANE), jnp.float32))
        out_specs = (pl.BlockSpec((tr, LANE), lambda i: (i, 0)),
                     pl.BlockSpec((tr, LANE), lambda i: (i, 0)))
    else:
        out_shape = jax.ShapeDtypeStruct((rows, LANE), jnp.float32)
        out_specs = pl.BlockSpec((tr, LANE), lambda i: (i, 0))

    # Scoped-VMEM sizing: per-step bytes x2 (double buffer) + 50% headroom.
    pd_item = jnp.dtype(pred_dist_dtype).itemsize
    per_step = ((4 * R * tr * LANE * pd_item) if use_dfl else 0) \
        + (4 + 4 + 2) * tr * LANE * 4 \
        + (2 if use_dfl else 1) * tr * LANE * 4
    vmem_limit = int(min(max(3 * per_step + (2 << 20), 8 << 20), 48 << 20))

    kernel = functools.partial(bbox_loss_kernel, reg_max=reg_max, use_dfl=use_dfl,
                               chunk=chunk, num_chunks=num_chunks)
    outs = pl.pallas_call(
        kernel,
        out_shape=out_shape,
        grid=(rows // tr,),
        in_specs=in_specs,
        out_specs=out_specs,
        compiler_params=pltpu.CompilerParams(
            dimension_semantics=("parallel",),
            vmem_limit_bytes=vmem_limit),
    )(*in_arrays)

    ciou2d = outs[0] if use_dfl else outs

    # Tiny fused XLA epilogue: fg-weighted sums and the target_scores_sum divide.
    weight = (jnp.sum(target_scores.astype(jnp.float32), -1)
              * fg_mask.astype(jnp.float32)).reshape(M)
    tss = jnp.asarray(target_scores_sum, jnp.float32)
    ciou_flat = ciou2d.reshape(-1)[:M]
    loss_iou = jnp.sum((1.0 - ciou_flat) * weight) / tss
    if use_dfl:
        loss_dfl = jnp.sum(outs[1].reshape(-1)[:M] * weight) / tss
    else:
        loss_dfl = jnp.float32(0.0)

    # TODO(synk): PyTorch returns `iou` only at positive anchors with dynamic shape
    # (num_pos, 1) via masked_select; dynamic shapes aren't expressible here, so we
    # return the dense per-anchor CIoU map (B, N) instead.
    return loss_iou, loss_dfl, ciou_flat.reshape(B, N)


# ---------------- pure-JAX reference (mirrors the PyTorch math) ----------------
def ref_bbox_loss(pred_dist, pred_bboxes, anchor_points, target_bboxes,
                  target_scores, target_scores_sum, fg_mask, reg_max, use_dfl=True):
    eps = 1e-7
    B, N, _ = pred_bboxes.shape
    R = reg_max + 1
    fg = fg_mask.astype(jnp.float32)
    bbox_weight = jnp.sum(target_scores, -1)

    b1x1, b1y1, b1x2, b1y2 = [pred_bboxes[..., k] for k in range(4)]
    b2x1, b2y1, b2x2, b2y2 = [target_bboxes[..., k] for k in range(4)]
    w1, h1 = b1x2 - b1x1, b1y2 - b1y1 + eps
    w2, h2 = b2x2 - b2x1, b2y2 - b2y1 + eps
    inter = (jnp.maximum(jnp.minimum(b1x2, b2x2) - jnp.maximum(b1x1, b2x1), 0.0)
             * jnp.maximum(jnp.minimum(b1y2, b2y2) - jnp.maximum(b1y1, b2y1), 0.0))
    union = w1 * h1 + w2 * h2 - inter + eps
    iou = inter / union
    cw = jnp.maximum(b1x2, b2x2) - jnp.minimum(b1x1, b2x1)
    ch = jnp.maximum(b1y2, b2y2) - jnp.minimum(b1y1, b2y1)
    c2 = cw * cw + ch * ch + eps
    rho2 = ((b2x1 + b2x2 - b1x1 - b1x2) ** 2 + (b2y1 + b2y2 - b1y1 - b1y2) ** 2) / 4.0
    v = (4.0 / math.pi ** 2) * (jnp.arctan(w2 / h2) - jnp.arctan(w1 / h1)) ** 2
    alpha = v / (v - iou + (1.0 + eps))
    ciou = iou - (rho2 / c2 + v * alpha)
    loss_iou = jnp.sum((1.0 - ciou) * bbox_weight * fg) / target_scores_sum

    loss_dfl = jnp.float32(0.0)
    if use_dfl:
        pd = pred_dist.reshape(B, N, 4, R)
        tgt = jnp.concatenate([anchor_points[None] - target_bboxes[..., :2],
                               target_bboxes[..., 2:] - anchor_points[None]], -1)
        tgt = jnp.clip(tgt, 0.0, reg_max - 0.01)
        tl = tgt.astype(jnp.int32)
        trr = tl + 1
        wl = trr.astype(jnp.float32) - tgt
        wr = 1.0 - wl
        logp = jax.nn.log_softmax(pd, axis=-1)
        ce_l = -jnp.take_along_axis(logp, tl[..., None], axis=-1)[..., 0]
        ce_r = -jnp.take_along_axis(logp, trr[..., None], axis=-1)[..., 0]
        dfl = jnp.mean(ce_l * wl + ce_r * wr, axis=-1)
        loss_dfl = jnp.sum(dfl * bbox_weight * fg) / target_scores_sum
    return loss_iou, loss_dfl, ciou


def _make_inputs(key, B, N, C, reg_max):
    R = reg_max + 1
    k = jax.random.split(key, 8)
    p_xy = jax.random.uniform(k[0], (B, N, 2), jnp.float32) * 10.0
    p_wh = jax.random.uniform(k[1], (B, N, 2), jnp.float32) * 5.0 + 0.5
    pred_bboxes = jnp.concatenate([p_xy, p_xy + p_wh], -1)
    t_xy = jax.random.uniform(k[2], (B, N, 2), jnp.float32) * 10.0
    t_wh = jax.random.uniform(k[3], (B, N, 2), jnp.float32) * 5.0 + 0.5
    target_bboxes = jnp.concatenate([t_xy, t_xy + t_wh], -1)
    anchor_points = jax.random.uniform(k[4], (N, 2), jnp.float32) * 12.0
    target_scores = jax.random.uniform(k[5], (B, N, C), jnp.float32)
    fg_mask = jax.random.bernoulli(k[6], 0.5, (B, N))
    pred_dist = jax.random.normal(k[7], (B, N, 4 * R), jnp.float32)
    target_scores_sum = jnp.maximum(jnp.sum(target_scores), 1.0)
    return (pred_dist, pred_bboxes, anchor_points, target_bboxes,
            target_scores, target_scores_sum, fg_mask)


def _check(args, reg_max, **kw):
    out = bbox_loss(*args, reg_max=reg_max, use_dfl=True, **kw)
    jax.block_until_ready(out)
    li, ld, ciou = out
    rli, rld, rciou = ref_bbox_loss(*args, reg_max=reg_max, use_dfl=True)
    # Tolerances cover approx-EUP reciprocals (~2e-4 rel), the atan poly and the
    # bf16 pred_dist stream (DFL path only).
    assert np.allclose(np.asarray(li), np.asarray(rli), rtol=2e-3, atol=2e-4), (li, rli)
    assert np.allclose(np.asarray(ld), np.asarray(rld), rtol=5e-3, atol=1e-3), (ld, rld)
    assert np.allclose(np.asarray(ciou), np.asarray(rciou), rtol=2e-3, atol=2e-3)


if __name__ == "__main__":
    reg_max = 16
    key = jax.random.PRNGKey(0)
    k1, k2 = jax.random.split(key)

    # Small shape: single grid step, single chunk.
    _check(_make_inputs(k1, B=2, N=256, C=8, reg_max=reg_max), reg_max)

    # Slightly larger shape exercising padding, multiple grid steps and the
    # in-kernel sub-chunk fori_loop.
    _check(_make_inputs(k2, B=2, N=2000, C=8, reg_max=reg_max), reg_max,
           tile_rows=16, chunk_rows=8)

    print("KERNEL_OK")
</pallas_src>

<mosaic_0001>
module attributes {stable_mosaic.version = 11 : i64} {
  func.func @bbox_loss_kernel(%arg0: i32, %arg1: memref<4x17x4x128xbf16, #tpu.memory_space<vmem>>, %arg2: memref<4x4x128xf32, #tpu.memory_space<vmem>>, %arg3: memref<4x4x128xf32, #tpu.memory_space<vmem>>, %arg4: memref<2x4x128xf32, #tpu.memory_space<vmem>>, %arg5: memref<4x128xf32, #tpu.memory_space<vmem>>, %arg6: memref<4x128xf32, #tpu.memory_space<vmem>>) attributes {dimension_semantics = [#tpu.dimension_semantics<parallel>], iteration_bounds = array<i64: 1>, scalar_prefetch = 0 : i64, scratch_operands = 0 : i64, tpu.core_type = #tpu.core_type<tc>, window_params = [{transform_indices = @transform_0, window_bounds = array<i64: 4, 17, 4, 128>}, {transform_indices = @transform_1, window_bounds = array<i64: 4, 4, 128>}, {transform_indices = @transform_2, window_bounds = array<i64: 4, 4, 128>}, {transform_indices = @transform_3, window_bounds = array<i64: 2, 4, 128>}, {transform_indices = @transform_4, window_bounds = array<i64: 4, 128>}, {transform_indices = @transform_5, window_bounds = array<i64: 4, 128>}]} {
    %c0 = arith.constant 0 : index
    %c0_0 = arith.constant 0 : index
    %c0_1 = arith.constant 0 : index
    %0 = vector.load %arg2[%c0, %c0_0, %c0_1] : memref<4x4x128xf32, #tpu.memory_space<vmem>>, vector<1x4x128xf32>
    %1 = vector.shape_cast %0 : vector<1x4x128xf32> to vector<4x128xf32>
    %c1 = arith.constant 1 : index
    %c0_2 = arith.constant 0 : index
    %c0_3 = arith.constant 0 : index
    %2 = vector.load %arg2[%c1, %c0_2, %c0_3] : memref<4x4x128xf32, #tpu.memory_space<vmem>>, vector<1x4x128xf32>
    %3 = vector.shape_cast %2 : vector<1x4x128xf32> to vector<4x128xf32>
    %c2 = arith.constant 2 : index
    %c0_4 = arith.constant 0 : index
    %c0_5 = arith.constant 0 : index
    %4 = vector.load %arg2[%c2, %c0_4, %c0_5] : memref<4x4x128xf32, #tpu.memory_space<vmem>>, vector<1x4x128xf32>
    %5 = vector.shape_cast %4 : vector<1x4x128xf32> to vector<4x128xf32>
    %c3 = arith.constant 3 : index
    %c0_6 = arith.constant 0 : index
    %c0_7 = arith.constant 0 : index
    %6 = vector.load %arg2[%c3, %c0_6, %c0_7] : memref<4x4x128xf32, #tpu.memory_space<vmem>>, vector<1x4x128xf32>
    %7 = vector.shape_cast %6 : vector<1x4x128xf32> to vector<4x128xf32>
    %c0_8 = arith.constant 0 : index
    %c0_9 = arith.constant 0 : index
    %c0_10 = arith.constant 0 : index
    %8 = vector.load %arg3[%c0_8, %c0_9, %c0_10] : memref<4x4x128xf32, #tpu.memory_space<vmem>>, vector<1x4x128xf32>
    %9 = vector.shape_cast %8 : vector<1x4x128xf32> to vector<4x128xf32>
    %c1_11 = arith.constant 1 : index
    %c0_12 = arith.constant 0 : index
    %c0_13 = arith.constant 0 : index
    %10 = vector.load %arg3[%c1_11, %c0_12, %c0_13] : memref<4x4x128xf32, #tpu.memory_space<vmem>>, vector<1x4x128xf32>
    %11 = vector.shape_cast %10 : vector<1x4x128xf32> to vector<4x128xf32>
    %c2_14 = arith.constant 2 : index
    %c0_15 = arith.constant 0 : index
    %c0_16 = arith.constant 0 : index
    %12 = vector.load %arg3[%c2_14, %c0_15, %c0_16] : memref<4x4x128xf32, #tpu.memory_space<vmem>>, vector<1x4x128xf32>
    %13 = vector.shape_cast %12 : vector<1x4x128xf32> to vector<4x128xf32>
    %c3_17 = arith.constant 3 : index
    %c0_18 = arith.constant 0 : index
    %c0_19 = arith.constant 0 : index
    %14 = vector.load %arg3[%c3_17, %c0_18, %c0_19] : memref<4x4x128xf32, #tpu.memory_space<vmem>>, vector<1x4x128xf32>
    %15 = vector.shape_cast %14 : vector<1x4x128xf32> to vector<4x128xf32>
    %16 = arith.subf %5, %1 : vector<4x128xf32>
    %17 = arith.subf %7, %3 : vector<4x128xf32>
    %cst = arith.constant 1.000000e-07 : f32
    %18 = vector.broadcast %cst : f32 to vector<4x128xf32>
    %19 = arith.addf %17, %18 : vector<4x128xf32>
    %20 = arith.subf %13, %9 : vector<4x128xf32>
    %21 = arith.subf %15, %11 : vector<4x128xf32>
    %cst_20 = arith.constant 1.000000e-07 : f32
    %22 = vector.broadcast %cst_20 : f32 to vector<4x128xf32>
    %23 = arith.addf %21, %22 : vector<4x128xf32>
    %24 = arith.minimumf %5, %13 : vector<4x128xf32>
    %25 = arith.maximumf %1, %9 : vector<4x128xf32>
    %26 = arith.subf %24, %25 : vector<4x128xf32>
    %cst_21 = arith.constant 0.000000e+00 : f32
    %27 = vector.broadcast %cst_21 : f32 to vector<4x128xf32>
    %28 = arith.maximumf %26, %27 : vector<4x128xf32>
    %29 = arith.minimumf %7, %15 : vector<4x128xf32>
    %30 = arith.maximumf %3, %11 : vector<4x128xf32>
    %31 = arith.subf %29, %30 : vector<4x128xf32>
    %cst_22 = arith.constant 0.000000e+00 : f32
    %32 = vector.broadcast %cst_22 : f32 to vector<4x128xf32>
    %33 = arith.maximumf %31, %32 : vector<4x128xf32>
    %34 = arith.mulf %28, %33 : vector<4x128xf32>
    %35 = arith.mulf %16, %19 : vector<4x128xf32>
    %36 = arith.mulf %20, %23 : vector<4x128xf32>
    %37 = arith.addf %35, %36 : vector<4x128xf32>
    %38 = arith.subf %37, %34 : vector<4x128xf32>
    %cst_23 = arith.constant 1.000000e-07 : f32
    %39 = vector.broadcast %cst_23 : f32 to vector<4x128xf32>
    %40 = arith.addf %38, %39 : vector<4x128xf32>
    %41 = tpu.reciprocal %40 {approx = true} : vector<4x128xf32> -> vector<4x128xf32>
    %42 = arith.mulf %34, %41 : vector<4x128xf32>
    %43 = arith.maximumf %5, %13 : vector<4x128xf32>
    %44 = arith.minimumf %1, %9 : vector<4x128xf32>
    %45 = arith.subf %43, %44 : vector<4x128xf32>
    %46 = arith.maximumf %7, %15 : vector<4x128xf32>
    %47 = arith.minimumf %3, %11 : vector<4x128xf32>
    %48 = arith.subf %46, %47 : vector<4x128xf32>
    %49 = arith.mulf %45, %45 : vector<4x128xf32>
    %50 = arith.mulf %48, %48 : vector<4x128xf32>
    %51 = arith.addf %49, %50 : vector<4x128xf32>
    %cst_24 = arith.constant 1.000000e-07 : f32
    %52 = vector.broadcast %cst_24 : f32 to vector<4x128xf32>
    %53 = arith.addf %51, %52 : vector<4x128xf32>
    %54 = arith.addf %9, %13 : vector<4x128xf32>
    %55 = arith.subf %54, %1 : vector<4x128xf32>
    %56 = arith.subf %55, %5 : vector<4x128xf32>
    %57 = arith.mulf %56, %56 : vector<4x128xf32>
    %58 = arith.addf %11, %15 : vector<4x128xf32>
    %59 = arith.subf %58, %3 : vector<4x128xf32>
    %60 = arith.subf %59, %7 : vector<4x128xf32>
    %61 = arith.mulf %60, %60 : vector<4x128xf32>
    %62 = arith.addf %57, %61 : vector<4x128xf32>
    %cst_25 = arith.constant 2.500000e-01 : f32
    %63 = vector.broadcast %cst_25 : f32 to vector<4x128xf32>
    %64 = arith.mulf %62, %63 : vector<4x128xf32>
    %65 = tpu.reciprocal %23 {approx = true} : vector<4x128xf32> -> vector<4x128xf32>
    %66 = arith.mulf %20, %65 : vector<4x128xf32>
    %cst_26 = arith.constant 0.000000e+00 : f32
    %67 = vector.broadcast %cst_26 : f32 to vector<4x128xf32>
    %68 = arith.cmpf olt, %66, %67 : vector<4x128xf32>
    %cst_27 = arith.constant -1.000000e+00 : f32
    %cst_28 = arith.constant 1.000000e+00 : f32
    %69 = vector.broadcast %cst_27 : f32 to vector<4x128xf32>
    %70 = vector.broadcast %cst_28 : f32 to vector<4x128xf32>
    %71 = arith.select %68, %69, %70 : vector<4x128xi1>, vector<4x128xf32>
    %72 = math.absf %66 : vector<4x128xf32>
    %cst_29 = arith.constant 2.41421366 : f32
    %73 = vector.broadcast %cst_29 : f32 to vector<4x128xf32>
    %74 = arith.cmpf ogt, %72, %73 : vector<4x128xf32>
    %cst_30 = arith.constant 0.414213568 : f32
    %75 = vector.broadcast %cst_30 : f32 to vector<4x128xf32>
    %76 = arith.cmpf ogt, %72, %75 : vector<4x128xf32>
    %cst_31 = arith.constant dense<true> : vector<4x128xi1>
    %77 = arith.xori %74, %cst_31 : vector<4x128xi1>
    %78 = arith.andi %76, %77 : vector<4x128xi1>
    %cst_32 = arith.constant 1.000000e-30 : f32
    %79 = vector.broadcast %cst_32 : f32 to vector<4x128xf32>
    %80 = arith.maximumf %72, %79 : vector<4x128xf32>
    %cst_33 = arith.constant -1.000000e+00 : f32
    %81 = vector.broadcast %cst_33 : f32 to vector<4x128xf32>
    %82 = arith.divf %81, %80 : vector<4x128xf32>
    %cst_34 = arith.constant 1.000000e+00 : f32
    %83 = vector.broadcast %cst_34 : f32 to vector<4x128xf32>
    %84 = arith.subf %72, %83 : vector<4x128xf32>
    %cst_35 = arith.constant 1.000000e+00 : f32
    %85 = vector.broadcast %cst_35 : f32 to vector<4x128xf32>
    %86 = arith.addf %72, %85 : vector<4x128xf32>
    %87 = arith.divf %84, %86 : vector<4x128xf32>
    %88 = arith.select %78, %87, %72 : vector<4x128xi1>, vector<4x128xf32>
    %89 = arith.select %74, %82, %88 : vector<4x128xi1>, vector<4x128xf32>
    %cst_36 = arith.constant 0.785398185 : f32
    %cst_37 = arith.constant 0.000000e+00 : f32
    %90 = vector.broadcast %cst_36 : f32 to vector<4x128xf32>
    %91 = vector.broadcast %cst_37 : f32 to vector<4x128xf32>
    %92 = arith.select %78, %90, %91 : vector<4x128xi1>, vector<4x128xf32>
    %cst_38 = arith.constant 1.57079637 : f32
    %93 = vector.broadcast %cst_38 : f32 to vector<4x128xf32>
    %94 = arith.select %74, %93, %92 : vector<4x128xi1>, vector<4x128xf32>
    %95 = arith.mulf %89, %89 : vector<4x128xf32>
    %cst_39 = arith.constant 0.0805374458 : f32
    %96 = vector.broadcast %cst_39 : f32 to vector<4x128xf32>
    %97 = arith.mulf %96, %95 : vector<4x128xf32>
    %cst_40 = arith.constant 0.138776854 : f32
    %98 = vector.broadcast %cst_40 : f32 to vector<4x128xf32>
    %99 = arith.subf %97, %98 : vector<4x128xf32>
    %100 = arith.mulf %99, %95 : vector<4x128xf32>
    %cst_41 = arith.constant 0.199777111 : f32
    %101 = vector.broadcast %cst_41 : f32 to vector<4x128xf32>
    %102 = arith.addf %100, %101 : vector<4x128xf32>
    %103 = arith.mulf %102, %95 : vector<4x128xf32>
    %cst_42 = arith.constant 0.333329499 : f32
    %104 = vector.broadcast %cst_42 : f32 to vector<4x128xf32>
    %105 = arith.subf %103, %104 : vector<4x128xf32>
    %106 = arith.mulf %105, %95 : vector<4x128xf32>
    %107 = arith.mulf %106, %89 : vector<4x128xf32>
    %108 = arith.addf %107, %89 : vector<4x128xf32>
    %109 = arith.addf %94, %108 : vector<4x128xf32>
    %110 = arith.mulf %71, %109 : vector<4x128xf32>
    %111 = tpu.reciprocal %19 {approx = true} : vector<4x128xf32> -> vector<4x128xf32>
    %112 = arith.mulf %16, %111 : vector<4x128xf32>
    %cst_43 = arith.constant 0.000000e+00 : f32
    %113 = vector.broadcast %cst_43 : f32 to vector<4x128xf32>
    %114 = arith.cmpf olt, %112, %113 : vector<4x128xf32>
    %cst_44 = arith.constant -1.000000e+00 : f32
    %cst_45 = arith.constant 1.000000e+00 : f32
    %115 = vector.broadcast %cst_44 : f32 to vector<4x128xf32>
    %116 = vector.broadcast %cst_45 : f32 to vector<4x128xf32>
    %117 = arith.select %114, %115, %116 : vector<4x128xi1>, vector<4x128xf32>
    %118 = math.absf %112 : vector<4x128xf32>
    %cst_46 = arith.constant 2.41421366 : f32
    %119 = vector.broadcast %cst_46 : f32 to vector<4x128xf32>
    %120 = arith.cmpf ogt, %118, %119 : vector<4x128xf32>
    %cst_47 = arith.constant 0.414213568 : f32
    %121 = vector.broadcast %cst_47 : f32 to vector<4x128xf32>
    %122 = arith.cmpf ogt, %118, %121 : vector<4x128xf32>
    %cst_48 = arith.constant dense<true> : vector<4x128xi1>
    %123 = arith.xori %120, %cst_48 : vector<4x128xi1>
    %124 = arith.andi %122, %123 : vector<4x128xi1>
    %cst_49 = arith.constant 1.000000e-30 : f32
    %125 = vector.broadcast %cst_49 : f32 to vector<4x128xf32>
    %126 = arith.maximumf %118, %125 : vector<4x128xf32>
    %cst_50 = arith.constant -1.000000e+00 : f32
    %127 = vector.broadcast %cst_50 : f32 to vector<4x128xf32>
    %128 = arith.divf %127, %126 : vector<4x128xf32>
    %cst_51 = arith.constant 1.000000e+00 : f32
    %129 = vector.broadcast %cst_51 : f32 to vector<4x128xf32>
    %130 = arith.subf %118, %129 : vector<4x128xf32>
    %cst_52 = arith.constant 1.000000e+00 : f32
    %131 = vector.broadcast %cst_52 : f32 to vector<4x128xf32>
    %132 = arith.addf %118, %131 : vector<4x128xf32>
    %133 = arith.divf %130, %132 : vector<4x128xf32>
    %134 = arith.select %124, %133, %118 : vector<4x128xi1>, vector<4x128xf32>
    %135 = arith.select %120, %128, %134 : vector<4x128xi1>, vector<4x128xf32>
    %cst_53 = arith.constant 0.785398185 : f32
    %cst_54 = arith.constant 0.000000e+00 : f32
    %136 = vector.broadcast %cst_53 : f32 to vector<4x128xf32>
    %137 = vector.broadcast %cst_54 : f32 to vector<4x128xf32>
    %138 = arith.select %124, %136, %137 : vector<4x128xi1>, vector<4x128xf32>
    %cst_55 = arith.constant 1.57079637 : f32
    %139 = vector.broadcast %cst_55 : f32 to vector<4x128xf32>
    %140 = arith.select %120, %139, %138 : vector<4x128xi1>, vector<4x128xf32>
    %141 = arith.mulf %135, %135 : vector<4x128xf32>
    %cst_56 = arith.constant 0.0805374458 : f32
    %142 = vector.broadcast %cst_56 : f32 to vector<4x128xf32>
    %143 = arith.mulf %142, %141 : vector<4x128xf32>
    %cst_57 = arith.constant 0.138776854 : f32
    %144 = vector.broadcast %cst_57 : f32 to vector<4x128xf32>
    %145 = arith.subf %143, %144 : vector<4x128xf32>
    %146 = arith.mulf %145, %141 : vector<4x128xf32>
    %cst_58 = arith.constant 0.199777111 : f32
    %147 = vector.broadcast %cst_58 : f32 to vector<4x128xf32>
    %148 = arith.addf %146, %147 : vector<4x128xf32>
    %149 = arith.mulf %148, %141 : vector<4x128xf32>
    %cst_59 = arith.constant 0.333329499 : f32
    %150 = vector.broadcast %cst_59 : f32 to vector<4x128xf32>
    %151 = arith.subf %149, %150 : vector<4x128xf32>
    %152 = arith.mulf %151, %141 : vector<4x128xf32>
    %153 = arith.mulf %152, %135 : vector<4x128xf32>
    %154 = arith.addf %153, %135 : vector<4x128xf32>
    %155 = arith.addf %140, %154 : vector<4x128xf32>
    %156 = arith.mulf %117, %155 : vector<4x128xf32>
    %157 = arith.subf %110, %156 : vector<4x128xf32>
    %158 = arith.mulf %157, %157 : vector<4x128xf32>
    %cst_60 = arith.constant 0.405284733 : f32
    %159 = vector.broadcast %cst_60 : f32 to vector<4x128xf32>
    %160 = arith.mulf %159, %158 : vector<4x128xf32>
    %161 = arith.subf %160, %42 : vector<4x128xf32>
    %cst_61 = arith.constant 1.00000012 : f32
    %162 = vector.broadcast %cst_61 : f32 to vector<4x128xf32>
    %163 = arith.addf %161, %162 : vector<4x128xf32>
    %164 = tpu.reciprocal %163 {approx = true} : vector<4x128xf32> -> vector<4x128xf32>
    %165 = arith.mulf %160, %164 : vector<4x128xf32>
    %166 = tpu.reciprocal %53 {approx = true} : vector<4x128xf32> -> vector<4x128xf32>
    %167 = arith.mulf %64, %166 : vector<4x128xf32>
    %168 = arith.mulf %160, %165 : vector<4x128xf32>
    %169 = arith.addf %167, %168 : vector<4x128xf32>
    %170 = arith.subf %42, %169 : vector<4x128xf32>
    %c0_62 = arith.constant 0 : index
    %c0_63 = arith.constant 0 : index
    %171 = vector.load %arg5[%c0_62, %c0_63] : memref<4x128xf32, #tpu.memory_space<vmem>>, vector<4x128xf32>
    tpu.vector_store %arg5[%c0_62, %c0_63], %170 {strides = array<i32>} : memref<4x128xf32, #tpu.memory_space<vmem>>, vector<4x128xf32>,
    %c0_64 = arith.constant 0 : index
    %c0_65 = arith.constant 0 : index
    %c0_66 = arith.constant 0 : index
    %172 = vector.load %arg4[%c0_64, %c0_65, %c0_66] : memref<2x4x128xf32, #tpu.memory_space<vmem>>, vector<1x4x128xf32>
    %173 = vector.shape_cast %172 : vector<1x4x128xf32> to vector<4x128xf32>
    %c1_67 = arith.constant 1 : index
    %c0_68 = arith.constant 0 : index
    %c0_69 = arith.constant 0 : index
    %174 = vector.load %arg4[%c1_67, %c0_68, %c0_69] : memref<2x4x128xf32, #tpu.memory_space<vmem>>, vector<1x4x128xf32>
    %175 = vector.shape_cast %174 : vector<1x4x128xf32> to vector<4x128xf32>
    %cst_70 = arith.constant 0.000000e+00 : f32
    %176 = vector.broadcast %cst_70 : f32 to vector<4x128xf32>
    %177 = arith.subf %173, %9 : vector<4x128xf32>
    %cst_71 = arith.constant 0.000000e+00 : f32
    %cst_72 = arith.constant 1.599000e+01 : f32
    %178 = vector.broadcast %cst_71 : f32 to vector<4x128xf32>
    %179 = arith.maximumf %178, %177 : vector<4x128xf32>
    %180 = vector.broadcast %cst_72 : f32 to vector<4x128xf32>
    %181 = arith.minimumf %180, %179 : vector<4x128xf32>
    %c0_73 = arith.constant 0 : index
    %c0_74 = arith.constant 0 : index
    %c0_75 = arith.constant 0 : index
    %c0_76 = arith.constant 0 : index
    %182 = vector.load %arg1[%c0_73, %c0_74, %c0_75, %c0_76] : memref<4x17x4x128xbf16, #tpu.memory_space<vmem>>, vector<1x1x4x128xbf16>
    %183 = vector.shape_cast %182 : vector<1x1x4x128xbf16> to vector<4x128xbf16>
    %184 = arith.extf %183 : vector<4x128xbf16> to vector<4x128xf32>
    %c0_77 = arith.constant 0 : index
    %c1_78 = arith.constant 1 : index
    %c0_79 = arith.constant 0 : index
    %c0_80 = arith.constant 0 : index
    %185 = vector.load %arg1[%c0_77, %c1_78, %c0_79, %c0_80] : memref<4x17x4x128xbf16, #tpu.memory_space<vmem>>, vector<1x1x4x128xbf16>
    %186 = vector.shape_cast %185 : vector<1x1x4x128xbf16> to vector<4x128xbf16>
    %187 = arith.extf %186 : vector<4x128xbf16> to vector<4x128xf32>
    %188 = arith.maximumf %184, %187 : vector<4x128xf32>
    %c0_81 = arith.constant 0 : index
    %c2_82 = arith.constant 2 : index
    %c0_83 = arith.constant 0 : index
    %c0_84 = arith.constant 0 : index
    %189 = vector.load %arg1[%c0_81, %c2_82, %c0_83, %c0_84] : memref<4x17x4x128xbf16, #tpu.memory_space<vmem>>, vector<1x1x4x128xbf16>
    %190 = vector.shape_cast %189 : vector<1x1x4x128xbf16> to vector<4x128xbf16>
    %191 = arith.extf %190 : vector<4x128xbf16> to vector<4x128xf32>
    %192 = arith.maximumf %188, %191 : vector<4x128xf32>
    %c0_85 = arith.constant 0 : index
    %c3_86 = arith.constant 3 : index
    %c0_87 = arith.constant 0 : index
    %c0_88 = arith.constant 0 : index
    %193 = vector.load %arg1[%c0_85, %c3_86, %c0_87, %c0_88] : memref<4x17x4x128xbf16, #tpu.memory_space<vmem>>, vector<1x1x4x128xbf16>
    %194 = vector.shape_cast %193 : vector<1x1x4x128xbf16> to vector<4x128xbf16>
    %195 = arith.extf %194 : vector<4x128xbf16> to vector<4x128xf32>
    %196 = arith.maximumf %192, %195 : vector<4x128xf32>
    %c0_89 = arith.constant 0 : index
    %c4 = arith.constant 4 : index
    %c0_90 = arith.constant 0 : index
    %c0_91 = arith.constant 0 : index
    %197 = vector.load %arg1[%c0_89, %c4, %c0_90, %c0_91] : memref<4x17x4x128xbf16, #tpu.memory_space<vmem>>, vector<1x1x4x128xbf16>
    %198 = vector.shape_cast %197 : vector<1x1x4x128xbf16> to vector<4x128xbf16>
    %199 = arith.extf %198 : vector<4x128xbf16> to vector<4x128xf32>
    %200 = arith.maximumf %196, %199 : vector<4x128xf32>
    %c0_92 = arith.constant 0 : index
    %c5 = arith.constant 5 : index
    %c0_93 = arith.constant 0 : index
    %c0_94 = arith.constant 0 : index
    %201 = vector.load %arg1[%c0_92, %c5, %c0_93, %c0_94] : memref<4x17x4x128xbf16, #tpu.memory_space<vmem>>, vector<1x1x4x128xbf16>
    %202 = vector.shape_cast %201 : vector<1x1x4x128xbf16> to vector<4x128xbf16>
    %203 = arith.extf %202 : vector<4x128xbf16> to vector<4x128xf32>
    %204 = arith.maximumf %200, %203 : vector<4x128xf32>
    %c0_95 = arith.constant 0 : index
    %c6 = arith.constant 6 : index
    %c0_96 = arith.constant 0 : index
    %c0_97 = arith.constant 0 : index
    %205 = vector.load %arg1[%c0_95, %c6, %c0_96, %c0_97] : memref<4x17x4x128xbf16, #tpu.memory_space<vmem>>, vector<1x1x4x128xbf16>
    %206 = vector.shape_cast %205 : vector<1x1x4x128xbf16> to vector<4x128xbf16>
    %207 = arith.extf %206 : vector<4x128xbf16> to vector<4x128xf32>
    %208 = arith.maximumf %204, %207 : vector<4x128xf32>
    %c0_98 = arith.constant 0 : index
    %c7 = arith.constant 7 : index
    %c0_99 = arith.constant 0 : index
    %c0_100 = arith.constant 0 : index
    %209 = vector.load %arg1[%c0_98, %c7, %c0_99, %c0_100] : memref<4x17x4x128xbf16, #tpu.memory_space<vmem>>, vector<1x1x4x128xbf16>
    %210 = vector.shape_cast %209 : vector<1x1x4x128xbf16> to vector<4x128xbf16>
    %211 = arith.extf %210 : vector<4x128xbf16> to vector<4x128xf32>
    %212 = arith.maximumf %208, %211 : vector<4x128xf32>
    %c0_101 = arith.constant 0 : index
    %c8 = arith.constant 8 : index
    %c0_102 = arith.constant 0 : index
    %c0_103 = arith.constant 0 : index
    %213 = vector.load %arg1[%c0_101, %c8, %c0_102, %c0_103] : memref<4x17x4x128xbf16, #tpu.memory_space<vmem>>, vector<1x1x4x128xbf16>
    %214 = vector.shape_cast %213 : vector<1x1x4x128xbf16> to vector<4x128xbf16>
    %215 = arith.extf %214 : vector<4x128xbf16> to vector<4x128xf32>
    %216 = arith.maximumf %212, %215 : vector<4x128xf32>
    %c0_104 = arith.constant 0 : index
    %c9 = arith.constant 9 : index
    %c0_105 = arith.constant 0 : index
    %c0_106 = arith.constant 0 : index
    %217 = vector.load %arg1[%c0_104, %c9, %c0_105, %c0_106] : memref<4x17x4x128xbf16, #tpu.memory_space<vmem>>, vector<1x1x4x128xbf16>
    %218 = vector.shape_cast %217 : vector<1x1x4x128xbf16> to vector<4x128xbf16>
    %219 = arith.extf %218 : vector<4x128xbf16> to vector<4x128xf32>
    %220 = arith.maximumf %216, %219 : vector<4x128xf32>
    %c0_107 = arith.constant 0 : index
    %c10 = arith.constant 10 : index
    %c0_108 = arith.constant 0 : index
    %c0_109 = arith.constant 0 : index
    %221 = vector.load %arg1[%c0_107, %c10, %c0_108, %c0_109] : memref<4x17x4x128xbf16, #tpu.memory_space<vmem>>, vector<1x1x4x128xbf16>
    %222 = vector.shape_cast %221 : vector<1x1x4x128xbf16> to vector<4x128xbf16>
    %223 = arith.extf %222 : vector<4x128xbf16> to vector<4x128xf32>
    %224 = arith.maximumf %220, %223 : vector<4x128xf32>
    %c0_110 = arith.constant 0 : index
    %c11 = arith.constant 11 : index
    %c0_111 = arith.constant 0 : index
    %c0_112 = arith.constant 0 : index
    %225 = vector.load %arg1[%c0_110, %c11, %c0_111, %c0_112] : memref<4x17x4x128xbf16, #tpu.memory_space<vmem>>, vector<1x1x4x128xbf16>
    %226 = vector.shape_cast %225 : vector<1x1x4x128xbf16> to vector<4x128xbf16>
    %227 = arith.extf %226 : vector<4x128xbf16> to vector<4x128xf32>
    %228 = arith.maximumf %224, %227 : vector<4x128xf32>
    %c0_113 = arith.constant 0 : index
    %c12 = arith.constant 12 : index
    %c0_114 = arith.constant 0 : index
    %c0_115 = arith.constant 0 : index
    %229 = vector.load %arg1[%c0_113, %c12, %c0_114, %c0_115] : memref<4x17x4x128xbf16, #tpu.memory_space<vmem>>, vector<1x1x4x128xbf16>
    %230 = vector.shape_cast %229 : vector<1x1x4x128xbf16> to vector<4x128xbf16>
    %231 = arith.extf %230 : vector<4x128xbf16> to vector<4x128xf32>
    %232 = arith.maximumf %228, %231 : vector<4x128xf32>
    %c0_116 = arith.constant 0 : index
    %c13 = arith.constant 13 : index
    %c0_117 = arith.constant 0 : index
    %c0_118 = arith.constant 0 : index
    %233 = vector.load %arg1[%c0_116, %c13, %c0_117, %c0_118] : memref<4x17x4x128xbf16, #tpu.memory_space<vmem>>, vector<1x1x4x128xbf16>
    %234 = vector.shape_cast %233 : vector<1x1x4x128xbf16> to vector<4x128xbf16>
    %235 = arith.extf %234 : vector<4x128xbf16> to vector<4x128xf32>
    %236 = arith.maximumf %232, %235 : vector<4x128xf32>
    %c0_119 = arith.constant 0 : index
    %c14 = arith.constant 14 : index
    %c0_120 = arith.constant 0 : index
    %c0_121 = arith.constant 0 : index
    %237 = vector.load %arg1[%c0_119, %c14, %c0_120, %c0_121] : memref<4x17x4x128xbf16, #tpu.memory_space<vmem>>, vector<1x1x4x128xbf16>
    %238 = vector.shape_cast %237 : vector<1x1x4x128xbf16> to vector<4x128xbf16>
    %239 = arith.extf %238 : vector<4x128xbf16> to vector<4x128xf32>
    %240 = arith.maximumf %236, %239 : vector<4x128xf32>
    %c0_122 = arith.constant 0 : index
    %c15 = arith.constant 15 : index
    %c0_123 = arith.constant 0 : index
    %c0_124 = arith.constant 0 : index
    %241 = vector.load %arg1[%c0_122, %c15, %c0_123, %c0_124] : memref<4x17x4x128xbf16, #tpu.memory_space<vmem>>, vector<1x1x4x128xbf16>
    %242 = vector.shape_cast %241 : vector<1x1x4x128xbf16> to vector<4x128xbf16>
    %243 = arith.extf %242 : vector<4x128xbf16> to vector<4x128xf32>
    %244 = arith.maximumf %240, %243 : vector<4x128xf32>
    %c0_125 = arith.constant 0 : index
    %c16 = arith.constant 16 : index
    %c0_126 = arith.constant 0 : index
    %c0_127 = arith.constant 0 : index
    %245 = vector.load %arg1[%c0_125, %c16, %c0_126, %c0_127] : memref<4x17x4x128xbf16, #tpu.memory_space<vmem>>, vector<1x1x4x128xbf16>
    %246 = vector.shape_cast %245 : vector<1x1x4x128xbf16> to vector<4x128xbf16>
    %247 = arith.extf %246 : vector<4x128xbf16> to vector<4x128xf32>
    %248 = arith.maximumf %244, %247 : vector<4x128xf32>
    %cst_128 = arith.constant 0.000000e+00 : f32
    %249 = vector.broadcast %cst_128 : f32 to vector<4x128xf32>
    %cst_129 = arith.constant 0.000000e+00 : f32
    %250 = vector.broadcast %cst_129 : f32 to vector<4x128xf32>
    %c0_130 = arith.constant 0 : index
    %c0_131 = arith.constant 0 : index
    %c0_132 = arith.constant 0 : index
    %c0_133 = arith.constant 0 : index
    %251 = vector.load %arg1[%c0_130, %c0_131, %c0_132, %c0_133] : memref<4x17x4x128xbf16, #tpu.memory_space<vmem>>, vector<1x1x4x128xbf16>
    %252 = vector.shape_cast %251 : vector<1x1x4x128xbf16> to vector<4x128xbf16>
    %253 = arith.extf %252 : vector<4x128xbf16> to vector<4x128xf32>
    %254 = arith.subf %253, %248 : vector<4x128xf32>
    %255 = math.exp %254 : vector<4x128xf32>
    %256 = arith.addf %249, %255 : vector<4x128xf32>
    %cst_134 = arith.constant 0.000000e+00 : f32
    %257 = vector.broadcast %cst_134 : f32 to vector<4x128xf32>
    %258 = arith.subf %181, %257 : vector<4x128xf32>
    %259 = math.absf %258 : vector<4x128xf32>
    %cst_135 = arith.constant 1.000000e+00 : f32
    %260 = vector.broadcast %cst_135 : f32 to vector<4x128xf32>
    %261 = arith.subf %260, %259 : vector<4x128xf32>
    %cst_136 = arith.constant 0.000000e+00 : f32
    %262 = vector.broadcast %cst_136 : f32 to vector<4x128xf32>
    %263 = arith.maximumf %261, %262 : vector<4x128xf32>
    %264 = arith.mulf %263, %253 : vector<4x128xf32>
    %265 = arith.addf %250, %264 : vector<4x128xf32>
    %c0_137 = arith.constant 0 : index
    %c1_138 = arith.constant 1 : index
    %c0_139 = arith.constant 0 : index
    %c0_140 = arith.constant 0 : index
    %266 = vector.load %arg1[%c0_137, %c1_138, %c0_139, %c0_140] : memref<4x17x4x128xbf16, #tpu.memory_space<vmem>>, vector<1x1x4x128xbf16>
    %267 = vector.shape_cast %266 : vector<1x1x4x128xbf16> to vector<4x128xbf16>
    %268 = arith.extf %267 : vector<4x128xbf16> to vector<4x128xf32>
    %269 = arith.subf %268, %248 : vector<4x128xf32>
    %270 = math.exp %269 : vector<4x128xf32>
    %271 = arith.addf %256, %270 : vector<4x128xf32>
    %cst_141 = arith.constant 1.000000e+00 : f32
    %272 = vector.broadcast %cst_141 : f32 to vector<4x128xf32>
    %273 = arith.subf %181, %272 : vector<4x128xf32>
    %274 = math.absf %273 : vector<4x128xf32>
    %cst_142 = arith.constant 1.000000e+00 : f32
    %275 = vector.broadcast %cst_142 : f32 to vector<4x128xf32>
    %276 = arith.subf %275, %274 : vector<4x128xf32>
    %cst_143 = arith.constant 0.000000e+00 : f32
    %277 = vector.broadcast %cst_143 : f32 to vector<4x128xf32>
    %278 = arith.maximumf %276, %277 : vector<4x128xf32>
    %279 = arith.mulf %278, %268 : vector<4x128xf32>
    %280 = arith.addf %265, %279 : vector<4x128xf32>
    %c0_144 = arith.constant 0 : index
    %c2_145 = arith.constant 2 : index
    %c0_146 = arith.constant 0 : index
    %c0_147 = arith.constant 0 : index
    %281 = vector.load %arg1[%c0_144, %c2_145, %c0_146, %c0_147] : memref<4x17x4x128xbf16, #tpu.memory_space<vmem>>, vector<1x1x4x128xbf16>
    %282 = vector.shape_cast %281 : vector<1x1x4x128xbf16> to vector<4x128xbf16>
    %283 = arith.extf %282 : vector<4x128xbf16> to vector<4x128xf32>
    %284 = arith.subf %283, %248 : vector<4x128xf32>
    %285 = math.exp %284 : vector<4x128xf32>
    %286 = arith.addf %271, %285 : vector<4x128xf32>
    %cst_148 = arith.constant 2.000000e+00 : f32
    %287 = vector.broadcast %cst_148 : f32 to vector<4x128xf32>
    %288 = arith.subf %181, %287 : vector<4x128xf32>
    %289 = math.absf %288 : vector<4x128xf32>
    %cst_149 = arith.constant 1.000000e+00 : f32
    %290 = vector.broadcast %cst_149 : f32 to vector<4x128xf32>
    %291 = arith.subf %290, %289 : vector<4x128xf32>
    %cst_150 = arith.constant 0.000000e+00 : f32
    %292 = vector.broadcast %cst_150 : f32 to vector<4x128xf32>
    %293 = arith.maximumf %291, %292 : vector<4x128xf32>
    %294 = arith.mulf %293, %283 : vector<4x128xf32>
    %295 = arith.addf %280, %294 : vector<4x128xf32>
    %c0_151 = arith.constant 0 : index
    %c3_152 = arith.constant 3 : index
    %c0_153 = arith.constant 0 : index
    %c0_154 = arith.constant 0 : index
    %296 = vector.load %arg1[%c0_151, %c3_152, %c0_153, %c0_154] : memref<4x17x4x128xbf16, #tpu.memory_space<vmem>>, vector<1x1x4x128xbf16>
    %297 = vector.shape_cast %296 : vector<1x1x4x128xbf16> to vector<4x128xbf16>
    %298 = arith.extf %297 : vector<4x128xbf16> to vector<4x128xf32>
    %299 = arith.subf %298, %248 : vector<4x128xf32>
    %300 = math.exp %299 : vector<4x128xf32>
    %301 = arith.addf %286, %300 : vector<4x128xf32>
    %cst_155 = arith.constant 3.000000e+00 : f32
    %302 = vector.broadcast %cst_155 : f32 to vector<4x128xf32>
    %303 = arith.subf %181, %302 : vector<4x128xf32>
    %304 = math.absf %303 : vector<4x128xf32>
    %cst_156 = arith.constant 1.000000e+00 : f32
    %305 = vector.broadcast %cst_156 : f32 to vector<4x128xf32>
    %306 = arith.subf %305, %304 : vector<4x128xf32>
    %cst_157 = arith.constant 0.000000e+00 : f32
    %307 = vector.broadcast %cst_157 : f32 to vector<4x128xf32>
    %308 = arith.maximumf %306, %307 : vector<4x128xf32>
    %309 = arith.mulf %308, %298 : vector<4x128xf32>
    %310 = arith.addf %295, %309 : vector<4x128xf32>
    %c0_158 = arith.constant 0 : index
    %c4_159 = arith.constant 4 : index
    %c0_160 = arith.constant 0 : index
    %c0_161 = arith.constant 0 : index
    %311 = vector.load %arg1[%c0_158, %c4_159, %c0_160, %c0_161] : memref<4x17x4x128xbf16, #tpu.memory_space<vmem>>, vector<1x1x4x128xbf16>
    %312 = vector.shape_cast %311 : vector<1x1x4x128xbf16> to vector<4x128xbf16>
    %313 = arith.extf %312 : vector<4x128xbf16> to vector<4x128xf32>
    %314 = arith.subf %313, %248 : vector<4x128xf32>
    %315 = math.exp %314 : vector<4x128xf32>
    %316 = arith.addf %301, %315 : vector<4x128xf32>
    %cst_162 = arith.constant 4.000000e+00 : f32
    %317 = vector.broadcast %cst_162 : f32 to vector<4x128xf32>
    %318 = arith.subf %181, %317 : vector<4x128xf32>
    %319 = math.absf %318 : vector<4x128xf32>
    %cst_163 = arith.constant 1.000000e+00 : f32
    %320 = vector.broadcast %cst_163 : f32 to vector<4x128xf32>
    %321 = arith.subf %320, %319 : vector<4x128xf32>
    %cst_164 = arith.constant 0.000000e+00 : f32
    %322 = vector.broadcast %cst_164 : f32 to vector<4x128xf32>
    %323 = arith.maximumf %321, %322 : vector<4x128xf32>
    %324 = arith.mulf %323, %313 : vector<4x128xf32>
    %325 = arith.addf %310, %324 : vector<4x128xf32>
    %c0_165 = arith.constant 0 : index
    %c5_166 = arith.constant 5 : index
    %c0_167 = arith.constant 0 : index
    %c0_168 = arith.constant 0 : index
    %326 = vector.load %arg1[%c0_165, %c5_166, %c0_167, %c0_168] : memref<4x17x4x128xbf16, #tpu.memory_space<vmem>>, vector<1x1x4x128xbf16>
    %327 = vector.shape_cast %326 : vector<1x1x4x128xbf16> to vector<4x128xbf16>
    %328 = arith.extf %327 : vector<4x128xbf16> to vector<4x128xf32>
    %329 = arith.subf %328, %248 : vector<4x128xf32>
    %330 = math.exp %329 : vector<4x128xf32>
    %331 = arith.addf %316, %330 : vector<4x128xf32>
    %cst_169 = arith.constant 5.000000e+00 : f32
    %332 = vector.broadcast %cst_169 : f32 to vector<4x128xf32>
    %333 = arith.subf %181, %332 : vector<4x128xf32>
    %334 = math.absf %333 : vector<4x128xf32>
    %cst_170 = arith.constant 1.000000e+00 : f32
    %335 = vector.broadcast %cst_170 : f32 to vector<4x128xf32>
    %336 = arith.subf %335, %334 : vector<4x128xf32>
    %cst_171 = arith.constant 0.000000e+00 : f32
    %337 = vector.broadcast %cst_171 : f32 to vector<4x128xf32>
    %338 = arith.maximumf %336, %337 : vector<4x128xf32>
    %339 = arith.mulf %338, %328 : vector<4x128xf32>
    %340 = arith.addf %325, %339 : vector<4x128xf32>
    %c0_172 = arith.constant 0 : index
    %c6_173 = arith.constant 6 : index
    %c0_174 = arith.constant 0 : index
    %c0_175 = arith.constant 0 : index
    %341 = vector.load %arg1[%c0_172, %c6_173, %c0_174, %c0_175] : memref<4x17x4x128xbf16, #tpu.memory_space<vmem>>, vector<1x1x4x128xbf16>
    %342 = vector.shape_cast %341 : vector<1x1x4x128xbf16> to vector<4x128xbf16>
    %343 = arith.extf %342 : vector<4x128xbf16> to vector<4x128xf32>
    %344 = arith.subf %343, %248 : vector<4x128xf32>
    %345 = math.exp %344 : vector<4x128xf32>
    %346 = arith.addf %331, %345 : vector<4x128xf32>
    %cst_176 = arith.constant 6.000000e+00 : f32
    %347 = vector.broadcast %cst_176 : f32 to vector<4x128xf32>
    %348 = arith.subf %181, %347 : vector<4x128xf32>
    %349 = math.absf %348 : vector<4x128xf32>
    %cst_177 = arith.constant 1.000000e+00 : f32
    %350 = vector.broadcast %cst_177 : f32 to vector<4x128xf32>
    %351 = arith.subf %350, %349 : vector<4x128xf32>
    %cst_178 = arith.constant 0.000000e+00 : f32
    %352 = vector.broadcast %cst_178 : f32 to vector<4x128xf32>
    %353 = arith.maximumf %351, %352 : vector<4x128xf32>
    %354 = arith.mulf %353, %343 : vector<4x128xf32>
    %355 = arith.addf %340, %354 : vector<4x128xf32>
    %c0_179 = arith.constant 0 : index
    %c7_180 = arith.constant 7 : index
    %c0_181 = arith.constant 0 : index
    %c0_182 = arith.constant 0 : index
    %356 = vector.load %arg1[%c0_179, %c7_180, %c0_181, %c0_182] : memref<4x17x4x128xbf16, #tpu.memory_space<vmem>>, vector<1x1x4x128xbf16>
    %357 = vector.shape_cast %356 : vector<1x1x4x128xbf16> to vector<4x128xbf16>
    %358 = arith.extf %357 : vector<4x128xbf16> to vector<4x128xf32>
    %359 = arith.subf %358, %248 : vector<4x128xf32>
    %360 = math.exp %359 : vector<4x128xf32>
    %361 = arith.addf %346, %360 : vector<4x128xf32>
    %cst_183 = arith.constant 7.000000e+00 : f32
    %362 = vector.broadcast %cst_183 : f32 to vector<4x128xf32>
    %363 = arith.subf %181, %362 : vector<4x128xf32>
    %364 = math.absf %363 : vector<4x128xf32>
    %cst_184 = arith.constant 1.000000e+00 : f32
    %365 = vector.broadcast %cst_184 : f32 to vector<4x128xf32>
    %366 = arith.subf %365, %364 : vector<4x128xf32>
    %cst_185 = arith.constant 0.000000e+00 : f32
    %367 = vector.broadcast %cst_185 : f32 to vector<4x128xf32>
    %368 = arith.maximumf %366, %367 : vector<4x128xf32>
    %369 = arith.mulf %368, %358 : vector<4x128xf32>
    %370 = arith.addf %355, %369 : vector<4x128xf32>
    %c0_186 = arith.constant 0 : index
    %c8_187 = arith.constant 8 : index
    %c0_188 = arith.constant 0 : index
    %c0_189 = arith.constant 0 : index
    %371 = vector.load %arg1[%c0_186, %c8_187, %c0_188, %c0_189] : memref<4x17x4x128xbf16, #tpu.memory_space<vmem>>, vector<1x1x4x128xbf16>
    %372 = vector.shape_cast %371 : vector<1x1x4x128xbf16> to vector<4x128xbf16>
    %373 = arith.extf %372 : vector<4x128xbf16> to vector<4x128xf32>
    %374 = arith.subf %373, %248 : vector<4x128xf32>
    %375 = math.exp %374 : vector<4x128xf32>
    %376 = arith.addf %361, %375 : vector<4x128xf32>
    %cst_190 = arith.constant 8.000000e+00 : f32
    %377 = vector.broadcast %cst_190 : f32 to vector<4x128xf32>
    %378 = arith.subf %181, %377 : vector<4x128xf32>
    %379 = math.absf %378 : vector<4x128xf32>
    %cst_191 = arith.constant 1.000000e+00 : f32
    %380 = vector.broadcast %cst_191 : f32 to vector<4x128xf32>
    %381 = arith.subf %380, %379 : vector<4x128xf32>
    %cst_192 = arith.constant 0.000000e+00 : f32
    %382 = vector.broadcast %cst_192 : f32 to vector<4x128xf32>
    %383 = arith.maximumf %381, %382 : vector<4x128xf32>
    %384 = arith.mulf %383, %373 : vector<4x128xf32>
    %385 = arith.addf %370, %384 : vector<4x128xf32>
    %c0_193 = arith.constant 0 : index
    %c9_194 = arith.constant 9 : index
    %c0_195 = arith.constant 0 : index
    %c0_196 = arith.constant 0 : index
    %386 = vector.load %arg1[%c0_193, %c9_194, %c0_195, %c0_196] : memref<4x17x4x128xbf16, #tpu.memory_space<vmem>>, vector<1x1x4x128xbf16>
    %387 = vector.shape_cast %386 : vector<1x1x4x128xbf16> to vector<4x128xbf16>
    %388 = arith.extf %387 : vector<4x128xbf16> to vector<4x128xf32>
    %389 = arith.subf %388, %248 : vector<4x128xf32>
    %390 = math.exp %389 : vector<4x128xf32>
    %391 = arith.addf %376, %390 : vector<4x128xf32>
    %cst_197 = arith.constant 9.000000e+00 : f32
    %392 = vector.broadcast %cst_197 : f32 to vector<4x128xf32>
    %393 = arith.subf %181, %392 : vector<4x128xf32>
    %394 = math.absf %393 : vector<4x128xf32>
    %cst_198 = arith.constant 1.000000e+00 : f32
    %395 = vector.broadcast %cst_198 : f32 to vector<4x128xf32>
    %396 = arith.subf %395, %394 : vector<4x128xf32>
    %cst_199 = arith.constant 0.000000e+00 : f32
    %397 = vector.broadcast %cst_199 : f32 to vector<4x128xf32>
    %398 = arith.maximumf %396, %397 : vector<4x128xf32>
    %399 = arith.mulf %398, %388 : vector<4x128xf32>
    %400 = arith.addf %385, %399 : vector<4x128xf32>
    %c0_200 = arith.constant 0 : index
    %c10_201 = arith.constant 10 : index
    %c0_202 = arith.constant 0 : index
    %c0_203 = arith.constant 0 : index
    %401 = vector.load %arg1[%c0_200, %c10_201, %c0_202, %c0_203] : memref<4x17x4x128xbf16, #tpu.memory_space<vmem>>, vector<1x1x4x128xbf16>
    %402 = vector.shape_cast %401 : vector<1x1x4x128xbf16> to vector<4x128xbf16>
    %403 = arith.extf %402 : vector<4x128xbf16> to vector<4x128xf32>
    %404 = arith.subf %403, %248 : vector<4x128xf32>
    %405 = math.exp %404 : vector<4x128xf32>
    %406 = arith.addf %391, %405 : vector<4x128xf32>
    %cst_204 = arith.constant 1.000000e+01 : f32
    %407 = vector.broadcast %cst_204 : f32 to vector<4x128xf32>
    %408 = arith.subf %181, %407 : vector<4x128xf32>
    %409 = math.absf %408 : vector<4x128xf32>
    %cst_205 = arith.constant 1.000000e+00 : f32
    %410 = vector.broadcast %cst_205 : f32 to vector<4x128xf32>
    %411 = arith.subf %410, %409 : vector<4x128xf32>
    %cst_206 = arith.constant 0.000000e+00 : f32
    %412 = vector.broadcast %cst_206 : f32 to vector<4x128xf32>
    %413 = arith.maximumf %411, %412 : vector<4x128xf32>
    %414 = arith.mulf %413, %403 : vector<4x128xf32>
    %415 = arith.addf %400, %414 : vector<4x128xf32>
    %c0_207 = arith.constant 0 : index
    %c11_208 = arith.constant 11 : index
    %c0_209 = arith.constant 0 : index
    %c0_210 = arith.constant 0 : index
    %416 = vector.load %arg1[%c0_207, %c11_208, %c0_209, %c0_210] : memref<4x17x4x128xbf16, #tpu.memory_space<vmem>>, vector<1x1x4x128xbf16>
    %417 = vector.shape_cast %416 : vector<1x1x4x128xbf16> to vector<4x128xbf16>
    %418 = arith.extf %417 : vector<4x128xbf16> to vector<4x128xf32>
    %419 = arith.subf %418, %248 : vector<4x128xf32>
    %420 = math.exp %419 : vector<4x128xf32>
    %421 = arith.addf %406, %420 : vector<4x128xf32>
    %cst_211 = arith.constant 1.100000e+01 : f32
    %422 = vector.broadcast %cst_211 : f32 to vector<4x128xf32>
    %423 = arith.subf %181, %422 : vector<4x128xf32>
    %424 = math.absf %423 : vector<4x128xf32>
    %cst_212 = arith.constant 1.000000e+00 : f32
    %425 = vector.broadcast %cst_212 : f32 to vector<4x128xf32>
    %426 = arith.subf %425, %424 : vector<4x128xf32>
    %cst_213 = arith.constant 0.000000e+00 : f32
    %427 = vector.broadcast %cst_213 : f32 to vector<4x128xf32>
    %428 = arith.maximumf %426, %427 : vector<4x128xf32>
    %429 = arith.mulf %428, %418 : vector<4x128xf32>
    %430 = arith.addf %415, %429 : vector<4x128xf32>
    %c0_214 = arith.constant 0 : index
    %c12_215 = arith.constant 12 : index
    %c0_216 = arith.constant 0 : index
    %c0_217 = arith.constant 0 : index
    %431 = vector.load %arg1[%c0_214, %c12_215, %c0_216, %c0_217] : memref<4x17x4x128xbf16, #tpu.memory_space<vmem>>, vector<1x1x4x128xbf16>
    %432 = vector.shape_cast %431 : vector<1x1x4x128xbf16> to vector<4x128xbf16>
    %433 = arith.extf %432 : vector<4x128xbf16> to vector<4x128xf32>
    %434 = arith.subf %433, %248 : vector<4x128xf32>
    %435 = math.exp %434 : vector<4x128xf32>
    %436 = arith.addf %421, %435 : vector<4x128xf32>
    %cst_218 = arith.constant 1.200000e+01 : f32
    %437 = vector.broadcast %cst_218 : f32 to vector<4x128xf32>
    %438 = arith.subf %181, %437 : vector<4x128xf32>
    %439 = math.absf %438 : vector<4x128xf32>
    %cst_219 = arith.constant 1.000000e+00 : f32
    %440 = vector.broadcast %cst_219 : f32 to vector<4x128xf32>
    %441 = arith.subf %440, %439 : vector<4x128xf32>
    %cst_220 = arith.constant 0.000000e+00 : f32
    %442 = vector.broadcast %cst_220 : f32 to vector<4x128xf32>
    %443 = arith.maximumf %441, %442 : vector<4x128xf32>
    %444 = arith.mulf %443, %433 : vector<4x128xf32>
    %445 = arith.addf %430, %444 : vector<4x128xf32>
    %c0_221 = arith.constant 0 : index
    %c13_222 = arith.constant 13 : index
    %c0_223 = arith.constant 0 : index
    %c0_224 = arith.constant 0 : index
    %446 = vector.load %arg1[%c0_221, %c13_222, %c0_223, %c0_224] : memref<4x17x4x128xbf16, #tpu.memory_space<vmem>>, vector<1x1x4x128xbf16>
    %447 = vector.shape_cast %446 : vector<1x1x4x128xbf16> to vector<4x128xbf16>
    %448 = arith.extf %447 : vector<4x128xbf16> to vector<4x128xf32>
    %449 = arith.subf %448, %248 : vector<4x128xf32>
    %450 = math.exp %449 : vector<4x128xf32>
    %451 = arith.addf %436, %450 : vector<4x128xf32>
    %cst_225 = arith.constant 1.300000e+01 : f32
    %452 = vector.broadcast %cst_225 : f32 to vector<4x128xf32>
    %453 = arith.subf %181, %452 : vector<4x128xf32>
    %454 = math.absf %453 : vector<4x128xf32>
    %cst_226 = arith.constant 1.000000e+00 : f32
    %455 = vector.broadcast %cst_226 : f32 to vector<4x128xf32>
    %456 = arith.subf %455, %454 : vector<4x128xf32>
    %cst_227 = arith.constant 0.000000e+00 : f32
    %457 = vector.broadcast %cst_227 : f32 to vector<4x128xf32>
    %458 = arith.maximumf %456, %457 : vector<4x128xf32>
    %459 = arith.mulf %458, %448 : vector<4x128xf32>
    %460 = arith.addf %445, %459 : vector<4x128xf32>
    %c0_228 = arith.constant 0 : index
    %c14_229 = arith.constant 14 : index
    %c0_230 = arith.constant 0 : index
    %c0_231 = arith.constant 0 : index
    %461 = vector.load %arg1[%c0_228, %c14_229, %c0_230, %c0_231] : memref<4x17x4x128xbf16, #tpu.memory_space<vmem>>, vector<1x1x4x128xbf16>
    %462 = vector.shape_cast %461 : vector<1x1x4x128xbf16> to vector<4x128xbf16>
    %463 = arith.extf %462 : vector<4x128xbf16> to vector<4x128xf32>
    %464 = arith.subf %463, %248 : vector<4x128xf32>
    %465 = math.exp %464 : vector<4x128xf32>
    %466 = arith.addf %451, %465 : vector<4x128xf32>
    %cst_232 = arith.constant 1.400000e+01 : f32
    %467 = vector.broadcast %cst_232 : f32 to vector<4x128xf32>
    %468 = arith.subf %181, %467 : vector<4x128xf32>
    %469 = math.absf %468 : vector<4x128xf32>
    %cst_233 = arith.constant 1.000000e+00 : f32
    %470 = vector.broadcast %cst_233 : f32 to vector<4x128xf32>
    %471 = arith.subf %470, %469 : vector<4x128xf32>
    %cst_234 = arith.constant 0.000000e+00 : f32
    %472 = vector.broadcast %cst_234 : f32 to vector<4x128xf32>
    %473 = arith.maximumf %471, %472 : vector<4x128xf32>
    %474 = arith.mulf %473, %463 : vector<4x128xf32>
    %475 = arith.addf %460, %474 : vector<4x128xf32>
    %c0_235 = arith.constant 0 : index
    %c15_236 = arith.constant 15 : index
    %c0_237 = arith.constant 0 : index
    %c0_238 = arith.constant 0 : index
    %476 = vector.load %arg1[%c0_235, %c15_236, %c0_237, %c0_238] : memref<4x17x4x128xbf16, #tpu.memory_space<vmem>>, vector<1x1x4x128xbf16>
    %477 = vector.shape_cast %476 : vector<1x1x4x128xbf16> to vector<4x128xbf16>
    %478 = arith.extf %477 : vector<4x128xbf16> to vector<4x128xf32>
    %479 = arith.subf %478, %248 : vector<4x128xf32>
    %480 = math.exp %479 : vector<4x128xf32>
    %481 = arith.addf %466, %480 : vector<4x128xf32>
    %cst_239 = arith.constant 1.500000e+01 : f32
    %482 = vector.broadcast %cst_239 : f32 to vector<4x128xf32>
    %483 = arith.subf %181, %482 : vector<4x128xf32>
    %484 = math.absf %483 : vector<4x128xf32>
    %cst_240 = arith.constant 1.000000e+00 : f32
    %485 = vector.broadcast %cst_240 : f32 to vector<4x128xf32>
    %486 = arith.subf %485, %484 : vector<4x128xf32>
    %cst_241 = arith.constant 0.000000e+00 : f32
    %487 = vector.broadcast %cst_241 : f32 to vector<4x128xf32>
    %488 = arith.maximumf %486, %487 : vector<4x128xf32>
    %489 = arith.mulf %488, %478 : vector<4x128xf32>
    %490 = arith.addf %475, %489 : vector<4x128xf32>
    %c0_242 = arith.constant 0 : index
    %c16_243 = arith.constant 16 : index
    %c0_244 = arith.constant 0 : index
    %c0_245 = arith.constant 0 : index
    %491 = vector.load %arg1[%c0_242, %c16_243, %c0_244, %c0_245] : memref<4x17x4x128xbf16, #tpu.memory_space<vmem>>, vector<1x1x4x128xbf16>
    %492 = vector.shape_cast %491 : vector<1x1x4x128xbf16> to vector<4x128xbf16>
    %493 = arith.extf %492 : vector<4x128xbf16> to vector<4x128xf32>
    %494 = arith.subf %493, %248 : vector<4x128xf32>
    %495 = math.exp %494 : vector<4x128xf32>
    %496 = arith.addf %481, %495 : vector<4x128xf32>
    %cst_246 = arith.constant 1.600000e+01 : f32
    %497 = vector.broadcast %cst_246 : f32 to vector<4x128xf32>
    %498 = arith.subf %181, %497 : vector<4x128xf32>
    %499 = math.absf %498 : vector<4x128xf32>
    %cst_247 = arith.constant 1.000000e+00 : f32
    %500 = vector.broadcast %cst_247 : f32 to vector<4x128xf32>
    %501 = arith.subf %500, %499 : vector<4x128xf32>
    %cst_248 = arith.constant 0.000000e+00 : f32
    %502 = vector.broadcast %cst_248 : f32 to vector<4x128xf32>
    %503 = arith.maximumf %501, %502 : vector<4x128xf32>
    %504 = arith.mulf %503, %493 : vector<4x128xf32>
    %505 = arith.addf %490, %504 : vector<4x128xf32>
    %506 = math.log %496 : vector<4x128xf32>
    %507 = arith.addf %248, %506 : vector<4x128xf32>
    %508 = arith.subf %507, %505 : vector<4x128xf32>
    %509 = arith.addf %176, %508 : vector<4x128xf32>
    %510 = arith.subf %175, %11 : vector<4x128xf32>
    %cst_249 = arith.constant 0.000000e+00 : f32
    %cst_250 = arith.constant 1.599000e+01 : f32
    %511 = vector.broadcast %cst_249 : f32 to vector<4x128xf32>
    %512 = arith.maximumf %511, %510 : vector<4x128xf32>
    %513 = vector.broadcast %cst_250 : f32 to vector<4x128xf32>
    %514 = arith.minimumf %513, %512 : vector<4x128xf32>
    %c1_251 = arith.constant 1 : index
    %c0_252 = arith.constant 0 : index
    %c0_253 = arith.constant 0 : index
    %c0_254 = arith.constant 0 : index
    %515 = vector.load %arg1[%c1_251, %c0_252, %c0_253, %c0_254] : memref<4x17x4x128xbf16, #tpu.memory_space<vmem>>, vector<1x1x4x128xbf16>
    %516 = vector.shape_cast %515 : vector<1x1x4x128xbf16> to vector<4x128xbf16>
    %517 = arith.extf %516 : vector<4x128xbf16> to vector<4x128xf32>
    %c1_255 = arith.constant 1 : index
    %c1_256 = arith.constant 1 : index
    %c0_257 = arith.constant 0 : index
    %c0_258 = arith.constant 0 : index
    %518 = vector.load %arg1[%c1_255, %c1_256, %c0_257, %c0_258] : memref<4x17x4x128xbf16, #tpu.memory_space<vmem>>, vector<1x1x4x128xbf16>
    %519 = vector.shape_cast %518 : vector<1x1x4x128xbf16> to vector<4x128xbf16>
    %520 = arith.extf %519 : vector<4x128xbf16> to vector<4x128xf32>
    %521 = arith.maximumf %517, %520 : vector<4x128xf32>
    %c1_259 = arith.constant 1 : index
    %c2_260 = arith.constant 2 : index
    %c0_261 = arith.constant 0 : index
    %c0_262 = arith.constant 0 : index
    %522 = vector.load %arg1[%c1_259, %c2_260, %c0_261, %c0_262] : memref<4x17x4x128xbf16, #tpu.memory_space<vmem>>, vector<1x1x4x128xbf16>
    %523 = vector.shape_cast %522 : vector<1x1x4x128xbf16> to vector<4x128xbf16>
    %524 = arith.extf %523 : vector<4x128xbf16> to vector<4x128xf32>
    %525 = arith.maximumf %521, %524 : vector<4x128xf32>
    %c1_263 = arith.constant 1 : index
    %c3_264 = arith.constant 3 : index
    %c0_265 = arith.constant 0 : index
    %c0_266 = arith.constant 0 : index
    %526 = vector.load %arg1[%c1_263, %c3_264, %c0_265, %c0_266] : memref<4x17x4x128xbf16, #tpu.memory_space<vmem>>, vector<1x1x4x128xbf16>
    %527 = vector.shape_cast %526 : vector<1x1x4x128xbf16> to vector<4x128xbf16>
    %528 = arith.extf %527 : vector<4x128xbf16> to vector<4x128xf32>
    %529 = arith.maximumf %525, %528 : vector<4x128xf32>
    %c1_267 = arith.constant 1 : index
    %c4_268 = arith.constant 4 : index
    %c0_269 = arith.constant 0 : index
    %c0_270 = arith.constant 0 : index
    %530 = vector.load %arg1[%c1_267, %c4_268, %c0_269, %c0_270] : memref<4x17x4x128xbf16, #tpu.memory_space<vmem>>, vector<1x1x4x128xbf16>
    %531 = vector.shape_cast %530 : vector<1x1x4x128xbf16> to vector<4x128xbf16>
    %532 = arith.extf %531 : vector<4x128xbf16> to vector<4x128xf32>
    %533 = arith.maximumf %529, %532 : vector<4x128xf32>
    %c1_271 = arith.constant 1 : index
    %c5_272 = arith.constant 5 : index
    %c0_273 = arith.constant 0 : index
    %c0_274 = arith.constant 0 : index
    %534 = vector.load %arg1[%c1_271, %c5_272, %c0_273, %c0_274] : memref<4x17x4x128xbf16, #tpu.memory_space<vmem>>, vector<1x1x4x128xbf16>
    %535 = vector.shape_cast %534 : vector<1x1x4x128xbf16> to vector<4x128xbf16>
    %536 = arith.extf %535 : vector<4x128xbf16> to vector<4x128xf32>
    %537 = arith.maximumf %533, %536 : vector<4x128xf32>
    %c1_275 = arith.constant 1 : index
    %c6_276 = arith.constant 6 : index
    %c0_277 = arith.constant 0 : index
    %c0_278 = arith.constant 0 : index
    %538 = vector.load %arg1[%c1_275, %c6_276, %c0_277, %c0_278] : memref<4x17x4x128xbf16, #tpu.memory_space<vmem>>, vector<1x1x4x128xbf16>
    %539 = vector.shape_cast %538 : vector<1x1x4x128xbf16> to vector<4x128xbf16>
    %540 = arith.extf %539 : vector<4x128xbf16> to vector<4x128xf32>
    %541 = arith.maximumf %537, %540 : vector<4x128xf32>
    %c1_279 = arith.constant 1 : index
    %c7_280 = arith.constant 7 : index
    %c0_281 = arith.constant 0 : index
    %c0_282 = arith.constant 0 : index
    %542 = vector.load %arg1[%c1_279, %c7_280, %c0_281, %c0_282] : memref<4x17x4x128xbf16, #tpu.memory_space<vmem>>, vector<1x1x4x128xbf16>
    %543 = vector.shape_cast %542 : vector<1x1x4x128xbf16> to vector<4x128xbf16>
    %544 = arith.extf %543 : vector<4x128xbf16> to vector<4x128xf32>
    %545 = arith.maximumf %541, %544 : vector<4x128xf32>
    %c1_283 = arith.constant 1 : index
    %c8_284 = arith.constant 8 : index
    %c0_285 = arith.constant 0 : index
    %c0_286 = arith.constant 0 : index
    %546 = vector.load %arg1[%c1_283, %c8_284, %c0_285, %c0_286] : memref<4x17x4x128xbf16, #tpu.memory_space<vmem>>, vector<1x1x4x128xbf16>
    %547 = vector.shape_cast %546 : vector<1x1x4x128xbf16> to vector<4x128xbf16>
    %548 = arith.extf %547 : vector<4x128xbf16> to vector<4x128xf32>
    %549 = arith.maximumf %545, %548 : vector<4x128xf32>
    %c1_287 = arith.constant 1 : index
    %c9_288 = arith.constant 9 : index
    %c0_289 = arith.constant 0 : index
    %c0_290 = arith.constant 0 : index
    %550 = vector.load %arg1[%c1_287, %c9_288, %c0_289, %c0_290] : memref<4x17x4x128xbf16, #tpu.memory_space<vmem>>, vector<1x1x4x128xbf16>
    %551 = vector.shape_cast %550 : vector<1x1x4x128xbf16> to vector<4x128xbf16>
    %552 = arith.extf %551 : vector<4x128xbf16> to vector<4x128xf32>
    %553 = arith.maximumf %549, %552 : vector<4x128xf32>
    %c1_291 = arith.constant 1 : index
    %c10_292 = arith.constant 10 : index
    %c0_293 = arith.constant 0 : index
    %c0_294 = arith.constant 0 : index
    %554 = vector.load %arg1[%c1_291, %c10_292, %c0_293, %c0_294] : memref<4x17x4x128xbf16, #tpu.memory_space<vmem>>, vector<1x1x4x128xbf16>
    %555 = vector.shape_cast %554 : vector<1x1x4x128xbf16> to vector<4x128xbf16>
    %556 = arith.extf %555 : vector<4x128xbf16> to vector<4x128xf32>
    %557 = arith.maximumf %553, %556 : vector<4x128xf32>
    %c1_295 = arith.constant 1 : index
    %c11_296 = arith.constant 11 : index
    %c0_297 = arith.constant 0 : index
    %c0_298 = arith.constant 0 : index
    %558 = vector.load %arg1[%c1_295, %c11_296, %c0_297, %c0_298] : memref<4x17x4x128xbf16, #tpu.memory_space<vmem>>, vector<1x1x4x128xbf16>
    %559 = vector.shape_cast %558 : vector<1x1x4x128xbf16> to vector<4x128xbf16>
    %560 = arith.extf %559 : vector<4x128xbf16> to vector<4x128xf32>
    %561 = arith.maximumf %557, %560 : vector<4x128xf32>
    %c1_299 = arith.constant 1 : index
    %c12_300 = arith.constant 12 : index
    %c0_301 = arith.constant 0 : index
    %c0_302 = arith.constant 0 : index
    %562 = vector.load %arg1[%c1_299, %c12_300, %c0_301, %c0_302] : memref<4x17x4x128xbf16, #tpu.memory_space<vmem>>, vector<1x1x4x128xbf16>
    %563 = vector.shape_cast %562 : vector<1x1x4x128xbf16> to vector<4x128xbf16>
    %564 = arith.extf %563 : vector<4x128xbf16> to vector<4x128xf32>
    %565 = arith.maximumf %561, %564 : vector<4x128xf32>
    %c1_303 = arith.constant 1 : index
    %c13_304 = arith.constant 13 : index
    %c0_305 = arith.constant 0 : index
    %c0_306 = arith.constant 0 : index
    %566 = vector.load %arg1[%c1_303, %c13_304, %c0_305, %c0_306] : memref<4x17x4x128xbf16, #tpu.memory_space<vmem>>, vector<1x1x4x128xbf16>
    %567 = vector.shape_cast %566 : vector<1x1x4x128xbf16> to vector<4x128xbf16>
    %568 = arith.extf %567 : vector<4x128xbf16> to vector<4x128xf32>
    %569 = arith.maximumf %565, %568 : vector<4x128xf32>
    %c1_307 = arith.constant 1 : index
    %c14_308 = arith.constant 14 : index
    %c0_309 = arith.constant 0 : index
    %c0_310 = arith.constant 0 : index
    %570 = vector.load %arg1[%c1_307, %c14_308, %c0_309, %c0_310] : memref<4x17x4x128xbf16, #tpu.memory_space<vmem>>, vector<1x1x4x128xbf16>
    %571 = vector.shape_cast %570 : vector<1x1x4x128xbf16> to vector<4x128xbf16>
    %572 = arith.extf %571 : vector<4x128xbf16> to vector<4x128xf32>
    %573 = arith.maximumf %569, %572 : vector<4x128xf32>
    %c1_311 = arith.constant 1 : index
    %c15_312 = arith.constant 15 : index
    %c0_313 = arith.constant 0 : index
    %c0_314 = arith.constant 0 : index
    %574 = vector.load %arg1[%c1_311, %c15_312, %c0_313, %c0_314] : memref<4x17x4x128xbf16, #tpu.memory_space<vmem>>, vector<1x1x4x128xbf16>
    %575 = vector.shape_cast %574 : vector<1x1x4x128xbf16> to vector<4x128xbf16>
    %576 = arith.extf %575 : vector<4x128xbf16> to vector<4x128xf32>
    %577 = arith.maximumf %573, %576 : vector<4x128xf32>
    %c1_315 = arith.constant 1 : index
    %c16_316 = arith.constant 16 : index
    %c0_317 = arith.constant 0 : index
    %c0_318 = arith.constant 0 : index
    %578 = vector.load %arg1[%c1_315, %c16_316, %c0_317, %c0_318] : memref<4x17x4x128xbf16, #tpu.memory_space<vmem>>, vector<1x1x4x128xbf16>
    %579 = vector.shape_cast %578 : vector<1x1x4x128xbf16> to vector<4x128xbf16>
    %580 = arith.extf %579 : vector<4x128xbf16> to vector<4x128xf32>
    %581 = arith.maximumf %577, %580 : vector<4x128xf32>
    %cst_319 = arith.constant 0.000000e+00 : f32
    %582 = vector.broadcast %cst_319 : f32 to vector<4x128xf32>
    %cst_320 = arith.constant 0.000000e+00 : f32
    %583 = vector.broadcast %cst_320 : f32 to vector<4x128xf32>
    %c1_321 = arith.constant 1 : index
    %c0_322 = arith.constant 0 : index
    %c0_323 = arith.constant 0 : index
    %c0_324 = arith.constant 0 : index
    %584 = vector.load %arg1[%c1_321, %c0_322, %c0_323, %c0_324] : memref<4x17x4x128xbf16, #tpu.memory_space<vmem>>, vector<1x1x4x128xbf16>
    %585 = vector.shape_cast %584 : vector<1x1x4x128xbf16> to vector<4x128xbf16>
    %586 = arith.extf %585 : vector<4x128xbf16> to vector<4x128xf32>
    %587 = arith.subf %586, %581 : vector<4x128xf32>
    %588 = math.exp %587 : vector<4x128xf32>
    %589 = arith.addf %582, %588 : vector<4x128xf32>
    %cst_325 = arith.constant 0.000000e+00 : f32
    %590 = vector.broadcast %cst_325 : f32 to vector<4x128xf32>
    %591 = arith.subf %514, %590 : vector<4x128xf32>
    %592 = math.absf %591 : vector<4x128xf32>
    %cst_326 = arith.constant 1.000000e+00 : f32
    %593 = vector.broadcast %cst_326 : f32 to vector<4x128xf32>
    %594 = arith.subf %593, %592 : vector<4x128xf32>
    %cst_327 = arith.constant 0.000000e+00 : f32
    %595 = vector.broadcast %cst_327 : f32 to vector<4x128xf32>
    %596 = arith.maximumf %594, %595 : vector<4x128xf32>
    %597 = arith.mulf %596, %586 : vector<4x128xf32>
    %598 = arith.addf %583, %597 : vector<4x128xf32>
    %c1_328 = arith.constant 1 : index
    %c1_329 = arith.constant 1 : index
    %c0_330 = arith.constant 0 : index
    %c0_331 = arith.constant 0 : index
    %599 = vector.load %arg1[%c1_328, %c1_329, %c0_330, %c0_331] : memref<4x17x4x128xbf16, #tpu.memory_space<vmem>>, vector<1x1x4x128xbf16>
    %600 = vector.shape_cast %599 : vector<1x1x4x128xbf16> to vector<4x128xbf16>
    %601 = arith.extf %600 : vector<4x128xbf16> to vector<4x128xf32>
    %602 = arith.subf %601, %581 : vector<4x128xf32>
    %603 = math.exp %602 : vector<4x128xf32>
    %604 = arith.addf %589, %603 : vector<4x128xf32>
    %cst_332 = arith.constant 1.000000e+00 : f32
    %605 = vector.broadcast %cst_332 : f32 to vector<4x128xf32>
    %606 = arith.subf %514, %605 : vector<4x128xf32>
    %607 = math.absf %606 : vector<4x128xf32>
    %cst_333 = arith.constant 1.000000e+00 : f32
    %608 = vector.broadcast %cst_333 : f32 to vector<4x128xf32>
    %609 = arith.subf %608, %607 : vector<4x128xf32>
    %cst_334 = arith.constant 0.000000e+00 : f32
    %610 = vector.broadcast %cst_334 : f32 to vector<4x128xf32>
    %611 = arith.maximumf %609, %610 : vector<4x128xf32>
    %612 = arith.mulf %611, %601 : vector<4x128xf32>
    %613 = arith.addf %598, %612 : vector<4x128xf32>
    %c1_335 = arith.constant 1 : index
    %c2_336 = arith.constant 2 : index
    %c0_337 = arith.constant 0 : index
    %c0_338 = arith.constant 0 : index
    %614 = vector.load %arg1[%c1_335, %c2_336, %c0_337, %c0_338] : memref<4x17x4x128xbf16, #tpu.memory_space<vmem>>, vector<1x1x4x128xbf16>
    %615 = vector.shape_cast %614 : vector<1x1x4x128xbf16> to vector<4x128xbf16>
    %616 = arith.extf %615 : vector<4x128xbf16> to vector<4x128xf32>
    %617 = arith.subf %616, %581 : vector<4x128xf32>
    %618 = math.exp %617 : vector<4x128xf32>
    %619 = arith.addf %604, %618 : vector<4x128xf32>
    %cst_339 = arith.constant 2.000000e+00 : f32
    %620 = vector.broadcast %cst_339 : f32 to vector<4x128xf32>
    %621 = arith.subf %514, %620 : vector<4x128xf32>
    %622 = math.absf %621 : vector<4x128xf32>
    %cst_340 = arith.constant 1.000000e+00 : f32
    %623 = vector.broadcast %cst_340 : f32 to vector<4x128xf32>
    %624 = arith.subf %623, %622 : vector<4x128xf32>
    %cst_341 = arith.constant 0.000000e+00 : f32
    %625 = vector.broadcast %cst_341 : f32 to vector<4x128xf32>
    %626 = arith.maximumf %624, %625 : vector<4x128xf32>
    %627 = arith.mulf %626, %616 : vector<4x128xf32>
    %628 = arith.addf %613, %627 : vector<4x128xf32>
    %c1_342 = arith.constant 1 : index
    %c3_343 = arith.constant 3 : index
    %c0_344 = arith.constant 0 : index
    %c0_345 = arith.constant 0 : index
    %629 = vector.load %arg1[%c1_342, %c3_343, %c0_344, %c0_345] : memref<4x17x4x128xbf16, #tpu.memory_space<vmem>>, vector<1x1x4x128xbf16>
    %630 = vector.shape_cast %629 : vector<1x1x4x128xbf16> to vector<4x128xbf16>
    %631 = arith.extf %630 : vector<4x128xbf16> to vector<4x128xf32>
    %632 = arith.subf %631, %581 : vector<4x128xf32>
    %633 = math.exp %632 : vector<4x128xf32>
    %634 = arith.addf %619, %633 : vector<4x128xf32>
    %cst_346 = arith.constant 3.000000e+00 : f32
    %635 = vector.broadcast %cst_346 : f32 to vector<4x128xf32>
    %636 = arith.subf %514, %635 : vector<4x128xf32>
    %637 = math.absf %636 : vector<4x128xf32>
    %cst_347 = arith.constant 1.000000e+00 : f32
    %638 = vector.broadcast %cst_347 : f32 to vector<4x128xf32>
    %639 = arith.subf %638, %637 : vector<4x128xf32>
    %cst_348 = arith.constant 0.000000e+00 : f32
    %640 = vector.broadcast %cst_348 : f32 to vector<4x128xf32>
    %641 = arith.maximumf %639, %640 : vector<4x128xf32>
    %642 = arith.mulf %641, %631 : vector<4x128xf32>
    %643 = arith.addf %628, %642 : vector<4x128xf32>
    %c1_349 = arith.constant 1 : index
    %c4_350 = arith.constant 4 : index
    %c0_351 = arith.constant 0 : index
    %c0_352 = arith.constant 0 : index
    %644 = vector.load %arg1[%c1_349, %c4_350, %c0_351, %c0_352] : memref<4x17x4x128xbf16, #tpu.memory_space<vmem>>, vector<1x1x4x128xbf16>
    %645 = vector.shape_cast %644 : vector<1x1x4x128xbf16> to vector<4x128xbf16>
    %646 = arith.extf %645 : vector<4x128xbf16> to vector<4x128xf32>
    %647 = arith.subf %646, %581 : vector<4x128xf32>
    %648 = math.exp %647 : vector<4x128xf32>
    %649 = arith.addf %634, %648 : vector<4x128xf32>
    %cst_353 = arith.constant 4.000000e+00 : f32
    %650 = vector.broadcast %cst_353 : f32 to vector<4x128xf32>
    %651 = arith.subf %514, %650 : vector<4x128xf32>
    %652 = math.absf %651 : vector<4x128xf32>
    %cst_354 = arith.constant 1.000000e+00 : f32
    %653 = vector.broadcast %cst_354 : f32 to vector<4x128xf32>
    %654 = arith.subf %653, %652 : vector<4x128xf32>
    %cst_355 = arith.constant 0.000000e+00 : f32
    %655 = vector.broadcast %cst_355 : f32 to vector<4x128xf32>
    %656 = arith.maximumf %654, %655 : vector<4x128xf32>
    %657 = arith.mulf %656, %646 : vector<4x128xf32>
    %658 = arith.addf %643, %657 : vector<4x128xf32>
    %c1_356 = arith.constant 1 : index
    %c5_357 = arith.constant 5 : index
    %c0_358 = arith.constant 0 : index
    %c0_359 = arith.constant 0 : index
    %659 = vector.load %arg1[%c1_356, %c5_357, %c0_358, %c0_359] : memref<4x17x4x128xbf16, #tpu.memory_space<vmem>>, vector<1x1x4x128xbf16>
    %660 = vector.shape_cast %659 : vector<1x1x4x128xbf16> to vector<4x128xbf16>
    %661 = arith.extf %660 : vector<4x128xbf16> to vector<4x128xf32>
    %662 = arith.subf %661, %581 : vector<4x128xf32>
    %663 = math.exp %662 : vector<4x128xf32>
    %664 = arith.addf %649, %663 : vector<4x128xf32>
    %cst_360 = arith.constant 5.000000e+00 : f32
    %665 = vector.broadcast %cst_360 : f32 to vector<4x128xf32>
    %666 = arith.subf %514, %665 : vector<4x128xf32>
    %667 = math.absf %666 : vector<4x128xf32>
    %cst_361 = arith.constant 1.000000e+00 : f32
    %668 = vector.broadcast %cst_361 : f32 to vector<4x128xf32>
    %669 = arith.subf %668, %667 : vector<4x128xf32>
    %cst_362 = arith.constant 0.000000e+00 : f32
    %670 = vector.broadcast %cst_362 : f32 to vector<4x128xf32>
    %671 = arith.maximumf %669, %670 : vector<4x128xf32>
    %672 = arith.mulf %671, %661 : vector<4x128xf32>
    %673 = arith.addf %658, %672 : vector<4x128xf32>
    %c1_363 = arith.constant 1 : index
    %c6_364 = arith.constant 6 : index
    %c0_365 = arith.constant 0 : index
    %c0_366 = arith.constant 0 : index
    %674 = vector.load %arg1[%c1_363, %c6_364, %c0_365, %c0_366] : memref<4x17x4x128xbf16, #tpu.memory_space<vmem>>, vector<1x1x4x128xbf16>
    %675 = vector.shape_cast %674 : vector<1x1x4x128xbf16> to vector<4x128xbf16>
    %676 = arith.extf %675 : vector<4x128xbf16> to vector<4x128xf32>
    %677 = arith.subf %676, %581 : vector<4x128xf32>
    %678 = math.exp %677 : vector<4x128xf32>
    %679 = arith.addf %664, %678 : vector<4x128xf32>
    %cst_367 = arith.constant 6.000000e+00 : f32
    %680 = vector.broadcast %cst_367 : f32 to vector<4x128xf32>
    %681 = arith.subf %514, %680 : vector<4x128xf32>
    %682 = math.absf %681 : vector<4x128xf32>
    %cst_368 = arith.constant 1.000000e+00 : f32
    %683 = vector.broadcast %cst_368 : f32 to vector<4x128xf32>
    %684 = arith.subf %683, %682 : vector<4x128xf32>
    %cst_369 = arith.constant 0.000000e+00 : f32
    %685 = vector.broadcast %cst_369 : f32 to vector<4x128xf32>
    %686 = arith.maximumf %684, %685 : vector<4x128xf32>
    %687 = arith.mulf %686, %676 : vector<4x128xf32>
    %688 = arith.addf %673, %687 : vector<4x128xf32>
    %c1_370 = arith.constant 1 : index
    %c7_371 = arith.constant 7 : index
    %c0_372 = arith.constant 0 : index
    %c0_373 = arith.constant 0 : index
    %689 = vector.load %arg1[%c1_370, %c7_371, %c0_372, %c0_373] : memref<4x17x4x128xbf16, #tpu.memory_space<vmem>>, vector<1x1x4x128xbf16>
    %690 = vector.shape_cast %689 : vector<1x1x4x128xbf16> to vector<4x128xbf16>
    %691 = arith.extf %690 : vector<4x128xbf16> to vector<4x128xf32>
    %692 = arith.subf %691, %581 : vector<4x128xf32>
    %693 = math.exp %692 : vector<4x128xf32>
    %694 = arith.addf %679, %693 : vector<4x128xf32>
    %cst_374 = arith.constant 7.000000e+00 : f32
    %695 = vector.broadcast %cst_374 : f32 to vector<4x128xf32>
    %696 = arith.subf %514, %695 : vector<4x128xf32>
    %697 = math.absf %696 : vector<4x128xf32>
    %cst_375 = arith.constant 1.000000e+00 : f32
    %698 = vector.broadcast %cst_375 : f32 to vector<4x128xf32>
    %699 = arith.subf %698, %697 : vector<4x128xf32>
    %cst_376 = arith.constant 0.000000e+00 : f32
    %700 = vector.broadcast %cst_376 : f32 to vector<4x128xf32>
    %701 = arith.maximumf %699, %700 : vector<4x128xf32>
    %702 = arith.mulf %701, %691 : vector<4x128xf32>
    %703 = arith.addf %688, %702 : vector<4x128xf32>
    %c1_377 = arith.constant 1 : index
    %c8_378 = arith.constant 8 : index
    %c0_379 = arith.constant 0 : index
    %c0_380 = arith.constant 0 : index
    %704 = vector.load %arg1[%c1_377, %c8_378, %c0_379, %c0_380] : memref<4x17x4x128xbf16, #tpu.memory_space<vmem>>, vector<1x1x4x128xbf16>
    %705 = vector.shape_cast %704 : vector<1x1x4x128xbf16> to vector<4x128xbf16>
    %706 = arith.extf %705 : vector<4x128xbf16> to vector<4x128xf32>
    %707 = arith.subf %706, %581 : vector<4x128xf32>
    %708 = math.exp %707 : vector<4x128xf32>
    %709 = arith.addf %694, %708 : vector<4x128xf32>
    %cst_381 = arith.constant 8.000000e+00 : f32
    %710 = vector.broadcast %cst_381 : f32 to vector<4x128xf32>
    %711 = arith.subf %514, %710 : vector<4x128xf32>
    %712 = math.absf %711 : vector<4x128xf32>
    %cst_382 = arith.constant 1.000000e+00 : f32
    %713 = vector.broadcast %cst_382 : f32 to vector<4x128xf32>
    %714 = arith.subf %713, %712 : vector<4x128xf32>
    %cst_383 = arith.constant 0.000000e+00 : f32
    %715 = vector.broadcast %cst_383 : f32 to vector<4x128xf32>
    %716 = arith.maximumf %714, %715 : vector<4x128xf32>
    %717 = arith.mulf %716, %706 : vector<4x128xf32>
    %718 = arith.addf %703, %717 : vector<4x128xf32>
    %c1_384 = arith.constant 1 : index
    %c9_385 = arith.constant 9 : index
    %c0_386 = arith.constant 0 : index
    %c0_387 = arith.constant 0 : index
    %719 = vector.load %arg1[%c1_384, %c9_385, %c0_386, %c0_387] : memref<4x17x4x128xbf16, #tpu.memory_space<vmem>>, vector<1x1x4x128xbf16>
    %720 = vector.shape_cast %719 : vector<1x1x4x128xbf16> to vector<4x128xbf16>
    %721 = arith.extf %720 : vector<4x128xbf16> to vector<4x128xf32>
    %722 = arith.subf %721, %581 : vector<4x128xf32>
    %723 = math.exp %722 : vector<4x128xf32>
    %724 = arith.addf %709, %723 : vector<4x128xf32>
    %cst_388 = arith.constant 9.000000e+00 : f32
    %725 = vector.broadcast %cst_388 : f32 to vector<4x128xf32>
    %726 = arith.subf %514, %725 : vector<4x128xf32>
    %727 = math.absf %726 : vector<4x128xf32>
    %cst_389 = arith.constant 1.000000e+00 : f32
    %728 = vector.broadcast %cst_389 : f32 to vector<4x128xf32>
    %729 = arith.subf %728, %727 : vector<4x128xf32>
    %cst_390 = arith.constant 0.000000e+00 : f32
    %730 = vector.broadcast %cst_390 : f32 to vector<4x128xf32>
    %731 = arith.maximumf %729, %730 : vector<4x128xf32>
    %732 = arith.mulf %731, %721 : vector<4x128xf32>
    %733 = arith.addf %718, %732 : vector<4x128xf32>
    %c1_391 = arith.constant 1 : index
    %c10_392 = arith.constant 10 : index
    %c0_393 = arith.constant 0 : index
    %c0_394 = arith.constant 0 : index
    %734 = vector.load %arg1[%c1_391, %c10_392, %c0_393, %c0_394] : memref<4x17x4x128xbf16, #tpu.memory_space<vmem>>, vector<1x1x4x128xbf16>
    %735 = vector.shape_cast %734 : vector<1x1x4x128xbf16> to vector<4x128xbf16>
    %736 = arith.extf %735 : vector<4x128xbf16> to vector<4x128xf32>
    %737 = arith.subf %736, %581 : vector<4x128xf32>
    %738 = math.exp %737 : vector<4x128xf32>
    %739 = arith.addf %724, %738 : vector<4x128xf32>
    %cst_395 = arith.constant 1.000000e+01 : f32
    %740 = vector.broadcast %cst_395 : f32 to vector<4x128xf32>
    %741 = arith.subf %514, %740 : vector<4x128xf32>
    %742 = math.absf %741 : vector<4x128xf32>
    %cst_396 = arith.constant 1.000000e+00 : f32
    %743 = vector.broadcast %cst_396 : f32 to vector<4x128xf32>
    %744 = arith.subf %743, %742 : vector<4x128xf32>
    %cst_397 = arith.constant 0.000000e+00 : f32
    %745 = vector.broadcast %cst_397 : f32 to vector<4x128xf32>
    %746 = arith.maximumf %744, %745 : vector<4x128xf32>
    %747 = arith.mulf %746, %736 : vector<4x128xf32>
    %748 = arith.addf %733, %747 : vector<4x128xf32>
    %c1_398 = arith.constant 1 : index
    %c11_399 = arith.constant 11 : index
    %c0_400 = arith.constant 0 : index
    %c0_401 = arith.constant 0 : index
    %749 = vector.load %arg1[%c1_398, %c11_399, %c0_400, %c0_401] : memref<4x17x4x128xbf16, #tpu.memory_space<vmem>>, vector<1x1x4x128xbf16>
    %750 = vector.shape_cast %749 : vector<1x1x4x128xbf16> to vector<4x128xbf16>
    %751 = arith.extf %750 : vector<4x128xbf16> to vector<4x128xf32>
    %752 = arith.subf %751, %581 : vector<4x128xf32>
    %753 = math.exp %752 : vector<4x128xf32>
    %754 = arith.addf %739, %753 : vector<4x128xf32>
    %cst_402 = arith.constant 1.100000e+01 : f32
    %755 = vector.broadcast %cst_402 : f32 to vector<4x128xf32>
    %756 = arith.subf %514, %755 : vector<4x128xf32>
    %757 = math.absf %756 : vector<4x128xf32>
    %cst_403 = arith.constant 1.000000e+00 : f32
    %758 = vector.broadcast %cst_403 : f32 to vector<4x128xf32>
    %759 = arith.subf %758, %757 : vector<4x128xf32>
    %cst_404 = arith.constant 0.000000e+00 : f32
    %760 = vector.broadcast %cst_404 : f32 to vector<4x128xf32>
    %761 = arith.maximumf %759, %760 : vector<4x128xf32>
    %762 = arith.mulf %761, %751 : vector<4x128xf32>
    %763 = arith.addf %748, %762 : vector<4x128xf32>
    %c1_405 = arith.constant 1 : index
    %c12_406 = arith.constant 12 : index
    %c0_407 = arith.constant 0 : index
    %c0_408 = arith.constant 0 : index
    %764 = vector.load %arg1[%c1_405, %c12_406, %c0_407, %c0_408] : memref<4x17x4x128xbf16, #tpu.memory_space<vmem>>, vector<1x1x4x128xbf16>
    %765 = vector.shape_cast %764 : vector<1x1x4x128xbf16> to vector<4x128xbf16>
    %766 = arith.extf %765 : vector<4x128xbf16> to vector<4x128xf32>
    %767 = arith.subf %766, %581 : vector<4x128xf32>
    %768 = math.exp %767 : vector<4x128xf32>
    %769 = arith.addf %754, %768 : vector<4x128xf32>
    %cst_409 = arith.constant 1.200000e+01 : f32
    %770 = vector.broadcast %cst_409 : f32 to vector<4x128xf32>
    %771 = arith.subf %514, %770 : vector<4x128xf32>
    %772 = math.absf %771 : vector<4x128xf32>
    %cst_410 = arith.constant 1.000000e+00 : f32
    %773 = vector.broadcast %cst_410 : f32 to vector<4x128xf32>
    %774 = arith.subf %773, %772 : vector<4x128xf32>
    %cst_411 = arith.constant 0.000000e+00 : f32
    %775 = vector.broadcast %cst_411 : f32 to vector<4x128xf32>
    %776 = arith.maximumf %774, %775 : vector<4x128xf32>
    %777 = arith.mulf %776, %766 : vector<4x128xf32>
    %778 = arith.addf %763, %777 : vector<4x128xf32>
    %c1_412 = arith.constant 1 : index
    %c13_413 = arith.constant 13 : index
    %c0_414 = arith.constant 0 : index
    %c0_415 = arith.constant 0 : index
    %779 = vector.load %arg1[%c1_412, %c13_413, %c0_414, %c0_415] : memref<4x17x4x128xbf16, #tpu.memory_space<vmem>>, vector<1x1x4x128xbf16>
    %780 = vector.shape_cast %779 : vector<1x1x4x128xbf16> to vector<4x128xbf16>
    %781 = arith.extf %780 : vector<4x128xbf16> to vector<4x128xf32>
    %782 = arith.subf %781, %581 : vector<4x128xf32>
    %783 = math.exp %782 : vector<4x128xf32>
    %784 = arith.addf %769, %783 : vector<4x128xf32>
    %cst_416 = arith.constant 1.300000e+01 : f32
    %785 = vector.broadcast %cst_416 : f32 to vector<4x128xf32>
    %786 = arith.subf %514, %785 : vector<4x128xf32>
    %787 = math.absf %786 : vector<4x128xf32>
    %cst_417 = arith.constant 1.000000e+00 : f32
    %788 = vector.broadcast %cst_417 : f32 to vector<4x128xf32>
    %789 = arith.subf %788, %787 : vector<4x128xf32>
    %cst_418 = arith.constant 0.000000e+00 : f32
    %790 = vector.broadcast %cst_418 : f32 to vector<4x128xf32>
    %791 = arith.maximumf %789, %790 : vector<4x128xf32>
    %792 = arith.mulf %791, %781 : vector<4x128xf32>
    %793 = arith.addf %778, %792 : vector<4x128xf32>
    %c1_419 = arith.constant 1 : index
    %c14_420 = arith.constant 14 : index
    %c0_421 = arith.constant 0 : index
    %c0_422 = arith.constant 0 : index
    %794 = vector.load %arg1[%c1_419, %c14_420, %c0_421, %c0_422] : memref<4x17x4x128xbf16, #tpu.memory_space<vmem>>, vector<1x1x4x128xbf16>
    %795 = vector.shape_cast %794 : vector<1x1x4x128xbf16> to vector<4x128xbf16>
    %796 = arith.extf %795 : vector<4x128xbf16> to vector<4x128xf32>
    %797 = arith.subf %796, %581 : vector<4x128xf32>
    %798 = math.exp %797 : vector<4x128xf32>
    %799 = arith.addf %784, %798 : vector<4x128xf32>
    %cst_423 = arith.constant 1.400000e+01 : f32
    %800 = vector.broadcast %cst_423 : f32 to vector<4x128xf32>
    %801 = arith.subf %514, %800 : vector<4x128xf32>
    %802 = math.absf %801 : vector<4x128xf32>
    %cst_424 = arith.constant 1.000000e+00 : f32
    %803 = vector.broadcast %cst_424 : f32 to vector<4x128xf32>
    %804 = arith.subf %803, %802 : vector<4x128xf32>
    %cst_425 = arith.constant 0.000000e+00 : f32
    %805 = vector.broadcast %cst_425 : f32 to vector<4x128xf32>
    %806 = arith.maximumf %804, %805 : vector<4x128xf32>
    %807 = arith.mulf %806, %796 : vector<4x128xf32>
    %808 = arith.addf %793, %807 : vector<4x128xf32>
    %c1_426 = arith.constant 1 : index
    %c15_427 = arith.constant 15 : index
    %c0_428 = arith.constant 0 : index
    %c0_429 = arith.constant 0 : index
    %809 = vector.load %arg1[%c1_426, %c15_427, %c0_428, %c0_429] : memref<4x17x4x128xbf16, #tpu.memory_space<vmem>>, vector<1x1x4x128xbf16>
    %810 = vector.shape_cast %809 : vector<1x1x4x128xbf16> to vector<4x128xbf16>
    %811 = arith.extf %810 : vector<4x128xbf16> to vector<4x128xf32>
    %812 = arith.subf %811, %581 : vector<4x128xf32>
    %813 = math.exp %812 : vector<4x128xf32>
    %814 = arith.addf %799, %813 : vector<4x128xf32>
    %cst_430 = arith.constant 1.500000e+01 : f32
    %815 = vector.broadcast %cst_430 : f32 to vector<4x128xf32>
    %816 = arith.subf %514, %815 : vector<4x128xf32>
    %817 = math.absf %816 : vector<4x128xf32>
    %cst_431 = arith.constant 1.000000e+00 : f32
    %818 = vector.broadcast %cst_431 : f32 to vector<4x128xf32>
    %819 = arith.subf %818, %817 : vector<4x128xf32>
    %cst_432 = arith.constant 0.000000e+00 : f32
    %820 = vector.broadcast %cst_432 : f32 to vector<4x128xf32>
    %821 = arith.maximumf %819, %820 : vector<4x128xf32>
    %822 = arith.mulf %821, %811 : vector<4x128xf32>
    %823 = arith.addf %808, %822 : vector<4x128xf32>
    %c1_433 = arith.constant 1 : index
    %c16_434 = arith.constant 16 : index
    %c0_435 = arith.constant 0 : index
    %c0_436 = arith.constant 0 : index
    %824 = vector.load %arg1[%c1_433, %c16_434, %c0_435, %c0_436] : memref<4x17x4x128xbf16, #tpu.memory_space<vmem>>, vector<1x1x4x128xbf16>
    %825 = vector.shape_cast %824 : vector<1x1x4x128xbf16> to vector<4x128xbf16>
    %826 = arith.extf %825 : vector<4x128xbf16> to vector<4x128xf32>
    %827 = arith.subf %826, %581 : vector<4x128xf32>
    %828 = math.exp %827 : vector<4x128xf32>
    %829 = arith.addf %814, %828 : vector<4x128xf32>
    %cst_437 = arith.constant 1.600000e+01 : f32
    %830 = vector.broadcast %cst_437 : f32 to vector<4x128xf32>
    %831 = arith.subf %514, %830 : vector<4x128xf32>
    %832 = math.absf %831 : vector<4x128xf32>
    %cst_438 = arith.constant 1.000000e+00 : f32
    %833 = vector.broadcast %cst_438 : f32 to vector<4x128xf32>
    %834 = arith.subf %833, %832 : vector<4x128xf32>
    %cst_439 = arith.constant 0.000000e+00 : f32
    %835 = vector.broadcast %cst_439 : f32 to vector<4x128xf32>
    %836 = arith.maximumf %834, %835 : vector<4x128xf32>
    %837 = arith.mulf %836, %826 : vector<4x128xf32>
    %838 = arith.addf %823, %837 : vector<4x128xf32>
    %839 = math.log %829 : vector<4x128xf32>
    %840 = arith.addf %581, %839 : vector<4x128xf32>
    %841 = arith.subf %840, %838 : vector<4x128xf32>
    %842 = arith.addf %509, %841 : vector<4x128xf32>
    %843 = arith.subf %13, %173 : vector<4x128xf32>
    %cst_440 = arith.constant 0.000000e+00 : f32
    %cst_441 = arith.constant 1.599000e+01 : f32
    %844 = vector.broadcast %cst_440 : f32 to vector<4x128xf32>
    %845 = arith.maximumf %844, %843 : vector<4x128xf32>
    %846 = vector.broadcast %cst_441 : f32 to vector<4x128xf32>
    %847 = arith.minimumf %846, %845 : vector<4x128xf32>
    %c2_442 = arith.constant 2 : index
    %c0_443 = arith.constant 0 : index
    %c0_444 = arith.constant 0 : index
    %c0_445 = arith.constant 0 : index
    %848 = vector.load %arg1[%c2_442, %c0_443, %c0_444, %c0_445] : memref<4x17x4x128xbf16, #tpu.memory_space<vmem>>, vector<1x1x4x128xbf16>
    %849 = vector.shape_cast %848 : vector<1x1x4x128xbf16> to vector<4x128xbf16>
    %850 = arith.extf %849 : vector<4x128xbf16> to vector<4x128xf32>
    %c2_446 = arith.constant 2 : index
    %c1_447 = arith.constant 1 : index
    %c0_448 = arith.constant 0 : index
    %c0_449 = arith.constant 0 : index
    %851 = vector.load %arg1[%c2_446, %c1_447, %c0_448, %c0_449] : memref<4x17x4x128xbf16, #tpu.memory_space<vmem>>, vector<1x1x4x128xbf16>
    %852 = vector.shape_cast %851 : vector<1x1x4x128xbf16> to vector<4x128xbf16>
    %853 = arith.extf %852 : vector<4x128xbf16> to vector<4x128xf32>
    %854 = arith.maximumf %850, %853 : vector<4x128xf32>
    %c2_450 = arith.constant 2 : index
    %c2_451 = arith.constant 2 : index
    %c0_452 = arith.constant 0 : index
    %c0_453 = arith.constant 0 : index
    %855 = vector.load %arg1[%c2_450, %c2_451, %c0_452, %c0_453] : memref<4x17x4x128xbf16, #tpu.memory_space<vmem>>, vector<1x1x4x128xbf16>
    %856 = vector.shape_cast %855 : vector<1x1x4x128xbf16> to vector<4x128xbf16>
    %857 = arith.extf %856 : vector<4x128xbf16> to vector<4x128xf32>
    %858 = arith.maximumf %854, %857 : vector<4x128xf32>
    %c2_454 = arith.constant 2 : index
    %c3_455 = arith.constant 3 : index
    %c0_456 = arith.constant 0 : index
    %c0_457 = arith.constant 0 : index
    %859 = vector.load %arg1[%c2_454, %c3_455, %c0_456, %c0_457] : memref<4x17x4x128xbf16, #tpu.memory_space<vmem>>, vector<1x1x4x128xbf16>
    %860 = vector.shape_cast %859 : vector<1x1x4x128xbf16> to vector<4x128xbf16>
    %861 = arith.extf %860 : vector<4x128xbf16> to vector<4x128xf32>
    %862 = arith.maximumf %858, %861 : vector<4x128xf32>
    %c2_458 = arith.constant 2 : index
    %c4_459 = arith.constant 4 : index
    %c0_460 = arith.constant 0 : index
    %c0_461 = arith.constant 0 : index
    %863 = vector.load %arg1[%c2_458, %c4_459, %c0_460, %c0_461] : memref<4x17x4x128xbf16, #tpu.memory_space<vmem>>, vector<1x1x4x128xbf16>
    %864 = vector.shape_cast %863 : vector<1x1x4x128xbf16> to vector<4x128xbf16>
    %865 = arith.extf %864 : vector<4x128xbf16> to vector<4x128xf32>
    %866 = arith.maximumf %862, %865 : vector<4x128xf32>
    %c2_462 = arith.constant 2 : index
    %c5_463 = arith.constant 5 : index
    %c0_464 = arith.constant 0 : index
    %c0_465 = arith.constant 0 : index
    %867 = vector.load %arg1[%c2_462, %c5_463, %c0_464, %c0_465] : memref<4x17x4x128xbf16, #tpu.memory_space<vmem>>, vector<1x1x4x128xbf16>
    %868 = vector.shape_cast %867 : vector<1x1x4x128xbf16> to vector<4x128xbf16>
    %869 = arith.extf %868 : vector<4x128xbf16> to vector<4x128xf32>
    %870 = arith.maximumf %866, %869 : vector<4x128xf32>
    %c2_466 = arith.constant 2 : index
    %c6_467 = arith.constant 6 : index
    %c0_468 = arith.constant 0 : index
    %c0_469 = arith.constant 0 : index
    %871 = vector.load %arg1[%c2_466, %c6_467, %c0_468, %c0_469] : memref<4x17x4x128xbf16, #tpu.memory_space<vmem>>, vector<1x1x4x128xbf16>
    %872 = vector.shape_cast %871 : vector<1x1x4x128xbf16> to vector<4x128xbf16>
    %873 = arith.extf %872 : vector<4x128xbf16> to vector<4x128xf32>
    %874 = arith.maximumf %870, %873 : vector<4x128xf32>
    %c2_470 = arith.constant 2 : index
    %c7_471 = arith.constant 7 : index
    %c0_472 = arith.constant 0 : index
    %c0_473 = arith.constant 0 : index
    %875 = vector.load %arg1[%c2_470, %c7_471, %c0_472, %c0_473] : memref<4x17x4x128xbf16, #tpu.memory_space<vmem>>, vector<1x1x4x128xbf16>
    %876 = vector.shape_cast %875 : vector<1x1x4x128xbf16> to vector<4x128xbf16>
    %877 = arith.extf %876 : vector<4x128xbf16> to vector<4x128xf32>
    %878 = arith.maximumf %874, %877 : vector<4x128xf32>
    %c2_474 = arith.constant 2 : index
    %c8_475 = arith.constant 8 : index
    %c0_476 = arith.constant 0 : index
    %c0_477 = arith.constant 0 : index
    %879 = vector.load %arg1[%c2_474, %c8_475, %c0_476, %c0_477] : memref<4x17x4x128xbf16, #tpu.memory_space<vmem>>, vector<1x1x4x128xbf16>
    %880 = vector.shape_cast %879 : vector<1x1x4x128xbf16> to vector<4x128xbf16>
    %881 = arith.extf %880 : vector<4x128xbf16> to vector<4x128xf32>
    %882 = arith.maximumf %878, %881 : vector<4x128xf32>
    %c2_478 = arith.constant 2 : index
    %c9_479 = arith.constant 9 : index
    %c0_480 = arith.constant 0 : index
    %c0_481 = arith.constant 0 : index
    %883 = vector.load %arg1[%c2_478, %c9_479, %c0_480, %c0_481] : memref<4x17x4x128xbf16, #tpu.memory_space<vmem>>, vector<1x1x4x128xbf16>
    %884 = vector.shape_cast %883 : vector<1x1x4x128xbf16> to vector<4x128xbf16>
    %885 = arith.extf %884 : vector<4x128xbf16> to vector<4x128xf32>
    %886 = arith.maximumf %882, %885 : vector<4x128xf32>
    %c2_482 = arith.constant 2 : index
    %c10_483 = arith.constant 10 : index
    %c0_484 = arith.constant 0 : index
    %c0_485 = arith.constant 0 : index
    %887 = vector.load %arg1[%c2_482, %c10_483, %c0_484, %c0_485] : memref<4x17x4x128xbf16, #tpu.memory_space<vmem>>, vector<1x1x4x128xbf16>
    %888 = vector.shape_cast %887 : vector<1x1x4x128xbf16> to vector<4x128xbf16>
    %889 = arith.extf %888 : vector<4x128xbf16> to vector<4x128xf32>
    %890 = arith.maximumf %886, %889 : vector<4x128xf32>
    %c2_486 = arith.constant 2 : index
    %c11_487 = arith.constant 11 : index
    %c0_488 = arith.constant 0 : index
    %c0_489 = arith.constant 0 : index
    %891 = vector.load %arg1[%c2_486, %c11_487, %c0_488, %c0_489] : memref<4x17x4x128xbf16, #tpu.memory_space<vmem>>, vector<1x1x4x128xbf16>
    %892 = vector.shape_cast %891 : vector<1x1x4x128xbf16> to vector<4x128xbf16>
    %893 = arith.extf %892 : vector<4x128xbf16> to vector<4x128xf32>
    %894 = arith.maximumf %890, %893 : vector<4x128xf32>
    %c2_490 = arith.constant 2 : index
    %c12_491 = arith.constant 12 : index
    %c0_492 = arith.constant 0 : index
    %c0_493 = arith.constant 0 : index
    %895 = vector.load %arg1[%c2_490, %c12_491, %c0_492, %c0_493] : memref<4x17x4x128xbf16, #tpu.memory_space<vmem>>, vector<1x1x4x128xbf16>
    %896 = vector.shape_cast %895 : vector<1x1x4x128xbf16> to vector<4x128xbf16>
    %897 = arith.extf %896 : vector<4x128xbf16> to vector<4x128xf32>
    %898 = arith.maximumf %894, %897 : vector<4x128xf32>
    %c2_494 = arith.constant 2 : index
    %c13_495 = arith.constant 13 : index
    %c0_496 = arith.constant 0 : index
    %c0_497 = arith.constant 0 : index
    %899 = vector.load %arg1[%c2_494, %c13_495, %c0_496, %c0_497] : memref<4x17x4x128xbf16, #tpu.memory_space<vmem>>, vector<1x1x4x128xbf16>
    %900 = vector.shape_cast %899 : vector<1x1x4x128xbf16> to vector<4x128xbf16>
    %901 = arith.extf %900 : vector<4x128xbf16> to vector<4x128xf32>
    %902 = arith.maximumf %898, %901 : vector<4x128xf32>
    %c2_498 = arith.constant 2 : index
    %c14_499 = arith.constant 14 : index
    %c0_500 = arith.constant 0 : index
    %c0_501 = arith.constant 0 : index
    %903 = vector.load %arg1[%c2_498, %c14_499, %c0_500, %c0_501] : memref<4x17x4x128xbf16, #tpu.memory_space<vmem>>, vector<1x1x4x128xbf16>
    %904 = vector.shape_cast %903 : vector<1x1x4x128xbf16> to vector<4x128xbf16>
    %905 = arith.extf %904 : vector<4x128xbf16> to vector<4x128xf32>
    %906 = arith.maximumf %902, %905 : vector<4x128xf32>
    %c2_502 = arith.constant 2 : index
    %c15_503 = arith.constant 15 : index
    %c0_504 = arith.constant 0 : index
    %c0_505 = arith.constant 0 : index
    %907 = vector.load %arg1[%c2_502, %c15_503, %c0_504, %c0_505] : memref<4x17x4x128xbf16, #tpu.memory_space<vmem>>, vector<1x1x4x128xbf16>
    %908 = vector.shape_cast %907 : vector<1x1x4x128xbf16> to vector<4x128xbf16>
    %909 = arith.extf %908 : vector<4x128xbf16> to vector<4x128xf32>
    %910 = arith.maximumf %906, %909 : vector<4x128xf32>
    %c2_506 = arith.constant 2 : index
    %c16_507 = arith.constant 16 : index
    %c0_508 = arith.constant 0 : index
    %c0_509 = arith.constant 0 : index
    %911 = vector.load %arg1[%c2_506, %c16_507, %c0_508, %c0_509] : memref<4x17x4x128xbf16, #tpu.memory_space<vmem>>, vector<1x1x4x128xbf16>
    %912 = vector.shape_cast %911 : vector<1x1x4x128xbf16> to vector<4x128xbf16>
    %913 = arith.extf %912 : vector<4x128xbf16> to vector<4x128xf32>
    %914 = arith.maximumf %910, %913 : vector<4x128xf32>
    %cst_510 = arith.constant 0.000000e+00 : f32
    %915 = vector.broadcast %cst_510 : f32 to vector<4x128xf32>
    %cst_511 = arith.constant 0.000000e+00 : f32
    %916 = vector.broadcast %cst_511 : f32 to vector<4x128xf32>
    %c2_512 = arith.constant 2 : index
    %c0_513 = arith.constant 0 : index
    %c0_514 = arith.constant 0 : index
    %c0_515 = arith.constant 0 : index
    %917 = vector.load %arg1[%c2_512, %c0_513, %c0_514, %c0_515] : memref<4x17x4x128xbf16, #tpu.memory_space<vmem>>, vector<1x1x4x128xbf16>
    %918 = vector.shape_cast %917 : vector<1x1x4x128xbf16> to vector<4x128xbf16>
    %919 = arith.extf %918 : vector<4x128xbf16> to vector<4x128xf32>
    %920 = arith.subf %919, %914 : vector<4x128xf32>
    %921 = math.exp %920 : vector<4x128xf32>
    %922 = arith.addf %915, %921 : vector<4x128xf32>
    %cst_516 = arith.constant 0.000000e+00 : f32
    %923 = vector.broadcast %cst_516 : f32 to vector<4x128xf32>
    %924 = arith.subf %847, %923 : vector<4x128xf32>
    %925 = math.absf %924 : vector<4x128xf32>
    %cst_517 = arith.constant 1.000000e+00 : f32
    %926 = vector.broadcast %cst_517 : f32 to vector<4x128xf32>
    %927 = arith.subf %926, %925 : vector<4x128xf32>
    %cst_518 = arith.constant 0.000000e+00 : f32
    %928 = vector.broadcast %cst_518 : f32 to vector<4x128xf32>
    %929 = arith.maximumf %927, %928 : vector<4x128xf32>
    %930 = arith.mulf %929, %919 : vector<4x128xf32>
    %931 = arith.addf %916, %930 : vector<4x128xf32>
    %c2_519 = arith.constant 2 : index
    %c1_520 = arith.constant 1 : index
    %c0_521 = arith.constant 0 : index
    %c0_522 = arith.constant 0 : index
    %932 = vector.load %arg1[%c2_519, %c1_520, %c0_521, %c0_522] : memref<4x17x4x128xbf16, #tpu.memory_space<vmem>>, vector<1x1x4x128xbf16>
    %933 = vector.shape_cast %932 : vector<1x1x4x128xbf16> to vector<4x128xbf16>
    %934 = arith.extf %933 : vector<4x128xbf16> to vector<4x128xf32>
    %935 = arith.subf %934, %914 : vector<4x128xf32>
    %936 = math.exp %935 : vector<4x128xf32>
    %937 = arith.addf %922, %936 : vector<4x128xf32>
    %cst_523 = arith.constant 1.000000e+00 : f32
    %938 = vector.broadcast %cst_523 : f32 to vector<4x128xf32>
    %939 = arith.subf %847, %938 : vector<4x128xf32>
    %940 = math.absf %939 : vector<4x128xf32>
    %cst_524 = arith.constant 1.000000e+00 : f32
    %941 = vector.broadcast %cst_524 : f32 to vector<4x128xf32>
    %942 = arith.subf %941, %940 : vector<4x128xf32>
    %cst_525 = arith.constant 0.000000e+00 : f32
    %943 = vector.broadcast %cst_525 : f32 to vector<4x128xf32>
    %944 = arith.maximumf %942, %943 : vector<4x128xf32>
    %945 = arith.mulf %944, %934 : vector<4x128xf32>
    %946 = arith.addf %931, %945 : vector<4x128xf32>
    %c2_526 = arith.constant 2 : index
    %c2_527 = arith.constant 2 : index
    %c0_528 = arith.constant 0 : index
    %c0_529 = arith.constant 0 : index
    %947 = vector.load %arg1[%c2_526, %c2_527, %c0_528, %c0_529] : memref<4x17x4x128xbf16, #tpu.memory_space<vmem>>, vector<1x1x4x128xbf16>
    %948 = vector.shape_cast %947 : vector<1x1x4x128xbf16> to vector<4x128xbf16>
    %949 = arith.extf %948 : vector<4x128xbf16> to vector<4x128xf32>
    %950 = arith.subf %949, %914 : vector<4x128xf32>
    %951 = math.exp %950 : vector<4x128xf32>
    %952 = arith.addf %937, %951 : vector<4x128xf32>
    %cst_530 = arith.constant 2.000000e+00 : f32
    %953 = vector.broadcast %cst_530 : f32 to vector<4x128xf32>
    %954 = arith.subf %847, %953 : vector<4x128xf32>
    %955 = math.absf %954 : vector<4x128xf32>
    %cst_531 = arith.constant 1.000000e+00 : f32
    %956 = vector.broadcast %cst_531 : f32 to vector<4x128xf32>
    %957 = arith.subf %956, %955 : vector<4x128xf32>
    %cst_532 = arith.constant 0.000000e+00 : f32
    %958 = vector.broadcast %cst_532 : f32 to vector<4x128xf32>
    %959 = arith.maximumf %957, %958 : vector<4x128xf32>
    %960 = arith.mulf %959, %949 : vector<4x128xf32>
    %961 = arith.addf %946, %960 : vector<4x128xf32>
    %c2_533 = arith.constant 2 : index
    %c3_534 = arith.constant 3 : index
    %c0_535 = arith.constant 0 : index
    %c0_536 = arith.constant 0 : index
    %962 = vector.load %arg1[%c2_533, %c3_534, %c0_535, %c0_536] : memref<4x17x4x128xbf16, #tpu.memory_space<vmem>>, vector<1x1x4x128xbf16>
    %963 = vector.shape_cast %962 : vector<1x1x4x128xbf16> to vector<4x128xbf16>
    %964 = arith.extf %963 : vector<4x128xbf16> to vector<4x128xf32>
    %965 = arith.subf %964, %914 : vector<4x128xf32>
    %966 = math.exp %965 : vector<4x128xf32>
    %967 = arith.addf %952, %966 : vector<4x128xf32>
    %cst_537 = arith.constant 3.000000e+00 : f32
    %968 = vector.broadcast %cst_537 : f32 to vector<4x128xf32>
    %969 = arith.subf %847, %968 : vector<4x128xf32>
    %970 = math.absf %969 : vector<4x128xf32>
    %cst_538 = arith.constant 1.000000e+00 : f32
    %971 = vector.broadcast %cst_538 : f32 to vector<4x128xf32>
    %972 = arith.subf %971, %970 : vector<4x128xf32>
    %cst_539 = arith.constant 0.000000e+00 : f32
    %973 = vector.broadcast %cst_539 : f32 to vector<4x128xf32>
    %974 = arith.maximumf %972, %973 : vector<4x128xf32>
    %975 = arith.mulf %974, %964 : vector<4x128xf32>
    %976 = arith.addf %961, %975 : vector<4x128xf32>
    %c2_540 = arith.constant 2 : index
    %c4_541 = arith.constant 4 : index
    %c0_542 = arith.constant 0 : index
    %c0_543 = arith.constant 0 : index
    %977 = vector.load %arg1[%c2_540, %c4_541, %c0_542, %c0_543] : memref<4x17x4x128xbf16, #tpu.memory_space<vmem>>, vector<1x1x4x128xbf16>
    %978 = vector.shape_cast %977 : vector<1x1x4x128xbf16> to vector<4x128xbf16>
    %979 = arith.extf %978 : vector<4x128xbf16> to vector<4x128xf32>
    %980 = arith.subf %979, %914 : vector<4x128xf32>
    %981 = math.exp %980 : vector<4x128xf32>
    %982 = arith.addf %967, %981 : vector<4x128xf32>
    %cst_544 = arith.constant 4.000000e+00 : f32
    %983 = vector.broadcast %cst_544 : f32 to vector<4x128xf32>
    %984 = arith.subf %847, %983 : vector<4x128xf32>
    %985 = math.absf %984 : vector<4x128xf32>
    %cst_545 = arith.constant 1.000000e+00 : f32
    %986 = vector.broadcast %cst_545 : f32 to vector<4x128xf32>
    %987 = arith.subf %986, %985 : vector<4x128xf32>
    %cst_546 = arith.constant 0.000000e+00 : f32
    %988 = vector.broadcast %cst_546 : f32 to vector<4x128xf32>
    %989 = arith.maximumf %987, %988 : vector<4x128xf32>
    %990 = arith.mulf %989, %979 : vector<4x128xf32>
    %991 = arith.addf %976, %990 : vector<4x128xf32>
    %c2_547 = arith.constant 2 : index
    %c5_548 = arith.constant 5 : index
    %c0_549 = arith.constant 0 : index
    %c0_550 = arith.constant 0 : index
    %992 = vector.load %arg1[%c2_547, %c5_548, %c0_549, %c0_550] : memref<4x17x4x128xbf16, #tpu.memory_space<vmem>>, vector<1x1x4x128xbf16>
    %993 = vector.shape_cast %992 : vector<1x1x4x128xbf16> to vector<4x128xbf16>
    %994 = arith.extf %993 : vector<4x128xbf16> to vector<4x128xf32>
    %995 = arith.subf %994, %914 : vector<4x128xf32>
    %996 = math.exp %995 : vector<4x128xf32>
    %997 = arith.addf %982, %996 : vector<4x128xf32>
    %cst_551 = arith.constant 5.000000e+00 : f32
    %998 = vector.broadcast %cst_551 : f32 to vector<4x128xf32>
    %999 = arith.subf %847, %998 : vector<4x128xf32>
    %1000 = math.absf %999 : vector<4x128xf32>
    %cst_552 = arith.constant 1.000000e+00 : f32
    %1001 = vector.broadcast %cst_552 : f32 to vector<4x128xf32>
    %1002 = arith.subf %1001, %1000 : vector<4x128xf32>
    %cst_553 = arith.constant 0.000000e+00 : f32
    %1003 = vector.broadcast %cst_553 : f32 to vector<4x128xf32>
    %1004 = arith.maximumf %1002, %1003 : vector<4x128xf32>
    %1005 = arith.mulf %1004, %994 : vector<4x128xf32>
    %1006 = arith.addf %991, %1005 : vector<4x128xf32>
    %c2_554 = arith.constant 2 : index
    %c6_555 = arith.constant 6 : index
    %c0_556 = arith.constant 0 : index
    %c0_557 = arith.constant 0 : index
    %1007 = vector.load %arg1[%c2_554, %c6_555, %c0_556, %c0_557] : memref<4x17x4x128xbf16, #tpu.memory_space<vmem>>, vector<1x1x4x128xbf16>
    %1008 = vector.shape_cast %1007 : vector<1x1x4x128xbf16> to vector<4x128xbf16>
    %1009 = arith.extf %1008 : vector<4x128xbf16> to vector<4x128xf32>
    %1010 = arith.subf %1009, %914 : vector<4x128xf32>
    %1011 = math.exp %1010 : vector<4x128xf32>
    %1012 = arith.addf %997, %1011 : vector<4x128xf32>
    %cst_558 = arith.constant 6.000000e+00 : f32
    %1013 = vector.broadcast %cst_558 : f32 to vector<4x128xf32>
    %1014 = arith.subf %847, %1013 : vector<4x128xf32>
    %1015 = math.absf %1014 : vector<4x128xf32>
    %cst_559 = arith.constant 1.000000e+00 : f32
    %1016 = vector.broadcast %cst_559 : f32 to vector<4x128xf32>
    %1017 = arith.subf %1016, %1015 : vector<4x128xf32>
    %cst_560 = arith.constant 0.000000e+00 : f32
    %1018 = vector.broadcast %cst_560 : f32 to vector<4x128xf32>
    %1019 = arith.maximumf %1017, %1018 : vector<4x128xf32>
    %1020 = arith.mulf %1019, %1009 : vector<4x128xf32>
    %1021 = arith.addf %1006, %1020 : vector<4x128xf32>
    %c2_561 = arith.constant 2 : index
    %c7_562 = arith.constant 7 : index
    %c0_563 = arith.constant 0 : index
    %c0_564 = arith.constant 0 : index
    %1022 = vector.load %arg1[%c2_561, %c7_562, %c0_563, %c0_564] : memref<4x17x4x128xbf16, #tpu.memory_space<vmem>>, vector<1x1x4x128xbf16>
    %1023 = vector.shape_cast %1022 : vector<1x1x4x128xbf16> to vector<4x128xbf16>
    %1024 = arith.extf %1023 : vector<4x128xbf16> to vector<4x128xf32>
    %1025 = arith.subf %1024, %914 : vector<4x128xf32>
    %1026 = math.exp %1025 : vector<4x128xf32>
    %1027 = arith.addf %1012, %1026 : vector<4x128xf32>
    %cst_565 = arith.constant 7.000000e+00 : f32
    %1028 = vector.broadcast %cst_565 : f32 to vector<4x128xf32>
    %1029 = arith.subf %847, %1028 : vector<4x128xf32>
    %1030 = math.absf %1029 : vector<4x128xf32>
    %cst_566 = arith.constant 1.000000e+00 : f32
    %1031 = vector.broadcast %cst_566 : f32 to vector<4x128xf32>
    %1032 = arith.subf %1031, %1030 : vector<4x128xf32>
    %cst_567 = arith.constant 0.000000e+00 : f32
    %1033 = vector.broadcast %cst_567 : f32 to vector<4x128xf32>
    %1034 = arith.maximumf %1032, %1033 : vector<4x128xf32>
    %1035 = arith.mulf %1034, %1024 : vector<4x128xf32>
    %1036 = arith.addf %1021, %1035 : vector<4x128xf32>
    %c2_568 = arith.constant 2 : index
    %c8_569 = arith.constant 8 : index
    %c0_570 = arith.constant 0 : index
    %c0_571 = arith.constant 0 : index
    %1037 = vector.load %arg1[%c2_568, %c8_569, %c0_570, %c0_571] : memref<4x17x4x128xbf16, #tpu.memory_space<vmem>>, vector<1x1x4x128xbf16>
    %1038 = vector.shape_cast %1037 : vector<1x1x4x128xbf16> to vector<4x128xbf16>
    %1039 = arith.extf %1038 : vector<4x128xbf16> to vector<4x128xf32>
    %1040 = arith.subf %1039, %914 : vector<4x128xf32>
    %1041 = math.exp %1040 : vector<4x128xf32>
    %1042 = arith.addf %1027, %1041 : vector<4x128xf32>
    %cst_572 = arith.constant 8.000000e+00 : f32
    %1043 = vector.broadcast %cst_572 : f32 to vector<4x128xf32>
    %1044 = arith.subf %847, %1043 : vector<4x128xf32>
    %1045 = math.absf %1044 : vector<4x128xf32>
    %cst_573 = arith.constant 1.000000e+00 : f32
    %1046 = vector.broadcast %cst_573 : f32 to vector<4x128xf32>
    %1047 = arith.subf %1046, %1045 : vector<4x128xf32>
    %cst_574 = arith.constant 0.000000e+00 : f32
    %1048 = vector.broadcast %cst_574 : f32 to vector<4x128xf32>
    %1049 = arith.maximumf %1047, %1048 : vector<4x128xf32>
    %1050 = arith.mulf %1049, %1039 : vector<4x128xf32>
    %1051 = arith.addf %1036, %1050 : vector<4x128xf32>
    %c2_575 = arith.constant 2 : index
    %c9_576 = arith.constant 9 : index
    %c0_577 = arith.constant 0 : index
    %c0_578 = arith.constant 0 : index
    %1052 = vector.load %arg1[%c2_575, %c9_576, %c0_577, %c0_578] : memref<4x17x4x128xbf16, #tpu.memory_space<vmem>>, vector<1x1x4x128xbf16>
    %1053 = vector.shape_cast %1052 : vector<1x1x4x128xbf16> to vector<4x128xbf16>
    %1054 = arith.extf %1053 : vector<4x128xbf16> to vector<4x128xf32>
    %1055 = arith.subf %1054, %914 : vector<4x128xf32>
    %1056 = math.exp %1055 : vector<4x128xf32>
    %1057 = arith.addf %1042, %1056 : vector<4x128xf32>
    %cst_579 = arith.constant 9.000000e+00 : f32
    %1058 = vector.broadcast %cst_579 : f32 to vector<4x128xf32>
    %1059 = arith.subf %847, %1058 : vector<4x128xf32>
    %1060 = math.absf %1059 : vector<4x128xf32>
    %cst_580 = arith.constant 1.000000e+00 : f32
    %1061 = vector.broadcast %cst_580 : f32 to vector<4x128xf32>
    %1062 = arith.subf %1061, %1060 : vector<4x128xf32>
    %cst_581 = arith.constant 0.000000e+00 : f32
    %1063 = vector.broadcast %cst_581 : f32 to vector<4x128xf32>
    %1064 = arith.maximumf %1062, %1063 : vector<4x128xf32>
    %1065 = arith.mulf %1064, %1054 : vector<4x128xf32>
    %1066 = arith.addf %1051, %1065 : vector<4x128xf32>
    %c2_582 = arith.constant 2 : index
    %c10_583 = arith.constant 10 : index
    %c0_584 = arith.constant 0 : index
    %c0_585 = arith.constant 0 : index
    %1067 = vector.load %arg1[%c2_582, %c10_583, %c0_584, %c0_585] : memref<4x17x4x128xbf16, #tpu.memory_space<vmem>>, vector<1x1x4x128xbf16>
    %1068 = vector.shape_cast %1067 : vector<1x1x4x128xbf16> to vector<4x128xbf16>
    %1069 = arith.extf %1068 : vector<4x128xbf16> to vector<4x128xf32>
    %1070 = arith.subf %1069, %914 : vector<4x128xf32>
    %1071 = math.exp %1070 : vector<4x128xf32>
    %1072 = arith.addf %1057, %1071 : vector<4x128xf32>
    %cst_586 = arith.constant 1.000000e+01 : f32
    %1073 = vector.broadcast %cst_586 : f32 to vector<4x128xf32>
    %1074 = arith.subf %847, %1073 : vector<4x128xf32>
    %1075 = math.absf %1074 : vector<4x128xf32>
    %cst_587 = arith.constant 1.000000e+00 : f32
    %1076 = vector.broadcast %cst_587 : f32 to vector<4x128xf32>
    %1077 = arith.subf %1076, %1075 : vector<4x128xf32>
    %cst_588 = arith.constant 0.000000e+00 : f32
    %1078 = vector.broadcast %cst_588 : f32 to vector<4x128xf32>
    %1079 = arith.maximumf %1077, %1078 : vector<4x128xf32>
    %1080 = arith.mulf %1079, %1069 : vector<4x128xf32>
    %1081 = arith.addf %1066, %1080 : vector<4x128xf32>
    %c2_589 = arith.constant 2 : index
    %c11_590 = arith.constant 11 : index
    %c0_591 = arith.constant 0 : index
    %c0_592 = arith.constant 0 : index
    %1082 = vector.load %arg1[%c2_589, %c11_590, %c0_591, %c0_592] : memref<4x17x4x128xbf16, #tpu.memory_space<vmem>>, vector<1x1x4x128xbf16>
    %1083 = vector.shape_cast %1082 : vector<1x1x4x128xbf16> to vector<4x128xbf16>
    %1084 = arith.extf %1083 : vector<4x128xbf16> to vector<4x128xf32>
    %1085 = arith.subf %1084, %914 : vector<4x128xf32>
    %1086 = math.exp %1085 : vector<4x128xf32>
    %1087 = arith.addf %1072, %1086 : vector<4x128xf32>
    %cst_593 = arith.constant 1.100000e+01 : f32
    %1088 = vector.broadcast %cst_593 : f32 to vector<4x128xf32>
    %1089 = arith.subf %847, %1088 : vector<4x128xf32>
    %1090 = math.absf %1089 : vector<4x128xf32>
    %cst_594 = arith.constant 1.000000e+00 : f32
    %1091 = vector.broadcast %cst_594 : f32 to vector<4x128xf32>
    %1092 = arith.subf %1091, %1090 : vector<4x128xf32>
    %cst_595 = arith.constant 0.000000e+00 : f32
    %1093 = vector.broadcast %cst_595 : f32 to vector<4x128xf32>
    %1094 = arith.maximumf %1092, %1093 : vector<4x128xf32>
    %1095 = arith.mulf %1094, %1084 : vector<4x128xf32>
    %1096 = arith.addf %1081, %1095 : vector<4x128xf32>
    %c2_596 = arith.constant 2 : index
    %c12_597 = arith.constant 12 : index
    %c0_598 = arith.constant 0 : index
    %c0_599 = arith.constant 0 : index
    %1097 = vector.load %arg1[%c2_596, %c12_597, %c0_598, %c0_599] : memref<4x17x4x128xbf16, #tpu.memory_space<vmem>>, vector<1x1x4x128xbf16>
    %1098 = vector.shape_cast %1097 : vector<1x1x4x128xbf16> to vector<4x128xbf16>
    %1099 = arith.extf %1098 : vector<4x128xbf16> to vector<4x128xf32>
    %1100 = arith.subf %1099, %914 : vector<4x128xf32>
    %1101 = math.exp %1100 : vector<4x128xf32>
    %1102 = arith.addf %1087, %1101 : vector<4x128xf32>
    %cst_600 = arith.constant 1.200000e+01 : f32
    %1103 = vector.broadcast %cst_600 : f32 to vector<4x128xf32>
    %1104 = arith.subf %847, %1103 : vector<4x128xf32>
    %1105 = math.absf %1104 : vector<4x128xf32>
    %cst_601 = arith.constant 1.000000e+00 : f32
    %1106 = vector.broadcast %cst_601 : f32 to vector<4x128xf32>
    %1107 = arith.subf %1106, %1105 : vector<4x128xf32>
    %cst_602 = arith.constant 0.000000e+00 : f32
    %1108 = vector.broadcast %cst_602 : f32 to vector<4x128xf32>
    %1109 = arith.maximumf %1107, %1108 : vector<4x128xf32>
    %1110 = arith.mulf %1109, %1099 : vector<4x128xf32>
    %1111 = arith.addf %1096, %1110 : vector<4x128xf32>
    %c2_603 = arith.constant 2 : index
    %c13_604 = arith.constant 13 : index
    %c0_605 = arith.constant 0 : index
    %c0_606 = arith.constant 0 : index
    %1112 = vector.load %arg1[%c2_603, %c13_604, %c0_605, %c0_606] : memref<4x17x4x128xbf16, #tpu.memory_space<vmem>>, vector<1x1x4x128xbf16>
    %1113 = vector.shape_cast %1112 : vector<1x1x4x128xbf16> to vector<4x128xbf16>
    %1114 = arith.extf %1113 : vector<4x128xbf16> to vector<4x128xf32>
    %1115 = arith.subf %1114, %914 : vector<4x128xf32>
    %1116 = math.exp %1115 : vector<4x128xf32>
    %1117 = arith.addf %1102, %1116 : vector<4x128xf32>
    %cst_607 = arith.constant 1.300000e+01 : f32
    %1118 = vector.broadcast %cst_607 : f32 to vector<4x128xf32>
    %1119 = arith.subf %847, %1118 : vector<4x128xf32>
    %1120 = math.absf %1119 : vector<4x128xf32>
    %cst_608 = arith.constant 1.000000e+00 : f32
    %1121 = vector.broadcast %cst_608 : f32 to vector<4x128xf32>
    %1122 = arith.subf %1121, %1120 : vector<4x128xf32>
    %cst_609 = arith.constant 0.000000e+00 : f32
    %1123 = vector.broadcast %cst_609 : f32 to vector<4x128xf32>
    %1124 = arith.maximumf %1122, %1123 : vector<4x128xf32>
    %1125 = arith.mulf %1124, %1114 : vector<4x128xf32>
    %1126 = arith.addf %1111, %1125 : vector<4x128xf32>
    %c2_610 = arith.constant 2 : index
    %c14_611 = arith.constant 14 : index
    %c0_612 = arith.constant 0 : index
    %c0_613 = arith.constant 0 : index
    %1127 = vector.load %arg1[%c2_610, %c14_611, %c0_612, %c0_613] : memref<4x17x4x128xbf16, #tpu.memory_space<vmem>>, vector<1x1x4x128xbf16>
    %1128 = vector.shape_cast %1127 : vector<1x1x4x128xbf16> to vector<4x128xbf16>
    %1129 = arith.extf %1128 : vector<4x128xbf16> to vector<4x128xf32>
    %1130 = arith.subf %1129, %914 : vector<4x128xf32>
    %1131 = math.exp %1130 : vector<4x128xf32>
    %1132 = arith.addf %1117, %1131 : vector<4x128xf32>
    %cst_614 = arith.constant 1.400000e+01 : f32
    %1133 = vector.broadcast %cst_614 : f32 to vector<4x128xf32>
    %1134 = arith.subf %847, %1133 : vector<4x128xf32>
    %1135 = math.absf %1134 : vector<4x128xf32>
    %cst_615 = arith.constant 1.000000e+00 : f32
    %1136 = vector.broadcast %cst_615 : f32 to vector<4x128xf32>
    %1137 = arith.subf %1136, %1135 : vector<4x128xf32>
    %cst_616 = arith.constant 0.000000e+00 : f32
    %1138 = vector.broadcast %cst_616 : f32 to vector<4x128xf32>
    %1139 = arith.maximumf %1137, %1138 : vector<4x128xf32>
    %1140 = arith.mulf %1139, %1129 : vector<4x128xf32>
    %1141 = arith.addf %1126, %1140 : vector<4x128xf32>
    %c2_617 = arith.constant 2 : index
    %c15_618 = arith.constant 15 : index
    %c0_619 = arith.constant 0 : index
    %c0_620 = arith.constant 0 : index
    %1142 = vector.load %arg1[%c2_617, %c15_618, %c0_619, %c0_620] : memref<4x17x4x128xbf16, #tpu.memory_space<vmem>>, vector<1x1x4x128xbf16>
    %1143 = vector.shape_cast %1142 : vector<1x1x4x128xbf16> to vector<4x128xbf16>
    %1144 = arith.extf %1143 : vector<4x128xbf16> to vector<4x128xf32>
    %1145 = arith.subf %1144, %914 : vector<4x128xf32>
    %1146 = math.exp %1145 : vector<4x128xf32>
    %1147 = arith.addf %1132, %1146 : vector<4x128xf32>
    %cst_621 = arith.constant 1.500000e+01 : f32
    %1148 = vector.broadcast %cst_621 : f32 to vector<4x128xf32>
    %1149 = arith.subf %847, %1148 : vector<4x128xf32>
    %1150 = math.absf %1149 : vector<4x128xf32>
    %cst_622 = arith.constant 1.000000e+00 : f32
    %1151 = vector.broadcast %cst_622 : f32 to vector<4x128xf32>
    %1152 = arith.subf %1151, %1150 : vector<4x128xf32>
    %cst_623 = arith.constant 0.000000e+00 : f32
    %1153 = vector.broadcast %cst_623 : f32 to vector<4x128xf32>
    %1154 = arith.maximumf %1152, %1153 : vector<4x128xf32>
    %1155 = arith.mulf %1154, %1144 : vector<4x128xf32>
    %1156 = arith.addf %1141, %1155 : vector<4x128xf32>
    %c2_624 = arith.constant 2 : index
    %c16_625 = arith.constant 16 : index
    %c0_626 = arith.constant 0 : index
    %c0_627 = arith.constant 0 : index
    %1157 = vector.load %arg1[%c2_624, %c16_625, %c0_626, %c0_627] : memref<4x17x4x128xbf16, #tpu.memory_space<vmem>>, vector<1x1x4x128xbf16>
    %1158 = vector.shape_cast %1157 : vector<1x1x4x128xbf16> to vector<4x128xbf16>
    %1159 = arith.extf %1158 : vector<4x128xbf16> to vector<4x128xf32>
    %1160 = arith.subf %1159, %914 : vector<4x128xf32>
    %1161 = math.exp %1160 : vector<4x128xf32>
    %1162 = arith.addf %1147, %1161 : vector<4x128xf32>
    %cst_628 = arith.constant 1.600000e+01 : f32
    %1163 = vector.broadcast %cst_628 : f32 to vector<4x128xf32>
    %1164 = arith.subf %847, %1163 : vector<4x128xf32>
    %1165 = math.absf %1164 : vector<4x128xf32>
    %cst_629 = arith.constant 1.000000e+00 : f32
    %1166 = vector.broadcast %cst_629 : f32 to vector<4x128xf32>
    %1167 = arith.subf %1166, %1165 : vector<4x128xf32>
    %cst_630 = arith.constant 0.000000e+00 : f32
    %1168 = vector.broadcast %cst_630 : f32 to vector<4x128xf32>
    %1169 = arith.maximumf %1167, %1168 : vector<4x128xf32>
    %1170 = arith.mulf %1169, %1159 : vector<4x128xf32>
    %1171 = arith.addf %1156, %1170 : vector<4x128xf32>
    %1172 = math.log %1162 : vector<4x128xf32>
    %1173 = arith.addf %914, %1172 : vector<4x128xf32>
    %1174 = arith.subf %1173, %1171 : vector<4x128xf32>
    %1175 = arith.addf %842, %1174 : vector<4x128xf32>
    %1176 = arith.subf %15, %175 : vector<4x128xf32>
    %cst_631 = arith.constant 0.000000e+00 : f32
    %cst_632 = arith.constant 1.599000e+01 : f32
    %1177 = vector.broadcast %cst_631 : f32 to vector<4x128xf32>
    %1178 = arith.maximumf %1177, %1176 : vector<4x128xf32>
    %1179 = vector.broadcast %cst_632 : f32 to vector<4x128xf32>
    %1180 = arith.minimumf %1179, %1178 : vector<4x128xf32>
    %c3_633 = arith.constant 3 : index
    %c0_634 = arith.constant 0 : index
    %c0_635 = arith.constant 0 : index
    %c0_636 = arith.constant 0 : index
    %1181 = vector.load %arg1[%c3_633, %c0_634, %c0_635, %c0_636] : memref<4x17x4x128xbf16, #tpu.memory_space<vmem>>, vector<1x1x4x128xbf16>
    %1182 = vector.shape_cast %1181 : vector<1x1x4x128xbf16> to vector<4x128xbf16>
    %1183 = arith.extf %1182 : vector<4x128xbf16> to vector<4x128xf32>
    %c3_637 = arith.constant 3 : index
    %c1_638 = arith.constant 1 : index
    %c0_639 = arith.constant 0 : index
    %c0_640 = arith.constant 0 : index
    %1184 = vector.load %arg1[%c3_637, %c1_638, %c0_639, %c0_640] : memref<4x17x4x128xbf16, #tpu.memory_space<vmem>>, vector<1x1x4x128xbf16>
    %1185 = vector.shape_cast %1184 : vector<1x1x4x128xbf16> to vector<4x128xbf16>
    %1186 = arith.extf %1185 : vector<4x128xbf16> to vector<4x128xf32>
    %1187 = arith.maximumf %1183, %1186 : vector<4x128xf32>
    %c3_641 = arith.constant 3 : index
    %c2_642 = arith.constant 2 : index
    %c0_643 = arith.constant 0 : index
    %c0_644 = arith.constant 0 : index
    %1188 = vector.load %arg1[%c3_641, %c2_642, %c0_643, %c0_644] : memref<4x17x4x128xbf16, #tpu.memory_space<vmem>>, vector<1x1x4x128xbf16>
    %1189 = vector.shape_cast %1188 : vector<1x1x4x128xbf16> to vector<4x128xbf16>
    %1190 = arith.extf %1189 : vector<4x128xbf16> to vector<4x128xf32>
    %1191 = arith.maximumf %1187, %1190 : vector<4x128xf32>
    %c3_645 = arith.constant 3 : index
    %c3_646 = arith.constant 3 : index
    %c0_647 = arith.constant 0 : index
    %c0_648 = arith.constant 0 : index
    %1192 = vector.load %arg1[%c3_645, %c3_646, %c0_647, %c0_648] : memref<4x17x4x128xbf16, #tpu.memory_space<vmem>>, vector<1x1x4x128xbf16>
    %1193 = vector.shape_cast %1192 : vector<1x1x4x128xbf16> to vector<4x128xbf16>
    %1194 = arith.extf %1193 : vector<4x128xbf16> to vector<4x128xf32>
    %1195 = arith.maximumf %1191, %1194 : vector<4x128xf32>
    %c3_649 = arith.constant 3 : index
    %c4_650 = arith.constant 4 : index
    %c0_651 = arith.constant 0 : index
    %c0_652 = arith.constant 0 : index
    %1196 = vector.load %arg1[%c3_649, %c4_650, %c0_651, %c0_652] : memref<4x17x4x128xbf16, #tpu.memory_space<vmem>>, vector<1x1x4x128xbf16>
    %1197 = vector.shape_cast %1196 : vector<1x1x4x128xbf16> to vector<4x128xbf16>
    %1198 = arith.extf %1197 : vector<4x128xbf16> to vector<4x128xf32>
    %1199 = arith.maximumf %1195, %1198 : vector<4x128xf32>
    %c3_653 = arith.constant 3 : index
    %c5_654 = arith.constant 5 : index
    %c0_655 = arith.constant 0 : index
    %c0_656 = arith.constant 0 : index
    %1200 = vector.load %arg1[%c3_653, %c5_654, %c0_655, %c0_656] : memref<4x17x4x128xbf16, #tpu.memory_space<vmem>>, vector<1x1x4x128xbf16>
    %1201 = vector.shape_cast %1200 : vector<1x1x4x128xbf16> to vector<4x128xbf16>
    %1202 = arith.extf %1201 : vector<4x128xbf16> to vector<4x128xf32>
    %1203 = arith.maximumf %1199, %1202 : vector<4x128xf32>
    %c3_657 = arith.constant 3 : index
    %c6_658 = arith.constant 6 : index
    %c0_659 = arith.constant 0 : index
    %c0_660 = arith.constant 0 : index
    %1204 = vector.load %arg1[%c3_657, %c6_658, %c0_659, %c0_660] : memref<4x17x4x128xbf16, #tpu.memory_space<vmem>>, vector<1x1x4x128xbf16>
    %1205 = vector.shape_cast %1204 : vector<1x1x4x128xbf16> to vector<4x128xbf16>
    %1206 = arith.extf %1205 : vector<4x128xbf16> to vector<4x128xf32>
    %1207 = arith.maximumf %1203, %1206 : vector<4x128xf32>
    %c3_661 = arith.constant 3 : index
    %c7_662 = arith.constant 7 : index
    %c0_663 = arith.constant 0 : index
    %c0_664 = arith.constant 0 : index
    %1208 = vector.load %arg1[%c3_661, %c7_662, %c0_663, %c0_664] : memref<4x17x4x128xbf16, #tpu.memory_space<vmem>>, vector<1x1x4x128xbf16>
    %1209 = vector.shape_cast %1208 : vector<1x1x4x128xbf16> to vector<4x128xbf16>
    %1210 = arith.extf %1209 : vector<4x128xbf16> to vector<4x128xf32>
    %1211 = arith.maximumf %1207, %1210 : vector<4x128xf32>
    %c3_665 = arith.constant 3 : index
    %c8_666 = arith.constant 8 : index
    %c0_667 = arith.constant 0 : index
    %c0_668 = arith.constant 0 : index
    %1212 = vector.load %arg1[%c3_665, %c8_666, %c0_667, %c0_668] : memref<4x17x4x128xbf16, #tpu.memory_space<vmem>>, vector<1x1x4x128xbf16>
    %1213 = vector.shape_cast %1212 : vector<1x1x4x128xbf16> to vector<4x128xbf16>
    %1214 = arith.extf %1213 : vector<4x128xbf16> to vector<4x128xf32>
    %1215 = arith.maximumf %1211, %1214 : vector<4x128xf32>
    %c3_669 = arith.constant 3 : index
    %c9_670 = arith.constant 9 : index
    %c0_671 = arith.constant 0 : index
    %c0_672 = arith.constant 0 : index
    %1216 = vector.load %arg1[%c3_669, %c9_670, %c0_671, %c0_672] : memref<4x17x4x128xbf16, #tpu.memory_space<vmem>>, vector<1x1x4x128xbf16>
    %1217 = vector.shape_cast %1216 : vector<1x1x4x128xbf16> to vector<4x128xbf16>
    %1218 = arith.extf %1217 : vector<4x128xbf16> to vector<4x128xf32>
    %1219 = arith.maximumf %1215, %1218 : vector<4x128xf32>
    %c3_673 = arith.constant 3 : index
    %c10_674 = arith.constant 10 : index
    %c0_675 = arith.constant 0 : index
    %c0_676 = arith.constant 0 : index
    %1220 = vector.load %arg1[%c3_673, %c10_674, %c0_675, %c0_676] : memref<4x17x4x128xbf16, #tpu.memory_space<vmem>>, vector<1x1x4x128xbf16>
    %1221 = vector.shape_cast %1220 : vector<1x1x4x128xbf16> to vector<4x128xbf16>
    %1222 = arith.extf %1221 : vector<4x128xbf16> to vector<4x128xf32>
    %1223 = arith.maximumf %1219, %1222 : vector<4x128xf32>
    %c3_677 = arith.constant 3 : index
    %c11_678 = arith.constant 11 : index
    %c0_679 = arith.constant 0 : index
    %c0_680 = arith.constant 0 : index
    %1224 = vector.load %arg1[%c3_677, %c11_678, %c0_679, %c0_680] : memref<4x17x4x128xbf16, #tpu.memory_space<vmem>>, vector<1x1x4x128xbf16>
    %1225 = vector.shape_cast %1224 : vector<1x1x4x128xbf16> to vector<4x128xbf16>
    %1226 = arith.extf %1225 : vector<4x128xbf16> to vector<4x128xf32>
    %1227 = arith.maximumf %1223, %1226 : vector<4x128xf32>
    %c3_681 = arith.constant 3 : index
    %c12_682 = arith.constant 12 : index
    %c0_683 = arith.constant 0 : index
    %c0_684 = arith.constant 0 : index
    %1228 = vector.load %arg1[%c3_681, %c12_682, %c0_683, %c0_684] : memref<4x17x4x128xbf16, #tpu.memory_space<vmem>>, vector<1x1x4x128xbf16>
    %1229 = vector.shape_cast %1228 : vector<1x1x4x128xbf16> to vector<4x128xbf16>
    %1230 = arith.extf %1229 : vector<4x128xbf16> to vector<4x128xf32>
    %1231 = arith.maximumf %1227, %1230 : vector<4x128xf32>
    %c3_685 = arith.constant 3 : index
    %c13_686 = arith.constant 13 : index
    %c0_687 = arith.constant 0 : index
    %c0_688 = arith.constant 0 : index
    %1232 = vector.load %arg1[%c3_685, %c13_686, %c0_687, %c0_688] : memref<4x17x4x128xbf16, #tpu.memory_space<vmem>>, vector<1x1x4x128xbf16>
    %1233 = vector.shape_cast %1232 : vector<1x1x4x128xbf16> to vector<4x128xbf16>
    %1234 = arith.extf %1233 : vector<4x128xbf16> to vector<4x128xf32>
    %1235 = arith.maximumf %1231, %1234 : vector<4x128xf32>
    %c3_689 = arith.constant 3 : index
    %c14_690 = arith.constant 14 : index
    %c0_691 = arith.constant 0 : index
    %c0_692 = arith.constant 0 : index
    %1236 = vector.load %arg1[%c3_689, %c14_690, %c0_691, %c0_692] : memref<4x17x4x128xbf16, #tpu.memory_space<vmem>>, vector<1x1x4x128xbf16>
    %1237 = vector.shape_cast %1236 : vector<1x1x4x128xbf16> to vector<4x128xbf16>
    %1238 = arith.extf %1237 : vector<4x128xbf16> to vector<4x128xf32>
    %1239 = arith.maximumf %1235, %1238 : vector<4x128xf32>
    %c3_693 = arith.constant 3 : index
    %c15_694 = arith.constant 15 : index
    %c0_695 = arith.constant 0 : index
    %c0_696 = arith.constant 0 : index
    %1240 = vector.load %arg1[%c3_693, %c15_694, %c0_695, %c0_696] : memref<4x17x4x128xbf16, #tpu.memory_space<vmem>>, vector<1x1x4x128xbf16>
    %1241 = vector.shape_cast %1240 : vector<1x1x4x128xbf16> to vector<4x128xbf16>
    %1242 = arith.extf %1241 : vector<4x128xbf16> to vector<4x128xf32>
    %1243 = arith.maximumf %1239, %1242 : vector<4x128xf32>
    %c3_697 = arith.constant 3 : index
    %c16_698 = arith.constant 16 : index
    %c0_699 = arith.constant 0 : index
    %c0_700 = arith.constant 0 : index
    %1244 = vector.load %arg1[%c3_697, %c16_698, %c0_699, %c0_700] : memref<4x17x4x128xbf16, #tpu.memory_space<vmem>>, vector<1x1x4x128xbf16>
    %1245 = vector.shape_cast %1244 : vector<1x1x4x128xbf16> to vector<4x128xbf16>
    %1246 = arith.extf %1245 : vector<4x128xbf16> to vector<4x128xf32>
    %1247 = arith.maximumf %1243, %1246 : vector<4x128xf32>
    %cst_701 = arith.constant 0.000000e+00 : f32
    %1248 = vector.broadcast %cst_701 : f32 to vector<4x128xf32>
    %cst_702 = arith.constant 0.000000e+00 : f32
    %1249 = vector.broadcast %cst_702 : f32 to vector<4x128xf32>
    %c3_703 = arith.constant 3 : index
    %c0_704 = arith.constant 0 : index
    %c0_705 = arith.constant 0 : index
    %c0_706 = arith.constant 0 : index
    %1250 = vector.load %arg1[%c3_703, %c0_704, %c0_705, %c0_706] : memref<4x17x4x128xbf16, #tpu.memory_space<vmem>>, vector<1x1x4x128xbf16>
    %1251 = vector.shape_cast %1250 : vector<1x1x4x128xbf16> to vector<4x128xbf16>
    %1252 = arith.extf %1251 : vector<4x128xbf16> to vector<4x128xf32>
    %1253 = arith.subf %1252, %1247 : vector<4x128xf32>
    %1254 = math.exp %1253 : vector<4x128xf32>
    %1255 = arith.addf %1248, %1254 : vector<4x128xf32>
    %cst_707 = arith.constant 0.000000e+00 : f32
    %1256 = vector.broadcast %cst_707 : f32 to vector<4x128xf32>
    %1257 = arith.subf %1180, %1256 : vector<4x128xf32>
    %1258 = math.absf %1257 : vector<4x128xf32>
    %cst_708 = arith.constant 1.000000e+00 : f32
    %1259 = vector.broadcast %cst_708 : f32 to vector<4x128xf32>
    %1260 = arith.subf %1259, %1258 : vector<4x128xf32>
    %cst_709 = arith.constant 0.000000e+00 : f32
    %1261 = vector.broadcast %cst_709 : f32 to vector<4x128xf32>
    %1262 = arith.maximumf %1260, %1261 : vector<4x128xf32>
    %1263 = arith.mulf %1262, %1252 : vector<4x128xf32>
    %1264 = arith.addf %1249, %1263 : vector<4x128xf32>
    %c3_710 = arith.constant 3 : index
    %c1_711 = arith.constant 1 : index
    %c0_712 = arith.constant 0 : index
    %c0_713 = arith.constant 0 : index
    %1265 = vector.load %arg1[%c3_710, %c1_711, %c0_712, %c0_713] : memref<4x17x4x128xbf16, #tpu.memory_space<vmem>>, vector<1x1x4x128xbf16>
    %1266 = vector.shape_cast %1265 : vector<1x1x4x128xbf16> to vector<4x128xbf16>
    %1267 = arith.extf %1266 : vector<4x128xbf16> to vector<4x128xf32>
    %1268 = arith.subf %1267, %1247 : vector<4x128xf32>
    %1269 = math.exp %1268 : vector<4x128xf32>
    %1270 = arith.addf %1255, %1269 : vector<4x128xf32>
    %cst_714 = arith.constant 1.000000e+00 : f32
    %1271 = vector.broadcast %cst_714 : f32 to vector<4x128xf32>
    %1272 = arith.subf %1180, %1271 : vector<4x128xf32>
    %1273 = math.absf %1272 : vector<4x128xf32>
    %cst_715 = arith.constant 1.000000e+00 : f32
    %1274 = vector.broadcast %cst_715 : f32 to vector<4x128xf32>
    %1275 = arith.subf %1274, %1273 : vector<4x128xf32>
    %cst_716 = arith.constant 0.000000e+00 : f32
    %1276 = vector.broadcast %cst_716 : f32 to vector<4x128xf32>
    %1277 = arith.maximumf %1275, %1276 : vector<4x128xf32>
    %1278 = arith.mulf %1277, %1267 : vector<4x128xf32>
    %1279 = arith.addf %1264, %1278 : vector<4x128xf32>
    %c3_717 = arith.constant 3 : index
    %c2_718 = arith.constant 2 : index
    %c0_719 = arith.constant 0 : index
    %c0_720 = arith.constant 0 : index
    %1280 = vector.load %arg1[%c3_717, %c2_718, %c0_719, %c0_720] : memref<4x17x4x128xbf16, #tpu.memory_space<vmem>>, vector<1x1x4x128xbf16>
    %1281 = vector.shape_cast %1280 : vector<1x1x4x128xbf16> to vector<4x128xbf16>
    %1282 = arith.extf %1281 : vector<4x128xbf16> to vector<4x128xf32>
    %1283 = arith.subf %1282, %1247 : vector<4x128xf32>
    %1284 = math.exp %1283 : vector<4x128xf32>
    %1285 = arith.addf %1270, %1284 : vector<4x128xf32>
    %cst_721 = arith.constant 2.000000e+00 : f32
    %1286 = vector.broadcast %cst_721 : f32 to vector<4x128xf32>
    %1287 = arith.subf %1180, %1286 : vector<4x128xf32>
    %1288 = math.absf %1287 : vector<4x128xf32>
    %cst_722 = arith.constant 1.000000e+00 : f32
    %1289 = vector.broadcast %cst_722 : f32 to vector<4x128xf32>
    %1290 = arith.subf %1289, %1288 : vector<4x128xf32>
    %cst_723 = arith.constant 0.000000e+00 : f32
    %1291 = vector.broadcast %cst_723 : f32 to vector<4x128xf32>
    %1292 = arith.maximumf %1290, %1291 : vector<4x128xf32>
    %1293 = arith.mulf %1292, %1282 : vector<4x128xf32>
    %1294 = arith.addf %1279, %1293 : vector<4x128xf32>
    %c3_724 = arith.constant 3 : index
    %c3_725 = arith.constant 3 : index
    %c0_726 = arith.constant 0 : index
    %c0_727 = arith.constant 0 : index
    %1295 = vector.load %arg1[%c3_724, %c3_725, %c0_726, %c0_727] : memref<4x17x4x128xbf16, #tpu.memory_space<vmem>>, vector<1x1x4x128xbf16>
    %1296 = vector.shape_cast %1295 : vector<1x1x4x128xbf16> to vector<4x128xbf16>
    %1297 = arith.extf %1296 : vector<4x128xbf16> to vector<4x128xf32>
    %1298 = arith.subf %1297, %1247 : vector<4x128xf32>
    %1299 = math.exp %1298 : vector<4x128xf32>
    %1300 = arith.addf %1285, %1299 : vector<4x128xf32>
    %cst_728 = arith.constant 3.000000e+00 : f32
    %1301 = vector.broadcast %cst_728 : f32 to vector<4x128xf32>
    %1302 = arith.subf %1180, %1301 : vector<4x128xf32>
    %1303 = math.absf %1302 : vector<4x128xf32>
    %cst_729 = arith.constant 1.000000e+00 : f32
    %1304 = vector.broadcast %cst_729 : f32 to vector<4x128xf32>
    %1305 = arith.subf %1304, %1303 : vector<4x128xf32>
    %cst_730 = arith.constant 0.000000e+00 : f32
    %1306 = vector.broadcast %cst_730 : f32 to vector<4x128xf32>
    %1307 = arith.maximumf %1305, %1306 : vector<4x128xf32>
    %1308 = arith.mulf %1307, %1297 : vector<4x128xf32>
    %1309 = arith.addf %1294, %1308 : vector<4x128xf32>
    %c3_731 = arith.constant 3 : index
    %c4_732 = arith.constant 4 : index
    %c0_733 = arith.constant 0 : index
    %c0_734 = arith.constant 0 : index
    %1310 = vector.load %arg1[%c3_731, %c4_732, %c0_733, %c0_734] : memref<4x17x4x128xbf16, #tpu.memory_space<vmem>>, vector<1x1x4x128xbf16>
    %1311 = vector.shape_cast %1310 : vector<1x1x4x128xbf16> to vector<4x128xbf16>
    %1312 = arith.extf %1311 : vector<4x128xbf16> to vector<4x128xf32>
    %1313 = arith.subf %1312, %1247 : vector<4x128xf32>
    %1314 = math.exp %1313 : vector<4x128xf32>
    %1315 = arith.addf %1300, %1314 : vector<4x128xf32>
    %cst_735 = arith.constant 4.000000e+00 : f32
    %1316 = vector.broadcast %cst_735 : f32 to vector<4x128xf32>
    %1317 = arith.subf %1180, %1316 : vector<4x128xf32>
    %1318 = math.absf %1317 : vector<4x128xf32>
    %cst_736 = arith.constant 1.000000e+00 : f32
    %1319 = vector.broadcast %cst_736 : f32 to vector<4x128xf32>
    %1320 = arith.subf %1319, %1318 : vector<4x128xf32>
    %cst_737 = arith.constant 0.000000e+00 : f32
    %1321 = vector.broadcast %cst_737 : f32 to vector<4x128xf32>
    %1322 = arith.maximumf %1320, %1321 : vector<4x128xf32>
    %1323 = arith.mulf %1322, %1312 : vector<4x128xf32>
    %1324 = arith.addf %1309, %1323 : vector<4x128xf32>
    %c3_738 = arith.constant 3 : index
    %c5_739 = arith.constant 5 : index
    %c0_740 = arith.constant 0 : index
    %c0_741 = arith.constant 0 : index
    %1325 = vector.load %arg1[%c3_738, %c5_739, %c0_740, %c0_741] : memref<4x17x4x128xbf16, #tpu.memory_space<vmem>>, vector<1x1x4x128xbf16>
    %1326 = vector.shape_cast %1325 : vector<1x1x4x128xbf16> to vector<4x128xbf16>
    %1327 = arith.extf %1326 : vector<4x128xbf16> to vector<4x128xf32>
    %1328 = arith.subf %1327, %1247 : vector<4x128xf32>
    %1329 = math.exp %1328 : vector<4x128xf32>
    %1330 = arith.addf %1315, %1329 : vector<4x128xf32>
    %cst_742 = arith.constant 5.000000e+00 : f32
    %1331 = vector.broadcast %cst_742 : f32 to vector<4x128xf32>
    %1332 = arith.subf %1180, %1331 : vector<4x128xf32>
    %1333 = math.absf %1332 : vector<4x128xf32>
    %cst_743 = arith.constant 1.000000e+00 : f32
    %1334 = vector.broadcast %cst_743 : f32 to vector<4x128xf32>
    %1335 = arith.subf %1334, %1333 : vector<4x128xf32>
    %cst_744 = arith.constant 0.000000e+00 : f32
    %1336 = vector.broadcast %cst_744 : f32 to vector<4x128xf32>
    %1337 = arith.maximumf %1335, %1336 : vector<4x128xf32>
    %1338 = arith.mulf %1337, %1327 : vector<4x128xf32>
    %1339 = arith.addf %1324, %1338 : vector<4x128xf32>
    %c3_745 = arith.constant 3 : index
    %c6_746 = arith.constant 6 : index
    %c0_747 = arith.constant 0 : index
    %c0_748 = arith.constant 0 : index
    %1340 = vector.load %arg1[%c3_745, %c6_746, %c0_747, %c0_748] : memref<4x17x4x128xbf16, #tpu.memory_space<vmem>>, vector<1x1x4x128xbf16>
    %1341 = vector.shape_cast %1340 : vector<1x1x4x128xbf16> to vector<4x128xbf16>
    %1342 = arith.extf %1341 : vector<4x128xbf16> to vector<4x128xf32>
    %1343 = arith.subf %1342, %1247 : vector<4x128xf32>
    %1344 = math.exp %1343 : vector<4x128xf32>
    %1345 = arith.addf %1330, %1344 : vector<4x128xf32>
    %cst_749 = arith.constant 6.000000e+00 : f32
    %1346 = vector.broadcast %cst_749 : f32 to vector<4x128xf32>
    %1347 = arith.subf %1180, %1346 : vector<4x128xf32>
    %1348 = math.absf %1347 : vector<4x128xf32>
    %cst_750 = arith.constant 1.000000e+00 : f32
    %1349 = vector.broadcast %cst_750 : f32 to vector<4x128xf32>
    %1350 = arith.subf %1349, %1348 : vector<4x128xf32>
    %cst_751 = arith.constant 0.000000e+00 : f32
    %1351 = vector.broadcast %cst_751 : f32 to vector<4x128xf32>
    %1352 = arith.maximumf %1350, %1351 : vector<4x128xf32>
    %1353 = arith.mulf %1352, %1342 : vector<4x128xf32>
    %1354 = arith.addf %1339, %1353 : vector<4x128xf32>
    %c3_752 = arith.constant 3 : index
    %c7_753 = arith.constant 7 : index
    %c0_754 = arith.constant 0 : index
    %c0_755 = arith.constant 0 : index
    %1355 = vector.load %arg1[%c3_752, %c7_753, %c0_754, %c0_755] : memref<4x17x4x128xbf16, #tpu.memory_space<vmem>>, vector<1x1x4x128xbf16>
    %1356 = vector.shape_cast %1355 : vector<1x1x4x128xbf16> to vector<4x128xbf16>
    %1357 = arith.extf %1356 : vector<4x128xbf16> to vector<4x128xf32>
    %1358 = arith.subf %1357, %1247 : vector<4x128xf32>
    %1359 = math.exp %1358 : vector<4x128xf32>
    %1360 = arith.addf %1345, %1359 : vector<4x128xf32>
    %cst_756 = arith.constant 7.000000e+00 : f32
    %1361 = vector.broadcast %cst_756 : f32 to vector<4x128xf32>
    %1362 = arith.subf %1180, %1361 : vector<4x128xf32>
    %1363 = math.absf %1362 : vector<4x128xf32>
    %cst_757 = arith.constant 1.000000e+00 : f32
    %1364 = vector.broadcast %cst_757 : f32 to vector<4x128xf32>
    %1365 = arith.subf %1364, %1363 : vector<4x128xf32>
    %cst_758 = arith.constant 0.000000e+00 : f32
    %1366 = vector.broadcast %cst_758 : f32 to vector<4x128xf32>
    %1367 = arith.maximumf %1365, %1366 : vector<4x128xf32>
    %1368 = arith.mulf %1367, %1357 : vector<4x128xf32>
    %1369 = arith.addf %1354, %1368 : vector<4x128xf32>
    %c3_759 = arith.constant 3 : index
    %c8_760 = arith.constant 8 : index
    %c0_761 = arith.constant 0 : index
    %c0_762 = arith.constant 0 : index
    %1370 = vector.load %arg1[%c3_759, %c8_760, %c0_761, %c0_762] : memref<4x17x4x128xbf16, #tpu.memory_space<vmem>>, vector<1x1x4x128xbf16>
    %1371 = vector.shape_cast %1370 : vector<1x1x4x128xbf16> to vector<4x128xbf16>
    %1372 = arith.extf %1371 : vector<4x128xbf16> to vector<4x128xf32>
    %1373 = arith.subf %1372, %1247 : vector<4x128xf32>
    %1374 = math.exp %1373 : vector<4x128xf32>
    %1375 = arith.addf %1360, %1374 : vector<4x128xf32>
    %cst_763 = arith.constant 8.000000e+00 : f32
    %1376 = vector.broadcast %cst_763 : f32 to vector<4x128xf32>
    %1377 = arith.subf %1180, %1376 : vector<4x128xf32>
    %1378 = math.absf %1377 : vector<4x128xf32>
    %cst_764 = arith.constant 1.000000e+00 : f32
    %1379 = vector.broadcast %cst_764 : f32 to vector<4x128xf32>
    %1380 = arith.subf %1379, %1378 : vector<4x128xf32>
    %cst_765 = arith.constant 0.000000e+00 : f32
    %1381 = vector.broadcast %cst_765 : f32 to vector<4x128xf32>
    %1382 = arith.maximumf %1380, %1381 : vector<4x128xf32>
    %1383 = arith.mulf %1382, %1372 : vector<4x128xf32>
    %1384 = arith.addf %1369, %1383 : vector<4x128xf32>
    %c3_766 = arith.constant 3 : index
    %c9_767 = arith.constant 9 : index
    %c0_768 = arith.constant 0 : index
    %c0_769 = arith.constant 0 : index
    %1385 = vector.load %arg1[%c3_766, %c9_767, %c0_768, %c0_769] : memref<4x17x4x128xbf16, #tpu.memory_space<vmem>>, vector<1x1x4x128xbf16>
    %1386 = vector.shape_cast %1385 : vector<1x1x4x128xbf16> to vector<4x128xbf16>
    %1387 = arith.extf %1386 : vector<4x128xbf16> to vector<4x128xf32>
    %1388 = arith.subf %1387, %1247 : vector<4x128xf32>
    %1389 = math.exp %1388 : vector<4x128xf32>
    %1390 = arith.addf %1375, %1389 : vector<4x128xf32>
    %cst_770 = arith.constant 9.000000e+00 : f32
    %1391 = vector.broadcast %cst_770 : f32 to vector<4x128xf32>
    %1392 = arith.subf %1180, %1391 : vector<4x128xf32>
    %1393 = math.absf %1392 : vector<4x128xf32>
    %cst_771 = arith.constant 1.000000e+00 : f32
    %1394 = vector.broadcast %cst_771 : f32 to vector<4x128xf32>
    %1395 = arith.subf %1394, %1393 : vector<4x128xf32>
    %cst_772 = arith.constant 0.000000e+00 : f32
    %1396 = vector.broadcast %cst_772 : f32 to vector<4x128xf32>
    %1397 = arith.maximumf %1395, %1396 : vector<4x128xf32>
    %1398 = arith.mulf %1397, %1387 : vector<4x128xf32>
    %1399 = arith.addf %1384, %1398 : vector<4x128xf32>
    %c3_773 = arith.constant 3 : index
    %c10_774 = arith.constant 10 : index
    %c0_775 = arith.constant 0 : index
    %c0_776 = arith.constant 0 : index
    %1400 = vector.load %arg1[%c3_773, %c10_774, %c0_775, %c0_776] : memref<4x17x4x128xbf16, #tpu.memory_space<vmem>>, vector<1x1x4x128xbf16>
    %1401 = vector.shape_cast %1400 : vector<1x1x4x128xbf16> to vector<4x128xbf16>
    %1402 = arith.extf %1401 : vector<4x128xbf16> to vector<4x128xf32>
    %1403 = arith.subf %1402, %1247 : vector<4x128xf32>
    %1404 = math.exp %1403 : vector<4x128xf32>
    %1405 = arith.addf %1390, %1404 : vector<4x128xf32>
    %cst_777 = arith.constant 1.000000e+01 : f32
    %1406 = vector.broadcast %cst_777 : f32 to vector<4x128xf32>
    %1407 = arith.subf %1180, %1406 : vector<4x128xf32>
    %1408 = math.absf %1407 : vector<4x128xf32>
    %cst_778 = arith.constant 1.000000e+00 : f32
    %1409 = vector.broadcast %cst_778 : f32 to vector<4x128xf32>
    %1410 = arith.subf %1409, %1408 : vector<4x128xf32>
    %cst_779 = arith.constant 0.000000e+00 : f32
    %1411 = vector.broadcast %cst_779 : f32 to vector<4x128xf32>
    %1412 = arith.maximumf %1410, %1411 : vector<4x128xf32>
    %1413 = arith.mulf %1412, %1402 : vector<4x128xf32>
    %1414 = arith.addf %1399, %1413 : vector<4x128xf32>
    %c3_780 = arith.constant 3 : index
    %c11_781 = arith.constant 11 : index
    %c0_782 = arith.constant 0 : index
    %c0_783 = arith.constant 0 : index
    %1415 = vector.load %arg1[%c3_780, %c11_781, %c0_782, %c0_783] : memref<4x17x4x128xbf16, #tpu.memory_space<vmem>>, vector<1x1x4x128xbf16>
    %1416 = vector.shape_cast %1415 : vector<1x1x4x128xbf16> to vector<4x128xbf16>
    %1417 = arith.extf %1416 : vector<4x128xbf16> to vector<4x128xf32>
    %1418 = arith.subf %1417, %1247 : vector<4x128xf32>
    %1419 = math.exp %1418 : vector<4x128xf32>
    %1420 = arith.addf %1405, %1419 : vector<4x128xf32>
    %cst_784 = arith.constant 1.100000e+01 : f32
    %1421 = vector.broadcast %cst_784 : f32 to vector<4x128xf32>
    %1422 = arith.subf %1180, %1421 : vector<4x128xf32>
    %1423 = math.absf %1422 : vector<4x128xf32>
    %cst_785 = arith.constant 1.000000e+00 : f32
    %1424 = vector.broadcast %cst_785 : f32 to vector<4x128xf32>
    %1425 = arith.subf %1424, %1423 : vector<4x128xf32>
    %cst_786 = arith.constant 0.000000e+00 : f32
    %1426 = vector.broadcast %cst_786 : f32 to vector<4x128xf32>
    %1427 = arith.maximumf %1425, %1426 : vector<4x128xf32>
    %1428 = arith.mulf %1427, %1417 : vector<4x128xf32>
    %1429 = arith.addf %1414, %1428 : vector<4x128xf32>
    %c3_787 = arith.constant 3 : index
    %c12_788 = arith.constant 12 : index
    %c0_789 = arith.constant 0 : index
    %c0_790 = arith.constant 0 : index
    %1430 = vector.load %arg1[%c3_787, %c12_788, %c0_789, %c0_790] : memref<4x17x4x128xbf16, #tpu.memory_space<vmem>>, vector<1x1x4x128xbf16>
    %1431 = vector.shape_cast %1430 : vector<1x1x4x128xbf16> to vector<4x128xbf16>
    %1432 = arith.extf %1431 : vector<4x128xbf16> to vector<4x128xf32>
    %1433 = arith.subf %1432, %1247 : vector<4x128xf32>
    %1434 = math.exp %1433 : vector<4x128xf32>
    %1435 = arith.addf %1420, %1434 : vector<4x128xf32>
    %cst_791 = arith.constant 1.200000e+01 : f32
    %1436 = vector.broadcast %cst_791 : f32 to vector<4x128xf32>
    %1437 = arith.subf %1180, %1436 : vector<4x128xf32>
    %1438 = math.absf %1437 : vector<4x128xf32>
    %cst_792 = arith.constant 1.000000e+00 : f32
    %1439 = vector.broadcast %cst_792 : f32 to vector<4x128xf32>
    %1440 = arith.subf %1439, %1438 : vector<4x128xf32>
    %cst_793 = arith.constant 0.000000e+00 : f32
    %1441 = vector.broadcast %cst_793 : f32 to vector<4x128xf32>
    %1442 = arith.maximumf %1440, %1441 : vector<4x128xf32>
    %1443 = arith.mulf %1442, %1432 : vector<4x128xf32>
    %1444 = arith.addf %1429, %1443 : vector<4x128xf32>
    %c3_794 = arith.constant 3 : index
    %c13_795 = arith.constant 13 : index
    %c0_796 = arith.constant 0 : index
    %c0_797 = arith.constant 0 : index
    %1445 = vector.load %arg1[%c3_794, %c13_795, %c0_796, %c0_797] : memref<4x17x4x128xbf16, #tpu.memory_space<vmem>>, vector<1x1x4x128xbf16>
    %1446 = vector.shape_cast %1445 : vector<1x1x4x128xbf16> to vector<4x128xbf16>
    %1447 = arith.extf %1446 : vector<4x128xbf16> to vector<4x128xf32>
    %1448 = arith.subf %1447, %1247 : vector<4x128xf32>
    %1449 = math.exp %1448 : vector<4x128xf32>
    %1450 = arith.addf %1435, %1449 : vector<4x128xf32>
    %cst_798 = arith.constant 1.300000e+01 : f32
    %1451 = vector.broadcast %cst_798 : f32 to vector<4x128xf32>
    %1452 = arith.subf %1180, %1451 : vector<4x128xf32>
    %1453 = math.absf %1452 : vector<4x128xf32>
    %cst_799 = arith.constant 1.000000e+00 : f32
    %1454 = vector.broadcast %cst_799 : f32 to vector<4x128xf32>
    %1455 = arith.subf %1454, %1453 : vector<4x128xf32>
    %cst_800 = arith.constant 0.000000e+00 : f32
    %1456 = vector.broadcast %cst_800 : f32 to vector<4x128xf32>
    %1457 = arith.maximumf %1455, %1456 : vector<4x128xf32>
    %1458 = arith.mulf %1457, %1447 : vector<4x128xf32>
    %1459 = arith.addf %1444, %1458 : vector<4x128xf32>
    %c3_801 = arith.constant 3 : index
    %c14_802 = arith.constant 14 : index
    %c0_803 = arith.constant 0 : index
    %c0_804 = arith.constant 0 : index
    %1460 = vector.load %arg1[%c3_801, %c14_802, %c0_803, %c0_804] : memref<4x17x4x128xbf16, #tpu.memory_space<vmem>>, vector<1x1x4x128xbf16>
    %1461 = vector.shape_cast %1460 : vector<1x1x4x128xbf16> to vector<4x128xbf16>
    %1462 = arith.extf %1461 : vector<4x128xbf16> to vector<4x128xf32>
    %1463 = arith.subf %1462, %1247 : vector<4x128xf32>
    %1464 = math.exp %1463 : vector<4x128xf32>
    %1465 = arith.addf %1450, %1464 : vector<4x128xf32>
    %cst_805 = arith.constant 1.400000e+01 : f32
    %1466 = vector.broadcast %cst_805 : f32 to vector<4x128xf32>
    %1467 = arith.subf %1180, %1466 : vector<4x128xf32>
    %1468 = math.absf %1467 : vector<4x128xf32>
    %cst_806 = arith.constant 1.000000e+00 : f32
    %1469 = vector.broadcast %cst_806 : f32 to vector<4x128xf32>
    %1470 = arith.subf %1469, %1468 : vector<4x128xf32>
    %cst_807 = arith.constant 0.000000e+00 : f32
    %1471 = vector.broadcast %cst_807 : f32 to vector<4x128xf32>
    %1472 = arith.maximumf %1470, %1471 : vector<4x128xf32>
    %1473 = arith.mulf %1472, %1462 : vector<4x128xf32>
    %1474 = arith.addf %1459, %1473 : vector<4x128xf32>
    %c3_808 = arith.constant 3 : index
    %c15_809 = arith.constant 15 : index
    %c0_810 = arith.constant 0 : index
    %c0_811 = arith.constant 0 : index
    %1475 = vector.load %arg1[%c3_808, %c15_809, %c0_810, %c0_811] : memref<4x17x4x128xbf16, #tpu.memory_space<vmem>>, vector<1x1x4x128xbf16>
    %1476 = vector.shape_cast %1475 : vector<1x1x4x128xbf16> to vector<4x128xbf16>
    %1477 = arith.extf %1476 : vector<4x128xbf16> to vector<4x128xf32>
    %1478 = arith.subf %1477, %1247 : vector<4x128xf32>
    %1479 = math.exp %1478 : vector<4x128xf32>
    %1480 = arith.addf %1465, %1479 : vector<4x128xf32>
    %cst_812 = arith.constant 1.500000e+01 : f32
    %1481 = vector.broadcast %cst_812 : f32 to vector<4x128xf32>
    %1482 = arith.subf %1180, %1481 : vector<4x128xf32>
    %1483 = math.absf %1482 : vector<4x128xf32>
    %cst_813 = arith.constant 1.000000e+00 : f32
    %1484 = vector.broadcast %cst_813 : f32 to vector<4x128xf32>
    %1485 = arith.subf %1484, %1483 : vector<4x128xf32>
    %cst_814 = arith.constant 0.000000e+00 : f32
    %1486 = vector.broadcast %cst_814 : f32 to vector<4x128xf32>
    %1487 = arith.maximumf %1485, %1486 : vector<4x128xf32>
    %1488 = arith.mulf %1487, %1477 : vector<4x128xf32>
    %1489 = arith.addf %1474, %1488 : vector<4x128xf32>
    %c3_815 = arith.constant 3 : index
    %c16_816 = arith.constant 16 : index
    %c0_817 = arith.constant 0 : index
    %c0_818 = arith.constant 0 : index
    %1490 = vector.load %arg1[%c3_815, %c16_816, %c0_817, %c0_818] : memref<4x17x4x128xbf16, #tpu.memory_space<vmem>>, vector<1x1x4x128xbf16>
    %1491 = vector.shape_cast %1490 : vector<1x1x4x128xbf16> to vector<4x128xbf16>
    %1492 = arith.extf %1491 : vector<4x128xbf16> to vector<4x128xf32>
    %1493 = arith.subf %1492, %1247 : vector<4x128xf32>
    %1494 = math.exp %1493 : vector<4x128xf32>
    %1495 = arith.addf %1480, %1494 : vector<4x128xf32>
    %cst_819 = arith.constant 1.600000e+01 : f32
    %1496 = vector.broadcast %cst_819 : f32 to vector<4x128xf32>
    %1497 = arith.subf %1180, %1496 : vector<4x128xf32>
    %1498 = math.absf %1497 : vector<4x128xf32>
    %cst_820 = arith.constant 1.000000e+00 : f32
    %1499 = vector.broadcast %cst_820 : f32 to vector<4x128xf32>
    %1500 = arith.subf %1499, %1498 : vector<4x128xf32>
    %cst_821 = arith.constant 0.000000e+00 : f32
    %1501 = vector.broadcast %cst_821 : f32 to vector<4x128xf32>
    %1502 = arith.maximumf %1500, %1501 : vector<4x128xf32>
    %1503 = arith.mulf %1502, %1492 : vector<4x128xf32>
    %1504 = arith.addf %1489, %1503 : vector<4x128xf32>
    %1505 = math.log %1495 : vector<4x128xf32>
    %1506 = arith.addf %1247, %1505 : vector<4x128xf32>
    %1507 = arith.subf %1506, %1504 : vector<4x128xf32>
    %1508 = arith.addf %1175, %1507 : vector<4x128xf32>
    %cst_822 = arith.constant 2.500000e-01 : f32
    %1509 = vector.broadcast %cst_822 : f32 to vector<4x128xf32>
    %1510 = arith.mulf %1508, %1509 : vector<4x128xf32>
    %c0_823 = arith.constant 0 : index
    %c0_824 = arith.constant 0 : index
    %1511 = vector.load %arg6[%c0_823, %c0_824] : memref<4x128xf32, #tpu.memory_space<vmem>>, vector<4x128xf32>
    tpu.vector_store %arg6[%c0_823, %c0_824], %1510 {strides = array<i32>} : memref<4x128xf32, #tpu.memory_space<vmem>>, vector<4x128xf32>,
    return
  }
  func.func @transform_0(%arg0: i32) -> (i32, i32, i32, i32) {
    %c0_i32 = arith.constant 0 : i32
    %c0_i32_0 = arith.constant 0 : i32
    %c0_i32_1 = arith.constant 0 : i32
    %c0_i32_2 = arith.constant 0 : i32
    return %c0_i32, %c0_i32_0, %arg0, %c0_i32_1 : i32, i32, i32, i32
  }
  func.func @transform_1(%arg0: i32) -> (i32, i32, i32) {
    %c0_i32 = arith.constant 0 : i32
    %c0_i32_0 = arith.constant 0 : i32
    %c0_i32_1 = arith.constant 0 : i32
    return %c0_i32, %arg0, %c0_i32_0 : i32, i32, i32
  }
  func.func @transform_2(%arg0: i32) -> (i32, i32, i32) {
    %c0_i32 = arith.constant 0 : i32
    %c0_i32_0 = arith.constant 0 : i32
    %c0_i32_1 = arith.constant 0 : i32
    return %c0_i32, %arg0, %c0_i32_0 : i32, i32, i32
  }
  func.func @transform_3(%arg0: i32) -> (i32, i32, i32) {
    %c0_i32 = arith.constant 0 : i32
    %c0_i32_0 = arith.constant 0 : i32
    %c0_i32_1 = arith.constant 0 : i32
    return %c0_i32, %arg0, %c0_i32_0 : i32, i32, i32
  }
  func.func @transform_4(%arg0: i32) -> (i32, i32) {
    %c0_i32 = arith.constant 0 : i32
    %c0_i32_0 = arith.constant 0 : i32
    return %arg0, %c0_i32 : i32, i32
  }
  func.func @transform_5(%arg0: i32) -> (i32, i32) {
    %c0_i32 = arith.constant 0 : i32
    %c0_i32_0 = arith.constant 0 : i32
    return %arg0, %c0_i32 : i32, i32
  }
}

</mosaic_0001>

<llo_original>
// kernel: tpu_custom_call.1
$region0: #{tpu_custom_call.1}
  #allocation0 [shape = 'u32[]', space=smem, size = 0x4, offset = 0x4, fixed_abs, tag = 'smem constant byte address 0x4 - core index']
  #allocation1 [shape = 'u32[72,128]{1,0:T(1,128)}', space=vmem, size = 0x9000, scoped, tag = 'internal scratch']
  %s0 = inlined_call_operand.hbm [shape: bf16[4,17,4,128], index: 0, kind: input, shape index: {}]
  %s1 = inlined_call_operand.hbm [shape: f32[4,4,128], index: 1, kind: input, shape index: {}]
  %s2 = inlined_call_operand.hbm [shape: f32[4,4,128], index: 2, kind: input, shape index: {}]
  %s3 = inlined_call_operand.hbm [shape: f32[2,4,128], index: 3, kind: input, shape index: {}]
  %s4 = inlined_call_operand.hbm [shape: f32[4,128], index: 4, kind: output, shape index: {0}]
  %s5 = inlined_call_operand.hbm [shape: f32[4,128], index: 5, kind: output, shape index: {1}]
  %6 = xla_tuple %s4, %s5
  %s7 = sld [smem:[#allocation0]]
  $region50: #{tpu_custom_call.1} parent=0
    _
  %s9 = ssub.s32 1, %s7
  %s10 = scalar_select 0, %s9, %s7
  $region1: #{tpu_custom_call.1} parent=0
    #allocation2 [shape = 'u8[69632]{0}', space=vmem, size = 0x11000, scoped, tag = 'input window, operand 0, single buffered']
    #allocation3 [shape = 's32[1]{0}', space=sflag, size = 0x4, scoped, tag = 'scoped memory for tpu_custom_call.1']
    #allocation4 [shape = 's32[1]{0}', space=sflag, size = 0x4, scoped, tag = 'scoped memory for tpu_custom_call.1']
    #allocation5 [shape = 'u8[8192]{0}', space=vmem, size = 0x2000, scoped, tag = 'input window, operand 1, single buffered']
    #allocation6 [shape = 's32[1]{0}', space=sflag, size = 0x4, scoped, tag = 'scoped memory for tpu_custom_call.1']
    #allocation7 [shape = 'u8[8192]{0}', space=vmem, size = 0x2000, scoped, tag = 'input window, operand 2, single buffered']
    #allocation8 [shape = 'u8[4096]{0}', space=vmem, size = 0x1000, scoped, tag = 'input window, operand 3, single buffered']
    #allocation9 [shape = 's32[1]{0}', space=sflag, size = 0x4, scoped, tag = 'scoped memory for tpu_custom_call.1']
    #allocation10 [shape = 'u8[2048]{0}', space=vmem, size = 0x800, scoped, tag = 'output window, operand 0, single buffered']
    #allocation11 [shape = 'u8[2048]{0}', space=vmem, size = 0x800, scoped, tag = 'output window, operand 1, single buffered']
    #allocation12 [shape = 's32[1]{0}', space=sflag, size = 0x4, scoped, tag = 'scoped memory for tpu_custom_call.1']
    %11 = vsyncpa [#allocation3], 0
    %12 = vsyncpa [#allocation6], 0
    %13 = vsyncpa [#allocation9], 0
    %14 = vsyncpa [#allocation4], 0
    %15 = vsyncpa [#allocation12], 0
    // Predicated region
    $region2: #{tpu_custom_call.1} parent=1 // pred_check
      _
    $region3: #{tpu_custom_call.1} parent=1 // pred_check_branch
      %17 = sbr.rel (0) target = $region5
    $region4: #{tpu_custom_call.1} parent=1 // pred_region
      %19 = vsyncadd [#allocation3], 0
      %s20 = sshll.u32 %s0, 4
      %s21 = int_to_ptr.hbm [resolvable:$true] %s20
      %s22 = sshll.u32 [#allocation2], 4
      %s23 = int_to_ptr.vmem [resolvable:$true] %s22
      %28 = dma.hbm_to_vmem [thread:$0]  %s21, 2176, %s23, [#allocation3], 32, 32, 2
    $region5: #{tpu_custom_call.1} parent=1 // pred_fallthru
      _
    // Predicated region
    $region6: #{tpu_custom_call.1} parent=1 // pred_check
      _
    $region7: #{tpu_custom_call.1} parent=1 // pred_check_branch
      %30 = sbr.rel (0) target = $region9
    $region8: #{tpu_custom_call.1} parent=1 // pred_region
      %32 = vsyncadd [#allocation6], 0
      %s33 = sshll.u32 %s1, 4
      %s34 = int_to_ptr.hbm [resolvable:$true] %s33
      %s35 = sshll.u32 [#allocation5], 4
      %s36 = int_to_ptr.vmem [resolvable:$true] %s35
      %41 = dma.hbm_to_vmem [thread:$0]  %s34, 256, %s36, [#allocation6], 64, 64, 4
    $region9: #{tpu_custom_call.1} parent=1 // pred_fallthru
      _
    // Predicated region
    $region10: #{tpu_custom_call.1} parent=1 // pred_check
      _
    $region11: #{tpu_custom_call.1} parent=1 // pred_check_branch
      %43 = sbr.rel (0) target = $region13
    $region12: #{tpu_custom_call.1} parent=1 // pred_region
      %45 = vsyncadd [#allocation6], 0
      %s46 = sshll.u32 %s2, 4
      %s47 = int_to_ptr.hbm [resolvable:$true] %s46
      %s48 = sshll.u32 [#allocation7], 4
      %s49 = int_to_ptr.vmem [resolvable:$true] %s48
      %54 = dma.hbm_to_vmem [thread:$0]  %s47, 256, %s49, [#allocation6], 64, 64, 4
    $region13: #{tpu_custom_call.1} parent=1 // pred_fallthru
      _
    // Predicated region
    $region14: #{tpu_custom_call.1} parent=1 // pred_check
      _
    $region15: #{tpu_custom_call.1} parent=1 // pred_check_branch
      %56 = sbr.rel (0) target = $region17
    $region16: #{tpu_custom_call.1} parent=1 // pred_region
      %58 = vsyncadd [#allocation9], 0
      %s59 = sshll.u32 %s3, 4
      %s60 = int_to_ptr.hbm [resolvable:$true] %s59
      %s61 = sshll.u32 [#allocation8], 4
      %s62 = int_to_ptr.vmem [resolvable:$true] %s61
      %67 = dma.hbm_to_vmem [thread:$0]  %s60, 128, %s62, [#allocation9], 64, 64, 4
    $region17: #{tpu_custom_call.1} parent=1 // pred_fallthru
      _
    // Predicated region
    $region18: #{tpu_custom_call.1} parent=1 // pred_check
      _
    $region19: #{tpu_custom_call.1} parent=1 // pred_check_branch
      %69 = sbr.rel (0) target = $region21
    $region20: #{tpu_custom_call.1} parent=1 // pred_region
      %71 = dma.done [#allocation3], 2176
    $region21: #{tpu_custom_call.1} parent=1 // pred_fallthru
      _
    // Predicated region
    $region22: #{tpu_custom_call.1} parent=1 // pred_check
      _
    $region23: #{tpu_custom_call.1} parent=1 // pred_check_branch
      %73 = sbr.rel (0) target = $region25
    $region24: #{tpu_custom_call.1} parent=1 // pred_region
      %75 = dma.done [#allocation6], 256
    $region25: #{tpu_custom_call.1} parent=1 // pred_fallthru
      _
    // Predicated region
    $region26: #{tpu_custom_call.1} parent=1 // pred_check
      _
    $region27: #{tpu_custom_call.1} parent=1 // pred_check_branch
      %77 = sbr.rel (0) target = $region29
    $region28: #{tpu_custom_call.1} parent=1 // pred_region
      %79 = dma.done [#allocation6], 256
    $region29: #{tpu_custom_call.1} parent=1 // pred_fallthru
      _
    // Predicated region
    $region30: #{tpu_custom_call.1} parent=1 // pred_check
      _
    $region31: #{tpu_custom_call.1} parent=1 // pred_check_branch
      %81 = sbr.rel (0) target = $region33
    $region32: #{tpu_custom_call.1} parent=1 // pred_region
      %83 = dma.done [#allocation9], 128
    $region33: #{tpu_custom_call.1} parent=1 // pred_fallthru
      _
    %v84 = vld [vmem:[#allocation5] sm:$0xf]
    %s85 = scalar_lea.vmem [#allocation5], 4
    %v86 = vld [vmem:[%s85] sm:$0xf]
    %s87 = scalar_lea.vmem [#allocation5], 8
    %v88 = vld [vmem:[%s87] sm:$0xf]
    %s89 = scalar_lea.vmem [#allocation5], 12
    %v90 = vld [vmem:[%s89] sm:$0xf]
    %v91 = vld [vmem:[#allocation7] sm:$0xf]
    %s92 = scalar_lea.vmem [#allocation7], 4
    %v93 = vld [vmem:[%s92] sm:$0xf]
    %s94 = scalar_lea.vmem [#allocation7], 8
    %v95 = vld [vmem:[%s94] sm:$0xf]
    %s96 = scalar_lea.vmem [#allocation7], 12
    %v97 = vld [vmem:[%s96] sm:$0xf]
    %v98 = vsub.f32 %v88, %v84
    %v99 = vsub.f32 %v90, %v86
    %v100 = vadd.f32 %v99, 1e-07
    %v101 = vsub.f32 %v95, %v91
    %v102 = vsub.f32 %v97, %v93
    %v103 = vadd.f32 %v102, 1e-07
    %v104 = vmin.f32 %v88, %v95
    %v105 = vmax.f32 %v84, %v91
    %v106 = vsub.f32 %v104, %v105
    %v107 = vmax.f32 %v106, 0.0
    %v108 = vmin.f32 %v90, %v97
    %v109 = vmax.f32 %v86, %v93
    %v110 = vsub.f32 %v108, %v109
    %v111 = vmax.f32 %v110, 0.0
    %v112 = vmul.f32 %v107, %v111
    %v113 = vmul.f32 %v98, %v100
    %v114 = vmul.f32 %v101, %v103
    %v115 = vadd.f32 %v113, %v114
    %v116 = vsub.f32 %v115, %v112
    %v117 = vadd.f32 %v116, 1e-07
    %v118 = vrcp.pop %v117
    %v119 = vmul.f32 %v112, %v118
    %v120 = vmax.f32 %v88, %v95
    %v121 = vmin.f32 %v84, %v91
    %v122 = vsub.f32 %v120, %v121
    %v123 = vmax.f32 %v90, %v97
    %v124 = vmin.f32 %v86, %v93
    %v125 = vsub.f32 %v123, %v124
    %v126 = vmul.f32 %v122, %v122
    %v127 = vmul.f32 %v125, %v125
    %v128 = vadd.f32 %v126, %v127
    %v129 = vadd.f32 %v128, 1e-07
    %v130 = vadd.f32 %v91, %v95
    %v131 = vsub.f32 %v130, %v84
    %v132 = vsub.f32 %v131, %v88
    %v133 = vmul.f32 %v132, %v132
    %v134 = vadd.f32 %v93, %v97
    %v135 = vsub.f32 %v134, %v86
    %v136 = vsub.f32 %v135, %v90
    %v137 = vmul.f32 %v136, %v136
    %v138 = vadd.f32 %v133, %v137
    %v139 = vmul.f32 %v138, 0.25
    %v140 = vrcp.pop %v103
    %v141 = vmul.f32 %v101, %v140
    %vm142 = vcmp.lt.f32.partialorder %v141, 0.0
    %v143 = vsel %vm142, -1.0, 1.0
    %v144 = vand.u32 2147483647, %v141
    %vm145 = vcmp.gt.f32.partialorder %v144, 2.4142137
    %vm146 = vcmp.gt.f32.partialorder %v144, 0.41421357
    %vm147 = vmxor %vm145, 1
    %vm148 = vmand %vm146, %vm147
    %v149 = vmax.f32 %v144, 1e-30
    %v150 = vrcp.pop %v149
    %v151 = vmul.f32 %v149, %v150
    %v152 = vsub.f32 1.0, %v151
    %v153 = vmul.f32 %v150, %v152
    %v154 = vadd.f32 %v150, %v153
    %vm155 = vweird.f32 %v149
    %vm156 = vweird.f32 %v150
    %vm157 = vmor %vm155, %vm156
    %v158 = vsel %vm157, %v150, %v154
    %v159 = vand.u32 2147483647, %v149
    %vm160 = vcmp.eq.f32.partialorder %v159, 8.507059e+37
    %v161 = vand.u32 %v149, 2147483648
    %v162 = vor.u32 1.1754944e-38, %v161
    %v163 = vsel %vm160, %v162, %v158
    %v164 = vmul.f32 -1.0, %v163
    %v165 = vsub.f32 %v144, 1.0
    %v166 = vadd.f32 %v144, 1.0
    %v167 = vrcp.pop %v166
    %v168 = vmul.f32 %v166, %v167
    %v169 = vsub.f32 1.0, %v168
    %v170 = vmul.f32 %v167, %v169
    %v171 = vadd.f32 %v167, %v170
    %vm172 = vweird.f32 %v166
    %vm173 = vweird.f32 %v167
    %vm174 = vmor %vm172, %vm173
    %v175 = vsel %vm174, %v167, %v171
    %v176 = vand.u32 2147483647, %v166
    %vm177 = vcmp.eq.f32.partialorder %v176, 8.507059e+37
    %v178 = vand.u32 %v166, 2147483648
    %v179 = vor.u32 1.1754944e-38, %v178
    %v180 = vsel %vm177, %v179, %v175
    %v181 = vmul.f32 %v165, %v180
    %v182 = vsel %vm148, %v181, %v144
    %v183 = vsel %vm145, %v164, %v182
    %v184 = vsel %vm148, 0.7853982, 0.0
    %v185 = vsel %vm145, 1.5707964, %v184
    %v186 = vmul.f32 %v183, %v183
    %v187 = vmul.f32 %v186, 0.080537446
    %v188 = vsub.f32 %v187, 0.13877685
    %v189 = vmul.f32 %v188, %v186
    %v190 = vadd.f32 %v189, 0.19977711
    %v191 = vmul.f32 %v190, %v186
    %v192 = vsub.f32 %v191, 0.3333295
    %v193 = vmul.f32 %v192, %v186
    %v194 = vmul.f32 %v193, %v183
    %v195 = vadd.f32 %v194, %v183
    %v196 = vadd.f32 %v185, %v195
    %v197 = vmul.f32 %v143, %v196
    %v198 = vrcp.pop %v100
    %v199 = vmul.f32 %v98, %v198
    %vm200 = vcmp.lt.f32.partialorder %v199, 0.0
    %v201 = vsel %vm200, -1.0, 1.0
    %v202 = vand.u32 2147483647, %v199
    %vm203 = vcmp.gt.f32.partialorder %v202, 2.4142137
    %vm204 = vcmp.gt.f32.partialorder %v202, 0.41421357
    %vm205 = vmxor %vm203, 1
    %vm206 = vmand %vm204, %vm205
    %v207 = vmax.f32 %v202, 1e-30
    %v208 = vrcp.pop %v207
    %v209 = vmul.f32 %v207, %v208
    %v210 = vsub.f32 1.0, %v209
    %v211 = vmul.f32 %v208, %v210
    %v212 = vadd.f32 %v208, %v211
    %vm213 = vweird.f32 %v207
    %vm214 = vweird.f32 %v208
    %vm215 = vmor %vm213, %vm214
    %v216 = vsel %vm215, %v208, %v212
    %v217 = vand.u32 2147483647, %v207
    %vm218 = vcmp.eq.f32.partialorder %v217, 8.507059e+37
    %v219 = vand.u32 %v207, 2147483648
    %v220 = vor.u32 1.1754944e-38, %v219
    %v221 = vsel %vm218, %v220, %v216
    %v222 = vmul.f32 -1.0, %v221
    %v223 = vsub.f32 %v202, 1.0
    %v224 = vadd.f32 %v202, 1.0
    %v225 = vrcp.pop %v224
    %v226 = vmul.f32 %v224, %v225
    %v227 = vsub.f32 1.0, %v226
    %v228 = vmul.f32 %v225, %v227
    %v229 = vadd.f32 %v225, %v228
    %vm230 = vweird.f32 %v224
    %vm231 = vweird.f32 %v225
    %vm232 = vmor %vm230, %vm231
    %v233 = vsel %vm232, %v225, %v229
    %v234 = vand.u32 2147483647, %v224
    %vm235 = vcmp.eq.f32.partialorder %v234, 8.507059e+37
    %v236 = vand.u32 %v224, 2147483648
    %v237 = vor.u32 1.1754944e-38, %v236
    %v238 = vsel %vm235, %v237, %v233
    %v239 = vmul.f32 %v223, %v238
    %v240 = vsel %vm206, %v239, %v202
    %v241 = vsel %vm203, %v222, %v240
    %v242 = vsel %vm206, 0.7853982, 0.0
    %v243 = vsel %vm203, 1.5707964, %v242
    %v244 = vmul.f32 %v241, %v241
    %v245 = vmul.f32 %v244, 0.080537446
    %v246 = vsub.f32 %v245, 0.13877685
    %v247 = vmul.f32 %v246, %v244
    %v248 = vadd.f32 %v247, 0.19977711
    %v249 = vmul.f32 %v248, %v244
    %v250 = vsub.f32 %v249, 0.3333295
    %v251 = vmul.f32 %v250, %v244
    %v252 = vmul.f32 %v251, %v241
    %v253 = vadd.f32 %v252, %v241
    %v254 = vadd.f32 %v243, %v253
    %v255 = vmul.f32 %v201, %v254
    %v256 = vsub.f32 %v197, %v255
    %v257 = vmul.f32 %v256, %v256
    %v258 = vmul.f32 %v257, 0.40528473
    %v259 = vsub.f32 %v258, %v119
    %v260 = vadd.f32 %v259, 1.0000001
    %v261 = vrcp.pop %v260
    %v262 = vmul.f32 %v258, %v261
    %v263 = vrcp.pop %v129
    %v264 = vmul.f32 %v139, %v263
    %v265 = vmul.f32 %v258, %v262
    %v266 = vadd.f32 %v264, %v265
    %v267 = vsub.f32 %v119, %v266
    %268 = vst [vmem:[#allocation10] sm:$0xf] %v267
    %v269 = vld [vmem:[#allocation8] sm:$0xf]
    %s270 = scalar_lea.vmem [#allocation8], 4
    %v271 = vld [vmem:[%s270] sm:$0xf]
    %v272 = vsub.f32 %v269, %v91
    %v273 = vmax.f32 %v272, 0.0
    %v274 = vmin.f32 %v273, 15.99
    %v275 = vld [vmem:[#allocation2] sm:$0x3]
    %v276 = vunpack.c.l.bf16 %v275
    %s277 = scalar_lea.vmem [#allocation2], 2
    %v278 = vld [vmem:[%s277] sm:$0x3]
    %v279 = vunpack.c.l.bf16 %v278
    %v280 = vmax.f32 %v276, %v279
    %s281 = scalar_lea.vmem [#allocation2], 4
    %v282 = vld [vmem:[%s281] sm:$0x3]
    %v283 = vunpack.c.l.bf16 %v282
    %v284 = vmax.f32 %v280, %v283
    %s285 = scalar_lea.vmem [#allocation2], 6
    %v286 = vld [vmem:[%s285] sm:$0x3]
    %v287 = vunpack.c.l.bf16 %v286
    %v288 = vmax.f32 %v284, %v287
    %s289 = scalar_lea.vmem [#allocation2], 8
    %v290 = vld [vmem:[%s289] sm:$0x3]
    %v291 = vunpack.c.l.bf16 %v290
    %v292 = vmax.f32 %v288, %v291
    %s293 = scalar_lea.vmem [#allocation2], 10
    %v294 = vld [vmem:[%s293] sm:$0x3]
    %v295 = vunpack.c.l.bf16 %v294
    %v296 = vmax.f32 %v292, %v295
    %s297 = scalar_lea.vmem [#allocation2], 12
    %v298 = vld [vmem:[%s297] sm:$0x3]
    %v299 = vunpack.c.l.bf16 %v298
    %v300 = vmax.f32 %v296, %v299
    %s301 = scalar_lea.vmem [#allocation2], 14
    %v302 = vld [vmem:[%s301] sm:$0x3]
    %v303 = vunpack.c.l.bf16 %v302
    %v304 = vmax.f32 %v300, %v303
    %s305 = scalar_lea.vmem [#allocation2], 16
    %v306 = vld [vmem:[%s305] sm:$0x3]
    %v307 = vunpack.c.l.bf16 %v306
    %v308 = vmax.f32 %v304, %v307
    %s309 = scalar_lea.vmem [#allocation2], 18
    %v310 = vld [vmem:[%s309] sm:$0x3]
    %v311 = vunpack.c.l.bf16 %v310
    %v312 = vmax.f32 %v308, %v311
    %s313 = scalar_lea.vmem [#allocation2], 20
    %v314 = vld [vmem:[%s313] sm:$0x3]
    %v315 = vunpack.c.l.bf16 %v314
    %v316 = vmax.f32 %v312, %v315
    %s317 = scalar_lea.vmem [#allocation2], 22
    %v318 = vld [vmem:[%s317] sm:$0x3]
    %v319 = vunpack.c.l.bf16 %v318
    %v320 = vmax.f32 %v316, %v319
    %s321 = scalar_lea.vmem [#allocation2], 24
    %v322 = vld [vmem:[%s321] sm:$0x3]
    %v323 = vunpack.c.l.bf16 %v322
    %v324 = vmax.f32 %v320, %v323
    %s325 = scalar_lea.vmem [#allocation2], 26
    %v326 = vld [vmem:[%s325] sm:$0x3]
    %v327 = vunpack.c.l.bf16 %v326
    %v328 = vmax.f32 %v324, %v327
    %s329 = scalar_lea.vmem [#allocation2], 28
    %v330 = vld [vmem:[%s329] sm:$0x3]
    %v331 = vunpack.c.l.bf16 %v330
    %v332 = vmax.f32 %v328, %v331
    %s333 = scalar_lea.vmem [#allocation2], 30
    %v334 = vld [vmem:[%s333] sm:$0x3]
    %v335 = vunpack.c.l.bf16 %v334
    %v336 = vmax.f32 %v332, %v335
    %s337 = scalar_lea.vmem [#allocation2], 32
    %v338 = vld [vmem:[%s337] sm:$0x3]
    %v339 = vunpack.c.l.bf16 %v338
    %v340 = vmax.f32 %v336, %v339
    %v341 = vsub.f32 %v276, %v340
    %v342 = vmul.f32 %v341, 1.442695
    %v343 = vpow.pop %v342
    %v344 = vadd.f32 %v343, 0.0
    %v345 = vand.u32 2147483647, %v274
    %v346 = vsub.f32 1.0, %v345
    %v347 = vmax.f32 %v346, 0.0
    %v348 = vmul.f32 %v347, %v276
    %v349 = vadd.f32 %v348, 0.0
    %v350 = vsub.f32 %v279, %v340
    %v351 = vmul.f32 %v350, 1.442695
    %v352 = vpow.pop %v351
    %v353 = vadd.f32 %v344, %v352
    %v354 = vsub.f32 %v274, 1.0
    %v355 = vand.u32 2147483647, %v354
    %v356 = vsub.f32 1.0, %v355
    %v357 = vmax.f32 %v356, 0.0
    %v358 = vmul.f32 %v357, %v279
    %v359 = vadd.f32 %v349, %v358
    %v360 = vsub.f32 %v283, %v340
    %v361 = vmul.f32 %v360, 1.442695
    %v362 = vpow.pop %v361
    %v363 = vadd.f32 %v353, %v362
    %v364 = vsub.f32 %v274, 2.0
    %v365 = vand.u32 2147483647, %v364
    %v366 = vsub.f32 1.0, %v365
    %v367 = vmax.f32 %v366, 0.0
    %v368 = vmul.f32 %v367, %v283
    %v369 = vadd.f32 %v359, %v368
    %v370 = vsub.f32 %v287, %v340
    %v371 = vmul.f32 %v370, 1.442695
    %v372 = vpow.pop %v371
    %v373 = vadd.f32 %v363, %v372
    %v374 = vsub.f32 %v274, 3.0
    %v375 = vand.u32 2147483647, %v374
    %v376 = vsub.f32 1.0, %v375
    %v377 = vmax.f32 %v376, 0.0
    %v378 = vmul.f32 %v377, %v287
    %v379 = vadd.f32 %v369, %v378
    %v380 = vsub.f32 %v291, %v340
    %v381 = vmul.f32 %v380, 1.442695
    %v382 = vpow.pop %v381
    %v383 = vadd.f32 %v373, %v382
    %v384 = vsub.f32 %v274, 4.0
    %v385 = vand.u32 2147483647, %v384
    %v386 = vsub.f32 1.0, %v385
    %v387 = vmax.f32 %v386, 0.0
    %v388 = vmul.f32 %v387, %v291
    %v389 = vadd.f32 %v379, %v388
    %v390 = vsub.f32 %v295, %v340
    %v391 = vmul.f32 %v390, 1.442695
    %v392 = vpow.pop %v391
    %v393 = vadd.f32 %v383, %v392
    %v394 = vsub.f32 %v274, 5.0
    %v395 = vand.u32 2147483647, %v394
    %v396 = vsub.f32 1.0, %v395
    %v397 = vmax.f32 %v396, 0.0
    %v398 = vmul.f32 %v397, %v295
    %v399 = vadd.f32 %v389, %v398
    %v400 = vsub.f32 %v299, %v340
    %v401 = vmul.f32 %v400, 1.442695
    %v402 = vpow.pop %v401
    %v403 = vadd.f32 %v393, %v402
    %v404 = vsub.f32 %v274, 6.0
    %v405 = vand.u32 2147483647, %v404
    %v406 = vsub.f32 1.0, %v405
    %v407 = vmax.f32 %v406, 0.0
    %v408 = vmul.f32 %v407, %v299
    %v409 = vadd.f32 %v399, %v408
    %v410 = vsub.f32 %v303, %v340
    %v411 = vmul.f32 %v410, 1.442695
    %v412 = vpow.pop %v411
    %v413 = vadd.f32 %v403, %v412
    %v414 = vsub.f32 %v274, 7.0
    %v415 = vand.u32 2147483647, %v414
    %v416 = vsub.f32 1.0, %v415
    %v417 = vmax.f32 %v416, 0.0
    %v418 = vmul.f32 %v417, %v303
    %v419 = vadd.f32 %v409, %v418
    %v420 = vsub.f32 %v307, %v340
    %v421 = vmul.f32 %v420, 1.442695
    %v422 = vpow.pop %v421
    %v423 = vadd.f32 %v413, %v422
    %v424 = vsub.f32 %v274, 8.0
    %v425 = vand.u32 2147483647, %v424
    %v426 = vsub.f32 1.0, %v425
    %v427 = vmax.f32 %v426, 0.0
    %v428 = vmul.f32 %v427, %v307
    %v429 = vadd.f32 %v419, %v428
    %v430 = vsub.f32 %v311, %v340
    %v431 = vmul.f32 %v430, 1.442695
    %v432 = vpow.pop %v431
    %v433 = vadd.f32 %v423, %v432
    %v434 = vsub.f32 %v274, 9.0
    %v435 = vand.u32 2147483647, %v434
    %v436 = vsub.f32 1.0, %v435
    %v437 = vmax.f32 %v436, 0.0
    %v438 = vmul.f32 %v437, %v311
    %v439 = vadd.f32 %v429, %v438
    %v440 = vsub.f32 %v315, %v340
    %v441 = vmul.f32 %v440, 1.442695
    %v442 = vpow.pop %v441
    %v443 = vadd.f32 %v433, %v442
    %v444 = vsub.f32 %v274, 10.0
    %v445 = vand.u32 2147483647, %v444
    %v446 = vsub.f32 1.0, %v445
    %v447 = vmax.f32 %v446, 0.0
    %v448 = vmul.f32 %v447, %v315
    %v449 = vadd.f32 %v439, %v448
    %v450 = vsub.f32 %v319, %v340
    %v451 = vmul.f32 %v450, 1.442695
    %v452 = vpow.pop %v451
    %v453 = vadd.f32 %v443, %v452
    %v454 = vsub.f32 %v274, 11.0
    %v455 = vand.u32 2147483647, %v454
    %v456 = vsub.f32 1.0, %v455
    %v457 = vmax.f32 %v456, 0.0
    %v458 = vmul.f32 %v457, %v319
    %v459 = vadd.f32 %v449, %v458
    %v460 = vsub.f32 %v323, %v340
    %v461 = vmul.f32 %v460, 1.442695
    %v462 = vpow.pop %v461
    %v463 = vadd.f32 %v453, %v462
    %v464 = vsub.f32 %v274, 12.0
    %v465 = vand.u32 2147483647, %v464
    %v466 = vsub.f32 1.0, %v465
    %v467 = vmax.f32 %v466, 0.0
    %v468 = vmul.f32 %v467, %v323
    %v469 = vadd.f32 %v459, %v468
    %v470 = vsub.f32 %v327, %v340
    %v471 = vmul.f32 %v470, 1.442695
    %v472 = vpow.pop %v471
    %v473 = vadd.f32 %v463, %v472
    %v474 = vsub.f32 %v274, 13.0
    %v475 = vand.u32 2147483647, %v474
    %v476 = vsub.f32 1.0, %v475
    %v477 = vmax.f32 %v476, 0.0
    %v478 = vmul.f32 %v477, %v327
    %v479 = vadd.f32 %v469, %v478
    %v480 = vsub.f32 %v331, %v340
    %v481 = vmul.f32 %v480, 1.442695
    %v482 = vpow.pop %v481
    %v483 = vadd.f32 %v473, %v482
    %v484 = vsub.f32 %v274, 14.0
    %v485 = vand.u32 2147483647, %v484
    %v486 = vsub.f32 1.0, %v485
    %v487 = vmax.f32 %v486, 0.0
    %v488 = vmul.f32 %v487, %v331
    %v489 = vadd.f32 %v479, %v488
    %v490 = vsub.f32 %v335, %v340
    %v491 = vmul.f32 %v490, 1.442695
    %v492 = vpow.pop %v491
    %v493 = vadd.f32 %v483, %v492
    %v494 = vsub.f32 %v274, 15.0
    %v495 = vand.u32 2147483647, %v494
    %v496 = vsub.f32 1.0, %v495
    %v497 = vmax.f32 %v496, 0.0
    %v498 = vmul.f32 %v497, %v335
    %v499 = vadd.f32 %v489, %v498
    %v500 = vsub.f32 %v339, %v340
    %v501 = vmul.f32 %v500, 1.442695
    %v502 = vpow.pop %v501
    %v503 = vadd.f32 %v493, %v502
    %v504 = vsub.f32 %v274, 16.0
    %v505 = vand.u32 2147483647, %v504
    %v506 = vsub.f32 1.0, %v505
    %v507 = vmax.f32 %v506, 0.0
    %v508 = vmul.f32 %v507, %v339
    %v509 = vadd.f32 %v499, %v508
    %v510 = vlog2.pop %v503
    %v511 = vmul.f32 %v510, 0.6931472
    %v512 = vadd.f32 %v340, %v511
    %v513 = vsub.f32 %v512, %v509
    %v514 = vadd.f32 %v513, 0.0
    %v515 = vsub.f32 %v271, %v93
    %v516 = vmax.f32 %v515, 0.0
    %v517 = vmin.f32 %v516, 15.99
    %s518 = scalar_lea.vmem [#allocation2], 34
    %v519 = vld [vmem:[%s518] sm:$0x3]
    %v520 = vunpack.c.l.bf16 %v519
    %s521 = scalar_lea.vmem [#allocation2], 36
    %v522 = vld [vmem:[%s521] sm:$0x3]
    %v523 = vunpack.c.l.bf16 %v522
    %v524 = vmax.f32 %v520, %v523
    %s525 = scalar_lea.vmem [#allocation2], 38
    %v526 = vld [vmem:[%s525] sm:$0x3]
    %v527 = vunpack.c.l.bf16 %v526
    %v528 = vmax.f32 %v524, %v527
    %s529 = scalar_lea.vmem [#allocation2], 40
    %v530 = vld [vmem:[%s529] sm:$0x3]
    %v531 = vunpack.c.l.bf16 %v530
    %v532 = vmax.f32 %v528, %v531
    %s533 = scalar_lea.vmem [#allocation2], 42
    %v534 = vld [vmem:[%s533] sm:$0x3]
    %v535 = vunpack.c.l.bf16 %v534
    %v536 = vmax.f32 %v532, %v535
    %s537 = scalar_lea.vmem [#allocation2], 44
    %v538 = vld [vmem:[%s537] sm:$0x3]
    %v539 = vunpack.c.l.bf16 %v538
    %v540 = vmax.f32 %v536, %v539
    %s541 = scalar_lea.vmem [#allocation2], 46
    %v542 = vld [vmem:[%s541] sm:$0x3]
    %v543 = vunpack.c.l.bf16 %v542
    %v544 = vmax.f32 %v540, %v543
    %s545 = scalar_lea.vmem [#allocation2], 48
    %v546 = vld [vmem:[%s545] sm:$0x3]
    %v547 = vunpack.c.l.bf16 %v546
    %v548 = vmax.f32 %v544, %v547
    %s549 = scalar_lea.vmem [#allocation2], 50
    %v550 = vld [vmem:[%s549] sm:$0x3]
    %v551 = vunpack.c.l.bf16 %v550
    %v552 = vmax.f32 %v548, %v551
    %s553 = scalar_lea.vmem [#allocation2], 52
    %v554 = vld [vmem:[%s553] sm:$0x3]
    %v555 = vunpack.c.l.bf16 %v554
    %v556 = vmax.f32 %v552, %v555
    %s557 = scalar_lea.vmem [#allocation2], 54
    %v558 = vld [vmem:[%s557] sm:$0x3]
    %v559 = vunpack.c.l.bf16 %v558
    %v560 = vmax.f32 %v556, %v559
    %s561 = scalar_lea.vmem [#allocation2], 56
    %v562 = vld [vmem:[%s561] sm:$0x3]
    %v563 = vunpack.c.l.bf16 %v562
    %v564 = vmax.f32 %v560, %v563
    %s565 = scalar_lea.vmem [#allocation2], 58
    %v566 = vld [vmem:[%s565] sm:$0x3]
    %v567 = vunpack.c.l.bf16 %v566
    %v568 = vmax.f32 %v564, %v567
    %s569 = scalar_lea.vmem [#allocation2], 60
    %v570 = vld [vmem:[%s569] sm:$0x3]
    %v571 = vunpack.c.l.bf16 %v570
    %v572 = vmax.f32 %v568, %v571
    %s573 = scalar_lea.vmem [#allocation2], 62
    %v574 = vld [vmem:[%s573] sm:$0x3]
    %v575 = vunpack.c.l.bf16 %v574
    %v576 = vmax.f32 %v572, %v575
    %s577 = scalar_lea.vmem [#allocation2], 64
    %v578 = vld [vmem:[%s577] sm:$0x3]
    %v579 = vunpack.c.l.bf16 %v578
    %v580 = vmax.f32 %v576, %v579
    %s581 = scalar_lea.vmem [#allocation2], 66
    %v582 = vld [vmem:[%s581] sm:$0x3]
    %v583 = vunpack.c.l.bf16 %v582
    %v584 = vmax.f32 %v580, %v583
    %v585 = vsub.f32 %v520, %v584
    %v586 = vmul.f32 %v585, 1.442695
    %v587 = vpow.pop %v586
    %v588 = vadd.f32 %v587, 0.0
    %v589 = vand.u32 2147483647, %v517
    %v590 = vsub.f32 1.0, %v589
    %v591 = vmax.f32 %v590, 0.0
    %v592 = vmul.f32 %v591, %v520
    %v593 = vadd.f32 %v592, 0.0
    %v594 = vsub.f32 %v523, %v584
    %v595 = vmul.f32 %v594, 1.442695
    %v596 = vpow.pop %v595
    %v597 = vadd.f32 %v588, %v596
    %v598 = vsub.f32 %v517, 1.0
    %v599 = vand.u32 2147483647, %v598
    %v600 = vsub.f32 1.0, %v599
    %v601 = vmax.f32 %v600, 0.0
    %v602 = vmul.f32 %v601, %v523
    %v603 = vadd.f32 %v593, %v602
    %v604 = vsub.f32 %v527, %v584
    %v605 = vmul.f32 %v604, 1.442695
    %v606 = vpow.pop %v605
    %v607 = vadd.f32 %v597, %v606
    %v608 = vsub.f32 %v517, 2.0
    %v609 = vand.u32 2147483647, %v608
    %v610 = vsub.f32 1.0, %v609
    %v611 = vmax.f32 %v610, 0.0
    %v612 = vmul.f32 %v611, %v527
    %v613 = vadd.f32 %v603, %v612
    %v614 = vsub.f32 %v531, %v584
    %v615 = vmul.f32 %v614, 1.442695
    %v616 = vpow.pop %v615
    %v617 = vadd.f32 %v607, %v616
    %v618 = vsub.f32 %v517, 3.0
    %v619 = vand.u32 2147483647, %v618
    %v620 = vsub.f32 1.0, %v619
    %v621 = vmax.f32 %v620, 0.0
    %v622 = vmul.f32 %v621, %v531
    %v623 = vadd.f32 %v613, %v622
    %v624 = vsub.f32 %v535, %v584
    %v625 = vmul.f32 %v624, 1.442695
    %v626 = vpow.pop %v625
    %v627 = vadd.f32 %v617, %v626
    %v628 = vsub.f32 %v517, 4.0
    %v629 = vand.u32 2147483647, %v628
    %v630 = vsub.f32 1.0, %v629
    %v631 = vmax.f32 %v630, 0.0
    %v632 = vmul.f32 %v631, %v535
    %v633 = vadd.f32 %v623, %v632
    %v634 = vsub.f32 %v539, %v584
    %v635 = vmul.f32 %v634, 1.442695
    %v636 = vpow.pop %v635
    %v637 = vadd.f32 %v627, %v636
    %v638 = vsub.f32 %v517, 5.0
    %v639 = vand.u32 2147483647, %v638
    %v640 = vsub.f32 1.0, %v639
    %v641 = vmax.f32 %v640, 0.0
    %v642 = vmul.f32 %v641, %v539
    %v643 = vadd.f32 %v633, %v642
    %v644 = vsub.f32 %v543, %v584
    %v645 = vmul.f32 %v644, 1.442695
    %v646 = vpow.pop %v645
    %v647 = vadd.f32 %v637, %v646
    %v648 = vsub.f32 %v517, 6.0
    %v649 = vand.u32 2147483647, %v648
    %v650 = vsub.f32 1.0, %v649
    %v651 = vmax.f32 %v650, 0.0
    %v652 = vmul.f32 %v651, %v543
    %v653 = vadd.f32 %v643, %v652
    %v654 = vsub.f32 %v547, %v584
    %v655 = vmul.f32 %v654, 1.442695
    %v656 = vpow.pop %v655
    %v657 = vadd.f32 %v647, %v656
    %v658 = vsub.f32 %v517, 7.0
    %v659 = vand.u32 2147483647, %v658
    %v660 = vsub.f32 1.0, %v659
    %v661 = vmax.f32 %v660, 0.0
    %v662 = vmul.f32 %v661, %v547
    %v663 = vadd.f32 %v653, %v662
    %v664 = vsub.f32 %v551, %v584
    %v665 = vmul.f32 %v664, 1.442695
    %v666 = vpow.pop %v665
    %v667 = vadd.f32 %v657, %v666
    %v668 = vsub.f32 %v517, 8.0
    %v669 = vand.u32 2147483647, %v668
    %v670 = vsub.f32 1.0, %v669
    %v671 = vmax.f32 %v670, 0.0
    %v672 = vmul.f32 %v671, %v551
    %v673 = vadd.f32 %v663, %v672
    %v674 = vsub.f32 %v555, %v584
    %v675 = vmul.f32 %v674, 1.442695
    %v676 = vpow.pop %v675
    %v677 = vadd.f32 %v667, %v676
    %v678 = vsub.f32 %v517, 9.0
    %v679 = vand.u32 2147483647, %v678
    %v680 = vsub.f32 1.0, %v679
    %v681 = vmax.f32 %v680, 0.0
    %v682 = vmul.f32 %v681, %v555
    %v683 = vadd.f32 %v673, %v682
    %v684 = vsub.f32 %v559, %v584
    %v685 = vmul.f32 %v684, 1.442695
    %v686 = vpow.pop %v685
    %v687 = vadd.f32 %v677, %v686
    %v688 = vsub.f32 %v517, 10.0
    %v689 = vand.u32 2147483647, %v688
    %v690 = vsub.f32 1.0, %v689
    %v691 = vmax.f32 %v690, 0.0
    %v692 = vmul.f32 %v691, %v559
    %v693 = vadd.f32 %v683, %v692
    %v694 = vsub.f32 %v563, %v584
    %v695 = vmul.f32 %v694, 1.442695
    %v696 = vpow.pop %v695
    %v697 = vadd.f32 %v687, %v696
    %v698 = vsub.f32 %v517, 11.0
    %v699 = vand.u32 2147483647, %v698
    %v700 = vsub.f32 1.0, %v699
    %v701 = vmax.f32 %v700, 0.0
    %v702 = vmul.f32 %v701, %v563
    %v703 = vadd.f32 %v693, %v702
    %v704 = vsub.f32 %v567, %v584
    %v705 = vmul.f32 %v704, 1.442695
    %v706 = vpow.pop %v705
    %v707 = vadd.f32 %v697, %v706
    %v708 = vsub.f32 %v517, 12.0
    %v709 = vand.u32 2147483647, %v708
    %v710 = vsub.f32 1.0, %v709
    %v711 = vmax.f32 %v710, 0.0
    %v712 = vmul.f32 %v711, %v567
    %v713 = vadd.f32 %v703, %v712
    %v714 = vsub.f32 %v571, %v584
    %v715 = vmul.f32 %v714, 1.442695
    %v716 = vpow.pop %v715
    %v717 = vadd.f32 %v707, %v716
    %v718 = vsub.f32 %v517, 13.0
    %v719 = vand.u32 2147483647, %v718
    %v720 = vsub.f32 1.0, %v719
    %v721 = vmax.f32 %v720, 0.0
    %v722 = vmul.f32 %v721, %v571
    %v723 = vadd.f32 %v713, %v722
    %v724 = vsub.f32 %v575, %v584
    %v725 = vmul.f32 %v724, 1.442695
    %v726 = vpow.pop %v725
    %v727 = vadd.f32 %v717, %v726
    %v728 = vsub.f32 %v517, 14.0
    %v729 = vand.u32 2147483647, %v728
    %v730 = vsub.f32 1.0, %v729
    %v731 = vmax.f32 %v730, 0.0
    %v732 = vmul.f32 %v731, %v575
    %v733 = vadd.f32 %v723, %v732
    %v734 = vsub.f32 %v579, %v584
    %v735 = vmul.f32 %v734, 1.442695
    %v736 = vpow.pop %v735
    %v737 = vadd.f32 %v727, %v736
    %v738 = vsub.f32 %v517, 15.0
    %v739 = vand.u32 2147483647, %v738
    %v740 = vsub.f32 1.0, %v739
    %v741 = vmax.f32 %v740, 0.0
    %v742 = vmul.f32 %v741, %v579
    %v743 = vadd.f32 %v733, %v742
    %v744 = vsub.f32 %v583, %v584
    %v745 = vmul.f32 %v744, 1.442695
    %v746 = vpow.pop %v745
    %v747 = vadd.f32 %v737, %v746
    %v748 = vsub.f32 %v517, 16.0
    %v749 = vand.u32 2147483647, %v748
    %v750 = vsub.f32 1.0, %v749
    %v751 = vmax.f32 %v750, 0.0
    %v752 = vmul.f32 %v751, %v583
    %v753 = vadd.f32 %v743, %v752
    %v754 = vlog2.pop %v747
    %v755 = vmul.f32 %v754, 0.6931472
    %v756 = vadd.f32 %v584, %v755
    %v757 = vsub.f32 %v756, %v753
    %v758 = vadd.f32 %v514, %v757
    %v759 = vsub.f32 %v95, %v269
    %v760 = vmax.f32 %v759, 0.0
    %v761 = vmin.f32 %v760, 15.99
    %s762 = scalar_lea.vmem [#allocation2], 68
    %v763 = vld [vmem:[%s762] sm:$0x3]
    %v764 = vunpack.c.l.bf16 %v763
    %s765 = scalar_lea.vmem [#allocation2], 70
    %v766 = vld [vmem:[%s765] sm:$0x3]
    %v767 = vunpack.c.l.bf16 %v766
    %v768 = vmax.f32 %v764, %v767
    %s769 = scalar_lea.vmem [#allocation2], 72
    %v770 = vld [vmem:[%s769] sm:$0x3]
    %v771 = vunpack.c.l.bf16 %v770
    %v772 = vmax.f32 %v768, %v771
    %s773 = scalar_lea.vmem [#allocation2], 74
    %v774 = vld [vmem:[%s773] sm:$0x3]
    %v775 = vunpack.c.l.bf16 %v774
    %v776 = vmax.f32 %v772, %v775
    %s777 = scalar_lea.vmem [#allocation2], 76
    %v778 = vld [vmem:[%s777] sm:$0x3]
    %v779 = vunpack.c.l.bf16 %v778
    %v780 = vmax.f32 %v776, %v779
    %s781 = scalar_lea.vmem [#allocation2], 78
    %v782 = vld [vmem:[%s781] sm:$0x3]
    %v783 = vunpack.c.l.bf16 %v782
    %v784 = vmax.f32 %v780, %v783
    %s785 = scalar_lea.vmem [#allocation2], 80
    %v786 = vld [vmem:[%s785] sm:$0x3]
    %v787 = vunpack.c.l.bf16 %v786
    %v788 = vmax.f32 %v784, %v787
    %s789 = scalar_lea.vmem [#allocation2], 82
    %v790 = vld [vmem:[%s789] sm:$0x3]
    %v791 = vunpack.c.l.bf16 %v790
    %v792 = vmax.f32 %v788, %v791
    %s793 = scalar_lea.vmem [#allocation2], 84
    %v794 = vld [vmem:[%s793] sm:$0x3]
    %v795 = vunpack.c.l.bf16 %v794
    %v796 = vmax.f32 %v792, %v795
    %s797 = scalar_lea.vmem [#allocation2], 86
    %v798 = vld [vmem:[%s797] sm:$0x3]
    %v799 = vunpack.c.l.bf16 %v798
    %v800 = vmax.f32 %v796, %v799
    %s801 = scalar_lea.vmem [#allocation2], 88
    %v802 = vld [vmem:[%s801] sm:$0x3]
    %v803 = vunpack.c.l.bf16 %v802
    %v804 = vmax.f32 %v800, %v803
    %s805 = scalar_lea.vmem [#allocation2], 90
    %v806 = vld [vmem:[%s805] sm:$0x3]
    %v807 = vunpack.c.l.bf16 %v806
    %v808 = vmax.f32 %v804, %v807
    %s809 = scalar_lea.vmem [#allocation2], 92
    %v810 = vld [vmem:[%s809] sm:$0x3]
    %v811 = vunpack.c.l.bf16 %v810
    %v812 = vmax.f32 %v808, %v811
    %s813 = scalar_lea.vmem [#allocation2], 94
    %v814 = vld [vmem:[%s813] sm:$0x3]
    %v815 = vunpack.c.l.bf16 %v814
    %v816 = vmax.f32 %v812, %v815
    %s817 = scalar_lea.vmem [#allocation2], 96
    %v818 = vld [vmem:[%s817] sm:$0x3]
    %v819 = vunpack.c.l.bf16 %v818
    %v820 = vmax.f32 %v816, %v819
    %s821 = scalar_lea.vmem [#allocation2], 98
    %v822 = vld [vmem:[%s821] sm:$0x3]
    %v823 = vunpack.c.l.bf16 %v822
    %v824 = vmax.f32 %v820, %v823
    %s825 = scalar_lea.vmem [#allocation2], 100
    %v826 = vld [vmem:[%s825] sm:$0x3]
    %v827 = vunpack.c.l.bf16 %v826
    %v828 = vmax.f32 %v824, %v827
    %v829 = vsub.f32 %v764, %v828
    %v830 = vmul.f32 %v829, 1.442695
    %v831 = vpow.pop %v830
    %v832 = vadd.f32 %v831, 0.0
    %v833 = vand.u32 2147483647, %v761
    %v834 = vsub.f32 1.0, %v833
    %v835 = vmax.f32 %v834, 0.0
    %v836 = vmul.f32 %v835, %v764
    %v837 = vadd.f32 %v836, 0.0
    %v838 = vsub.f32 %v767, %v828
    %v839 = vmul.f32 %v838, 1.442695
    %v840 = vpow.pop %v839
    %v841 = vadd.f32 %v832, %v840
    %v842 = vsub.f32 %v761, 1.0
    %v843 = vand.u32 2147483647, %v842
    %v844 = vsub.f32 1.0, %v843
    %v845 = vmax.f32 %v844, 0.0
    %v846 = vmul.f32 %v845, %v767
    %v847 = vadd.f32 %v837, %v846
    %v848 = vsub.f32 %v771, %v828
    %v849 = vmul.f32 %v848, 1.442695
    %v850 = vpow.pop %v849
    %v851 = vadd.f32 %v841, %v850
    %v852 = vsub.f32 %v761, 2.0
    %v853 = vand.u32 2147483647, %v852
    %v854 = vsub.f32 1.0, %v853
    %v855 = vmax.f32 %v854, 0.0
    %v856 = vmul.f32 %v855, %v771
    %v857 = vadd.f32 %v847, %v856
    %v858 = vsub.f32 %v775, %v828
    %v859 = vmul.f32 %v858, 1.442695
    %v860 = vpow.pop %v859
    %v861 = vadd.f32 %v851, %v860
    %v862 = vsub.f32 %v761, 3.0
    %v863 = vand.u32 2147483647, %v862
    %v864 = vsub.f32 1.0, %v863
    %v865 = vmax.f32 %v864, 0.0
    %v866 = vmul.f32 %v865, %v775
    %v867 = vadd.f32 %v857, %v866
    %v868 = vsub.f32 %v779, %v828
    %v869 = vmul.f32 %v868, 1.442695
    %v870 = vpow.pop %v869
    %v871 = vadd.f32 %v861, %v870
    %v872 = vsub.f32 %v761, 4.0
    %v873 = vand.u32 2147483647, %v872
    %v874 = vsub.f32 1.0, %v873
    %v875 = vmax.f32 %v874, 0.0
    %v876 = vmul.f32 %v875, %v779
    %v877 = vadd.f32 %v867, %v876
    %v878 = vsub.f32 %v783, %v828
    %v879 = vmul.f32 %v878, 1.442695
    %v880 = vpow.pop %v879
    %v881 = vadd.f32 %v871, %v880
    %v882 = vsub.f32 %v761, 5.0
    %v883 = vand.u32 2147483647, %v882
    %v884 = vsub.f32 1.0, %v883
    %v885 = vmax.f32 %v884, 0.0
    %v886 = vmul.f32 %v885, %v783
    %v887 = vadd.f32 %v877, %v886
    %v888 = vsub.f32 %v787, %v828
    %v889 = vmul.f32 %v888, 1.442695
    %v890 = vpow.pop %v889
    %v891 = vadd.f32 %v881, %v890
    %v892 = vsub.f32 %v761, 6.0
    %v893 = vand.u32 2147483647, %v892
    %v894 = vsub.f32 1.0, %v893
    %v895 = vmax.f32 %v894, 0.0
    %v896 = vmul.f32 %v895, %v787
    %v897 = vadd.f32 %v887, %v896
    %v898 = vsub.f32 %v791, %v828
    %v899 = vmul.f32 %v898, 1.442695
    %v900 = vpow.pop %v899
    %v901 = vadd.f32 %v891, %v900
    %v902 = vsub.f32 %v761, 7.0
    %v903 = vand.u32 2147483647, %v902
    %v904 = vsub.f32 1.0, %v903
    %v905 = vmax.f32 %v904, 0.0
    %v906 = vmul.f32 %v905, %v791
    %v907 = vadd.f32 %v897, %v906
    %v908 = vsub.f32 %v795, %v828
    %v909 = vmul.f32 %v908, 1.442695
    %v910 = vpow.pop %v909
    %v911 = vadd.f32 %v901, %v910
    %v912 = vsub.f32 %v761, 8.0
    %v913 = vand.u32 2147483647, %v912
    %v914 = vsub.f32 1.0, %v913
    %v915 = vmax.f32 %v914, 0.0
    %v916 = vmul.f32 %v915, %v795
    %v917 = vadd.f32 %v907, %v916
    %v918 = vsub.f32 %v799, %v828
    %v919 = vmul.f32 %v918, 1.442695
    %v920 = vpow.pop %v919
    %v921 = vadd.f32 %v911, %v920
    %v922 = vsub.f32 %v761, 9.0
    %v923 = vand.u32 2147483647, %v922
    %v924 = vsub.f32 1.0, %v923
    %v925 = vmax.f32 %v924, 0.0
    %v926 = vmul.f32 %v925, %v799
    %v927 = vadd.f32 %v917, %v926
    %v928 = vsub.f32 %v803, %v828
    %v929 = vmul.f32 %v928, 1.442695
    %v930 = vpow.pop %v929
    %v931 = vadd.f32 %v921, %v930
    %v932 = vsub.f32 %v761, 10.0
    %v933 = vand.u32 2147483647, %v932
    %v934 = vsub.f32 1.0, %v933
    %v935 = vmax.f32 %v934, 0.0
    %v936 = vmul.f32 %v935, %v803
    %v937 = vadd.f32 %v927, %v936
    %v938 = vsub.f32 %v807, %v828
    %v939 = vmul.f32 %v938, 1.442695
    %v940 = vpow.pop %v939
    %v941 = vadd.f32 %v931, %v940
    %v942 = vsub.f32 %v761, 11.0
    %v943 = vand.u32 2147483647, %v942
    %v944 = vsub.f32 1.0, %v943
    %v945 = vmax.f32 %v944, 0.0
    %v946 = vmul.f32 %v945, %v807
    %v947 = vadd.f32 %v937, %v946
    %v948 = vsub.f32 %v811, %v828
    %v949 = vmul.f32 %v948, 1.442695
    %v950 = vpow.pop %v949
    %v951 = vadd.f32 %v941, %v950
    %v952 = vsub.f32 %v761, 12.0
    %v953 = vand.u32 2147483647, %v952
    %v954 = vsub.f32 1.0, %v953
    %v955 = vmax.f32 %v954, 0.0
    %v956 = vmul.f32 %v955, %v811
    %v957 = vadd.f32 %v947, %v956
    %v958 = vsub.f32 %v815, %v828
    %v959 = vmul.f32 %v958, 1.442695
    %v960 = vpow.pop %v959
    %v961 = vadd.f32 %v951, %v960
    %v962 = vsub.f32 %v761, 13.0
    %v963 = vand.u32 2147483647, %v962
    %v964 = vsub.f32 1.0, %v963
    %v965 = vmax.f32 %v964, 0.0
    %v966 = vmul.f32 %v965, %v815
    %v967 = vadd.f32 %v957, %v966
    %v968 = vsub.f32 %v819, %v828
    %v969 = vmul.f32 %v968, 1.442695
    %v970 = vpow.pop %v969
    %v971 = vadd.f32 %v961, %v970
    %v972 = vsub.f32 %v761, 14.0
    %v973 = vand.u32 2147483647, %v972
    %v974 = vsub.f32 1.0, %v973
    %v975 = vmax.f32 %v974, 0.0
    %v976 = vmul.f32 %v975, %v819
    %v977 = vadd.f32 %v967, %v976
    %v978 = vsub.f32 %v823, %v828
    %v979 = vmul.f32 %v978, 1.442695
    %v980 = vpow.pop %v979
    %v981 = vadd.f32 %v971, %v980
    %v982 = vsub.f32 %v761, 15.0
    %v983 = vand.u32 2147483647, %v982
    %v984 = vsub.f32 1.0, %v983
    %v985 = vmax.f32 %v984, 0.0
    %v986 = vmul.f32 %v985, %v823
    %v987 = vadd.f32 %v977, %v986
    %v988 = vsub.f32 %v827, %v828
    %v989 = vmul.f32 %v988, 1.442695
    %v990 = vpow.pop %v989
    %v991 = vadd.f32 %v981, %v990
    %v992 = vsub.f32 %v761, 16.0
    %v993 = vand.u32 2147483647, %v992
    %v994 = vsub.f32 1.0, %v993
    %v995 = vmax.f32 %v994, 0.0
    %v996 = vmul.f32 %v995, %v827
    %v997 = vadd.f32 %v987, %v996
    %v998 = vlog2.pop %v991
    %v999 = vmul.f32 %v998, 0.6931472
    %v1000 = vadd.f32 %v828, %v999
    %v1001 = vsub.f32 %v1000, %v997
    %v1002 = vadd.f32 %v758, %v1001
    %v1003 = vsub.f32 %v97, %v271
    %v1004 = vmax.f32 %v1003, 0.0
    %v1005 = vmin.f32 %v1004, 15.99
    %s1006 = scalar_lea.vmem [#allocation2], 102
    %v1007 = vld [vmem:[%s1006] sm:$0x3]
    %v1008 = vunpack.c.l.bf16 %v1007
    %s1009 = scalar_lea.vmem [#allocation2], 104
    %v1010 = vld [vmem:[%s1009] sm:$0x3]
    %v1011 = vunpack.c.l.bf16 %v1010
    %v1012 = vmax.f32 %v1008, %v1011
    %s1013 = scalar_lea.vmem [#allocation2], 106
    %v1014 = vld [vmem:[%s1013] sm:$0x3]
    %v1015 = vunpack.c.l.bf16 %v1014
    %v1016 = vmax.f32 %v1012, %v1015
    %s1017 = scalar_lea.vmem [#allocation2], 108
    %v1018 = vld [vmem:[%s1017] sm:$0x3]
    %v1019 = vunpack.c.l.bf16 %v1018
    %v1020 = vmax.f32 %v1016, %v1019
    %s1021 = scalar_lea.vmem [#allocation2], 110
    %v1022 = vld [vmem:[%s1021] sm:$0x3]
    %v1023 = vunpack.c.l.bf16 %v1022
    %v1024 = vmax.f32 %v1020, %v1023
    %s1025 = scalar_lea.vmem [#allocation2], 112
    %v1026 = vld [vmem:[%s1025] sm:$0x3]
    %v1027 = vunpack.c.l.bf16 %v1026
    %v1028 = vmax.f32 %v1024, %v1027
    %s1029 = scalar_lea.vmem [#allocation2], 114
    %v1030 = vld [vmem:[%s1029] sm:$0x3]
    %v1031 = vunpack.c.l.bf16 %v1030
    %v1032 = vmax.f32 %v1028, %v1031
    %s1033 = scalar_lea.vmem [#allocation2], 116
    %v1034 = vld [vmem:[%s1033] sm:$0x3]
    %v1035 = vunpack.c.l.bf16 %v1034
    %v1036 = vmax.f32 %v1032, %v1035
    %s1037 = scalar_lea.vmem [#allocation2], 118
    %v1038 = vld [vmem:[%s1037] sm:$0x3]
    %v1039 = vunpack.c.l.bf16 %v1038
    %v1040 = vmax.f32 %v1036, %v1039
    %s1041 = scalar_lea.vmem [#allocation2], 120
    %v1042 = vld [vmem:[%s1041] sm:$0x3]
    %v1043 = vunpack.c.l.bf16 %v1042
    %v1044 = vmax.f32 %v1040, %v1043
    %s1045 = scalar_lea.vmem [#allocation2], 122
    %v1046 = vld [vmem:[%s1045] sm:$0x3]
    %v1047 = vunpack.c.l.bf16 %v1046
    %v1048 = vmax.f32 %v1044, %v1047
    %s1049 = scalar_lea.vmem [#allocation2], 124
    %v1050 = vld [vmem:[%s1049] sm:$0x3]
    %v1051 = vunpack.c.l.bf16 %v1050
    %v1052 = vmax.f32 %v1048, %v1051
    %s1053 = scalar_lea.vmem [#allocation2], 126
    %v1054 = vld [vmem:[%s1053] sm:$0x3]
    %v1055 = vunpack.c.l.bf16 %v1054
    %v1056 = vmax.f32 %v1052, %v1055
    %s1057 = scalar_lea.vmem [#allocation2], 128
    %v1058 = vld [vmem:[%s1057] sm:$0x3]
    %v1059 = vunpack.c.l.bf16 %v1058
    %v1060 = vmax.f32 %v1056, %v1059
    %s1061 = scalar_lea.vmem [#allocation2], 130
    %v1062 = vld [vmem:[%s1061] sm:$0x3]
    %v1063 = vunpack.c.l.bf16 %v1062
    %v1064 = vmax.f32 %v1060, %v1063
    %s1065 = scalar_lea.vmem [#allocation2], 132
    %v1066 = vld [vmem:[%s1065] sm:$0x3]
    %v1067 = vunpack.c.l.bf16 %v1066
    %v1068 = vmax.f32 %v1064, %v1067
    %s1069 = scalar_lea.vmem [#allocation2], 134
    %v1070 = vld [vmem:[%s1069] sm:$0x3]
    %v1071 = vunpack.c.l.bf16 %v1070
    %v1072 = vmax.f32 %v1068, %v1071
    %v1073 = vsub.f32 %v1008, %v1072
    %v1074 = vmul.f32 %v1073, 1.442695
    %v1075 = vpow.pop %v1074
    %v1076 = vadd.f32 %v1075, 0.0
    %v1077 = vand.u32 2147483647, %v1005
    %v1078 = vsub.f32 1.0, %v1077
    %v1079 = vmax.f32 %v1078, 0.0
    %v1080 = vmul.f32 %v1079, %v1008
    %v1081 = vadd.f32 %v1080, 0.0
    %v1082 = vsub.f32 %v1011, %v1072
    %v1083 = vmul.f32 %v1082, 1.442695
    %v1084 = vpow.pop %v1083
    %v1085 = vadd.f32 %v1076, %v1084
    %v1086 = vsub.f32 %v1005, 1.0
    %v1087 = vand.u32 2147483647, %v1086
    %v1088 = vsub.f32 1.0, %v1087
    %v1089 = vmax.f32 %v1088, 0.0
    %v1090 = vmul.f32 %v1089, %v1011
    %v1091 = vadd.f32 %v1081, %v1090
    %v1092 = vsub.f32 %v1015, %v1072
    %v1093 = vmul.f32 %v1092, 1.442695
    %v1094 = vpow.pop %v1093
    %v1095 = vadd.f32 %v1085, %v1094
    %v1096 = vsub.f32 %v1005, 2.0
    %v1097 = vand.u32 2147483647, %v1096
    %v1098 = vsub.f32 1.0, %v1097
    %v1099 = vmax.f32 %v1098, 0.0
    %v1100 = vmul.f32 %v1099, %v1015
    %v1101 = vadd.f32 %v1091, %v1100
    %v1102 = vsub.f32 %v1019, %v1072
    %v1103 = vmul.f32 %v1102, 1.442695
    %v1104 = vpow.pop %v1103
    %v1105 = vadd.f32 %v1095, %v1104
    %v1106 = vsub.f32 %v1005, 3.0
    %v1107 = vand.u32 2147483647, %v1106
    %v1108 = vsub.f32 1.0, %v1107
    %v1109 = vmax.f32 %v1108, 0.0
    %v1110 = vmul.f32 %v1109, %v1019
    %v1111 = vadd.f32 %v1101, %v1110
    %v1112 = vsub.f32 %v1023, %v1072
    %v1113 = vmul.f32 %v1112, 1.442695
    %v1114 = vpow.pop %v1113
    %v1115 = vadd.f32 %v1105, %v1114
    %v1116 = vsub.f32 %v1005, 4.0
    %v1117 = vand.u32 2147483647, %v1116
    %v1118 = vsub.f32 1.0, %v1117
    %v1119 = vmax.f32 %v1118, 0.0
    %v1120 = vmul.f32 %v1119, %v1023
    %v1121 = vadd.f32 %v1111, %v1120
    %v1122 = vsub.f32 %v1027, %v1072
    %v1123 = vmul.f32 %v1122, 1.442695
    %v1124 = vpow.pop %v1123
    %v1125 = vadd.f32 %v1115, %v1124
    %v1126 = vsub.f32 %v1005, 5.0
    %v1127 = vand.u32 2147483647, %v1126
    %v1128 = vsub.f32 1.0, %v1127
    %v1129 = vmax.f32 %v1128, 0.0
    %v1130 = vmul.f32 %v1129, %v1027
    %v1131 = vadd.f32 %v1121, %v1130
    %v1132 = vsub.f32 %v1031, %v1072
    %v1133 = vmul.f32 %v1132, 1.442695
    %v1134 = vpow.pop %v1133
    %v1135 = vadd.f32 %v1125, %v1134
    %v1136 = vsub.f32 %v1005, 6.0
    %v1137 = vand.u32 2147483647, %v1136
    %v1138 = vsub.f32 1.0, %v1137
    %v1139 = vmax.f32 %v1138, 0.0
    %v1140 = vmul.f32 %v1139, %v1031
    %v1141 = vadd.f32 %v1131, %v1140
    %v1142 = vsub.f32 %v1035, %v1072
    %v1143 = vmul.f32 %v1142, 1.442695
    %v1144 = vpow.pop %v1143
    %v1145 = vadd.f32 %v1135, %v1144
    %v1146 = vsub.f32 %v1005, 7.0
    %v1147 = vand.u32 2147483647, %v1146
    %v1148 = vsub.f32 1.0, %v1147
    %v1149 = vmax.f32 %v1148, 0.0
    %v1150 = vmul.f32 %v1149, %v1035
    %v1151 = vadd.f32 %v1141, %v1150
    %v1152 = vsub.f32 %v1039, %v1072
    %v1153 = vmul.f32 %v1152, 1.442695
    %v1154 = vpow.pop %v1153
    %v1155 = vadd.f32 %v1145, %v1154
    %v1156 = vsub.f32 %v1005, 8.0
    %v1157 = vand.u32 2147483647, %v1156
    %v1158 = vsub.f32 1.0, %v1157
    %v1159 = vmax.f32 %v1158, 0.0
    %v1160 = vmul.f32 %v1159, %v1039
    %v1161 = vadd.f32 %v1151, %v1160
    %v1162 = vsub.f32 %v1043, %v1072
    %v1163 = vmul.f32 %v1162, 1.442695
    %v1164 = vpow.pop %v1163
    %v1165 = vadd.f32 %v1155, %v1164
    %v1166 = vsub.f32 %v1005, 9.0
    %v1167 = vand.u32 2147483647, %v1166
    %v1168 = vsub.f32 1.0, %v1167
    %v1169 = vmax.f32 %v1168, 0.0
    %v1170 = vmul.f32 %v1169, %v1043
    %v1171 = vadd.f32 %v1161, %v1170
    %v1172 = vsub.f32 %v1047, %v1072
    %v1173 = vmul.f32 %v1172, 1.442695
    %v1174 = vpow.pop %v1173
    %v1175 = vadd.f32 %v1165, %v1174
    %v1176 = vsub.f32 %v1005, 10.0
    %v1177 = vand.u32 2147483647, %v1176
    %v1178 = vsub.f32 1.0, %v1177
    %v1179 = vmax.f32 %v1178, 0.0
    %v1180 = vmul.f32 %v1179, %v1047
    %v1181 = vadd.f32 %v1171, %v1180
    %v1182 = vsub.f32 %v1051, %v1072
    %v1183 = vmul.f32 %v1182, 1.442695
    %v1184 = vpow.pop %v1183
    %v1185 = vadd.f32 %v1175, %v1184
    %v1186 = vsub.f32 %v1005, 11.0
    %v1187 = vand.u32 2147483647, %v1186
    %v1188 = vsub.f32 1.0, %v1187
    %v1189 = vmax.f32 %v1188, 0.0
    %v1190 = vmul.f32 %v1189, %v1051
    %v1191 = vadd.f32 %v1181, %v1190
    %v1192 = vsub.f32 %v1055, %v1072
    %v1193 = vmul.f32 %v1192, 1.442695
    %v1194 = vpow.pop %v1193
    %v1195 = vadd.f32 %v1185, %v1194
    %v1196 = vsub.f32 %v1005, 12.0
    %v1197 = vand.u32 2147483647, %v1196
    %v1198 = vsub.f32 1.0, %v1197
    %v1199 = vmax.f32 %v1198, 0.0
    %v1200 = vmul.f32 %v1199, %v1055
    %v1201 = vadd.f32 %v1191, %v1200
    %v1202 = vsub.f32 %v1059, %v1072
    %v1203 = vmul.f32 %v1202, 1.442695
    %v1204 = vpow.pop %v1203
    %v1205 = vadd.f32 %v1195, %v1204
    %v1206 = vsub.f32 %v1005, 13.0
    %v1207 = vand.u32 2147483647, %v1206
    %v1208 = vsub.f32 1.0, %v1207
    %v1209 = vmax.f32 %v1208, 0.0
    %v1210 = vmul.f32 %v1209, %v1059
    %v1211 = vadd.f32 %v1201, %v1210
    %v1212 = vsub.f32 %v1063, %v1072
    %v1213 = vmul.f32 %v1212, 1.442695
    %v1214 = vpow.pop %v1213
    %v1215 = vadd.f32 %v1205, %v1214
    %v1216 = vsub.f32 %v1005, 14.0
    %v1217 = vand.u32 2147483647, %v1216
    %v1218 = vsub.f32 1.0, %v1217
    %v1219 = vmax.f32 %v1218, 0.0
    %v1220 = vmul.f32 %v1219, %v1063
    %v1221 = vadd.f32 %v1211, %v1220
    %v1222 = vsub.f32 %v1067, %v1072
    %v1223 = vmul.f32 %v1222, 1.442695
    %v1224 = vpow.pop %v1223
    %v1225 = vadd.f32 %v1215, %v1224
    %v1226 = vsub.f32 %v1005, 15.0
    %v1227 = vand.u32 2147483647, %v1226
    %v1228 = vsub.f32 1.0, %v1227
    %v1229 = vmax.f32 %v1228, 0.0
    %v1230 = vmul.f32 %v1229, %v1067
    %v1231 = vadd.f32 %v1221, %v1230
    %v1232 = vsub.f32 %v1071, %v1072
    %v1233 = vmul.f32 %v1232, 1.442695
    %v1234 = vpow.pop %v1233
    %v1235 = vadd.f32 %v1225, %v1234
    %v1236 = vsub.f32 %v1005, 16.0
    %v1237 = vand.u32 2147483647, %v1236
    %v1238 = vsub.f32 1.0, %v1237
    %v1239 = vmax.f32 %v1238, 0.0
    %v1240 = vmul.f32 %v1239, %v1071
    %v1241 = vadd.f32 %v1231, %v1240
    %v1242 = vlog2.pop %v1235
    %v1243 = vmul.f32 %v1242, 0.6931472
    %v1244 = vadd.f32 %v1072, %v1243
    %v1245 = vsub.f32 %v1244, %v1241
    %v1246 = vadd.f32 %v1002, %v1245
    %v1247 = vmul.f32 %v1246, 0.25
    %1248 = vst [vmem:[#allocation11] sm:$0xf] %v1247
    // Predicated region
    $region34: #{tpu_custom_call.1} parent=1 // pred_check
      _
    $region35: #{tpu_custom_call.1} parent=1 // pred_check_branch
      %1250 = sbr.rel (0) target = $region37
    $region36: #{tpu_custom_call.1} parent=1 // pred_region
      %1252 = vsyncadd [#allocation4], 0
      %s1254 = sshll.u32 [#allocation10], 4
      %s1255 = int_to_ptr.vmem [resolvable:$true] %s1254
      %s1256 = sshll.u32 %s4, 4
      %s1257 = int_to_ptr.hbm [resolvable:$true] %s1256
      %1259 = dma.vmem_to_hbm [thread:$0]  %s1255, 64, %s1257, [#allocation4]
    $region37: #{tpu_custom_call.1} parent=1 // pred_fallthru
      _
    // Predicated region
    $region38: #{tpu_custom_call.1} parent=1 // pred_check
      _
    $region39: #{tpu_custom_call.1} parent=1 // pred_check_branch
      %1261 = sbr.rel (0) target = $region41
    $region40: #{tpu_custom_call.1} parent=1 // pred_region
      %1263 = vsyncadd [#allocation12], 0
      %s1265 = sshll.u32 [#allocation11], 4
      %s1266 = int_to_ptr.vmem [resolvable:$true] %s1265
      %s1267 = sshll.u32 %s5, 4
      %s1268 = int_to_ptr.hbm [resolvable:$true] %s1267
      %1270 = dma.vmem_to_hbm [thread:$0]  %s1266, 64, %s1268, [#allocation12]
    $region41: #{tpu_custom_call.1} parent=1 // pred_fallthru
      _
    // Predicated region
    $region42: #{tpu_custom_call.1} parent=1 // pred_check
      _
    $region43: #{tpu_custom_call.1} parent=1 // pred_check_branch
      %1272 = sbr.rel (0) target = $region45
    $region44: #{tpu_custom_call.1} parent=1 // pred_region
      %1274 = dma.done [#allocation4], 64
    $region45: #{tpu_custom_call.1} parent=1 // pred_fallthru
      _
    // Predicated region
    $region46: #{tpu_custom_call.1} parent=1 // pred_check
      _
    $region47: #{tpu_custom_call.1} parent=1 // pred_check_branch
      %1276 = sbr.rel (0) target = $region49
    $region48: #{tpu_custom_call.1} parent=1 // pred_region
      %1278 = dma.done [#allocation12], 64
    $region49: #{tpu_custom_call.1} parent=1 // pred_fallthru
      _
    %1279 = vsyncpa [#allocation3], 1
    %1280 = vsyncpa [#allocation6], 1
    %1281 = vsyncpa [#allocation9], 1
    %1282 = vsyncpa [#allocation4], 1
    %1283 = vsyncpa [#allocation12], 1

</llo_original>
